<compile_context>
chip_gen: v7x
topology: tpu7x:2x2x1
jax: 0.10.0
libtpu: 0.0.40
codegen_flags: <defaults>
</compile_context>

<pallas_src>
import functools

import jax
import jax.numpy as jnp
import numpy as np
from jax.experimental import pallas as pl
from jax.experimental.pallas import tpu as pltpu


# ----------------------------------------------------------------------------
# Math shared by the Pallas kernel (roll = pltpu.roll) and the pure-JAX
# reference (roll = jnp.roll).  All tensors are channels-first 2-D: (C, L).
# ----------------------------------------------------------------------------
def _edge_masks(l_total, seg_len):
    """Valid-position masks for centered tap distances d in {+-1, +-2, +-3}.

    Positions are taken modulo `seg_len`, so `lane_fold` batch elements can be
    packed side-by-side along the lane axis without taps leaking across them.
    Computed once per grid step and reused by every stencil / maxpool call."""
    idx = jax.lax.broadcasted_iota(jnp.int32, (1, l_total), 1)
    loc = idx if seg_len == l_total else idx % seg_len
    masks = {}
    for d in (1, 2, 3):
        masks[d] = loc < seg_len - d          # reading x[:, j + d] stays in segment
        masks[-d] = loc >= d                  # reading x[:, j - d] stays in segment
    return masks


def _shift(x, d, roll):
    """shifted[:, j] = x[:, j + d] (cyclic; caller masks the segment edges)."""
    l = x.shape[-1]
    return roll(x, (-d) % l, 1)


def _stencil(x, dw, k, masks, roll):
    """Centered k-tap depthwise conv along lanes (zero padding at segment edges).

    x: (R, L) f32.  dw: (R, 8) f32, tap for distance d at lane d+3."""
    h = k // 2
    acc = x * dw[:, 3:4]
    for d in range(1, h + 1):
        for s in (d, -d):
            shifted = jnp.where(masks[s], _shift(x, s, roll), 0.0)
            acc = acc + shifted * dw[:, 3 + s:4 + s]
    return acc


def _grouped_stencil(x, dw, groups, masks, roll):
    """Per-row-group stencils: each group only pays for its own kernel width."""
    outs = [_stencil(x[r0:r1], dw[r0:r1], k, masks, roll) for r0, r1, k in groups]
    return jnp.concatenate(outs, axis=0)


def _stage1_group_a(xl_r, xr_r, dw, masks, roll, c):
    """First depthwise stage of the fused group A (branches BS5(xl), BS7(xr),
    BS5(xr), BS3(xr), BS3(xl)).  The unique inputs are shifted once per tap
    distance; each branch's output is a weighted sum of the shared shifts."""
    sh_l = {0: xl_r}
    for d in (-2, -1, 1, 2):                       # BS5/BS3 on xl
        sh_l[d] = jnp.where(masks[d], _shift(xl_r, d, roll), 0.0)
    sh_r = {0: xr_r}
    for d in (-3, -2, -1, 1, 2, 3):                # BS7/BS5/BS3 on xr
        sh_r[d] = jnp.where(masks[d], _shift(xr_r, d, roll), 0.0)

    # (row-group index, shifted-input dict, kernel size)
    specs = ((0, sh_l, 5), (1, sh_r, 7), (2, sh_r, 5), (3, sh_r, 3), (4, sh_l, 3))
    outs = []
    for bi, sh, k in specs:
        rows = slice(bi * c, (bi + 1) * c)
        acc = sh[0] * dw[rows, 3:4]
        for d in range(1, k // 2 + 1):
            acc = acc + sh[d] * dw[rows, 3 + d:4 + d] \
                      + sh[-d] * dw[rows, 3 - d:4 - d]
        outs.append(acc)
    return jnp.concatenate(outs, axis=0)           # (5C, L) matmul operand


def _maxpool3(x, masks, roll):
    """MaxPool1d(kernel=3, stride=1, padding=1) along L (torch -inf padding)."""
    l = x.shape[-1]
    left = jnp.where(masks[-1], roll(x, 1, 1), -jnp.inf)       # x[:, j-1]
    right = jnp.where(masks[1], roll(x, l - 1, 1), -jnp.inf)   # x[:, j+1]
    return jnp.maximum(jnp.maximum(left, x), right)


def _pw(w, x, shift):
    """1x1 conv as bf16 MXU matmul (BN scale folded into w) + per-channel shift."""
    return jnp.dot(w, x.astype(w.dtype), preferred_element_type=jnp.float32) + shift


def _cell_math(xl_in, xr_in, params, masks, roll):
    """Whole cell for one batch element (or lane-folded slab), channels-first."""
    (wl, bl, wr, br,
     dw1a, w1a, sh1a, dw2a, w2a, sh2a,
     dw1b, w1b, sh1b, dw2b, w2b, sh2b) = params
    c = wl.shape[0]

    xl = _pw(wl, jnp.maximum(xl_in, 0.0), bl)      # conv_prev_1x1 (ReluConvBn)
    xr = _pw(wr, jnp.maximum(xr_in, 0.0), br)      # conv_1x1     (ReluConvBn)
    xl_r = jnp.maximum(xl, 0.0)
    xr_r = jnp.maximum(xr, 0.0)

    # Group A: branches {0: BS5(xl), 1: BS7(xr), 2: BS5(xr), 3: BS3(xr),
    # 5: BS3(xl)} packed along channels; pointwise convs are block-diagonal.
    d1 = _stage1_group_a(xl_r, xr_r, dw1a, masks, roll, c)
    z = jnp.maximum(_pw(w1a, d1, sh1a), 0.0)
    groups_a = ((0, c, 5), (c, 2 * c, 7), (2 * c, 3 * c, 5), (3 * c, 5 * c, 3))
    d2 = _grouped_stencil(z, dw2a, groups_a, masks, roll)
    outa = _pw(w2a, d2, sh2a)

    b0 = outa[0:c]
    b1 = outa[c:2 * c]
    b2 = outa[2 * c:3 * c]
    b3 = outa[3 * c:4 * c]
    b5 = outa[4 * c:5 * c]
    comb2 = b2 + b3

    # Group B: branch 4 = BS3(comb2) (depends on group A, so runs second).
    db1 = _stencil(jnp.maximum(comb2, 0.0), dw1b, 3, masks, roll)
    zb = jnp.maximum(_pw(w1b, db1, sh1b), 0.0)
    db2 = _stencil(zb, dw2b, 3, masks, roll)
    out4 = _pw(w2b, db2, sh2b)

    mp_l = _maxpool3(xl, masks, roll)
    mp_r = _maxpool3(xr, masks, roll)
    comb0 = b0 + mp_l
    comb1 = b1 + mp_r
    comb3 = out4 + mp_r
    comb4 = b5 + xr                                # comb_iter_4_right is None
    return comb0, comb1, comb2, comb3, comb4


# ----------------------------------------------------------------------------
# Pallas kernel + wrapper
# ----------------------------------------------------------------------------
def cell_kernel(xl_ref, xr_ref, *rest, seg_len):
    *param_refs, out_ref = rest
    params = tuple(r[...] for r in param_refs)
    l_total = xl_ref.shape[-1]
    masks = _edge_masks(l_total, seg_len)          # hoisted once per grid step
    combs = _cell_math(xl_ref[0], xr_ref[0], params, masks, roll=pltpu.roll)
    c = combs[0].shape[0]
    for i, comb in enumerate(combs):               # direct, aligned, lane-dense stores
        out_ref[0, i * c:(i + 1) * c, :] = comb


def pnas_cell_forward(x_left, x_right, params, *, lane_fold=1):
    """x_left: (N, in_ch_left, L), x_right: (N, in_ch_right, L) -- torch NCL.

    lane_fold > 1 folds that many batch elements into the lane axis of one
    grid step (v6e/v7x: fills the 256-lane MXU, halves per-step overhead)."""
    n, cl_in, l = x_left.shape
    _, cr_in, _ = x_right.shape
    c = params[0].shape[0]                         # out channels of conv_prev_1x1
    assert n % lane_fold == 0
    nb = n // lane_fold
    lt = l * lane_fold

    def fold(x):
        if lane_fold == 1:
            return x
        ci = x.shape[1]
        return (x.reshape(nb, lane_fold, ci, l)
                 .transpose(0, 2, 1, 3)
                 .reshape(nb, ci, lt))

    xl = fold(x_left.astype(jnp.float32))
    xr = fold(x_right.astype(jnp.float32))

    def batch_map(i):
        return (i, 0, 0)

    in_specs = ([pl.BlockSpec((1, cl_in, lt), batch_map),
                 pl.BlockSpec((1, cr_in, lt), batch_map)]
                + [pl.BlockSpec(p.shape, lambda i: (0, 0)) for p in params])

    out = pl.pallas_call(
        functools.partial(cell_kernel, seg_len=l),
        out_shape=jax.ShapeDtypeStruct((nb, 5 * c, lt), jnp.float32),
        grid=(nb,),
        in_specs=in_specs,
        out_specs=pl.BlockSpec((1, 5 * c, lt), batch_map),
        compiler_params=pltpu.CompilerParams(
            dimension_semantics=("parallel",),
            vmem_limit_bytes=32 * 1024 * 1024),
    )(xl, xr, *params)

    if lane_fold == 1:
        return out
    return (out.reshape(nb, 5 * c, lane_fold, l)
               .transpose(0, 2, 1, 3)
               .reshape(n, 5 * c, l))


# ----------------------------------------------------------------------------
# Deterministic synthetic parameters (shapes follow the torch module), folded /
# packed into the fused kernel format.
# ----------------------------------------------------------------------------
def _bn_fold(key, c, eps=1e-3):
    """Inference-mode BatchNorm1d folded to a per-channel scale/shift."""
    k1, k2, k3, k4 = jax.random.split(key, 4)
    gamma = 1.0 + 0.1 * jax.random.normal(k1, (c,), jnp.float32)
    beta = 0.1 * jax.random.normal(k2, (c,), jnp.float32)
    mean = 0.1 * jax.random.normal(k3, (c,), jnp.float32)
    var = 0.5 + 0.5 * jax.random.uniform(k4, (c,), jnp.float32)
    scale = gamma / jnp.sqrt(var + eps)
    shift = beta - mean * scale
    return scale, shift


def _branch_raw(key, c, k):
    """Raw parameters of one BranchSeparables(c, c, kernel_size=k)."""
    ks = jax.random.split(key, 6)
    return dict(
        k=k,
        dw1=0.3 * jax.random.normal(ks[0], (c, k), jnp.float32),
        pw1=0.2 * jax.random.normal(ks[1], (c, c), jnp.float32),   # (out, in)
        bn1=_bn_fold(ks[2], c),
        dw2=0.3 * jax.random.normal(ks[3], (c, k), jnp.float32),
        pw2=0.2 * jax.random.normal(ks[4], (c, c), jnp.float32),
        bn2=_bn_fold(ks[5], c))


def _embed_taps(dw, k):
    """(C, k) torch depthwise taps -> (C, 8): tap for distance d at lane d+3."""
    c = dw.shape[0]
    off = 3 - k // 2
    return jnp.zeros((c, 8), jnp.float32).at[:, off:off + k].set(dw)


def _block_diag(mats):
    c = mats[0].shape[0]
    out = jnp.zeros((len(mats) * c, len(mats) * c), jnp.float32)
    for i, m in enumerate(mats):
        out = out.at[i * c:(i + 1) * c, i * c:(i + 1) * c].set(m)
    return out


def _pack_group(branches):
    """Fuse BranchSeparables into one channel group: (Cg, 8) depthwise taps,
    block-diagonal bf16 pointwise weights with BN scale folded, BN shifts."""
    def pack_stage(dw_key, pw_key, bn_key):
        dw = jnp.concatenate([_embed_taps(b[dw_key], b["k"]) for b in branches], 0)
        w = _block_diag([b[bn_key][0][:, None] * b[pw_key] for b in branches])
        sh = jnp.concatenate([b[bn_key][1] for b in branches])[:, None]
        return dw, w.astype(jnp.bfloat16), sh
    dw1, w1, sh1 = pack_stage("dw1", "pw1", "bn1")
    dw2, w2, sh2 = pack_stage("dw2", "pw2", "bn2")
    return dw1, w1, sh1, dw2, w2, sh2


def make_cell_params(key, cl_in, cr_in, c):
    """Non-reduction Cell, out_channels_left == out_channels_right == c."""
    keys = jax.random.split(key, 5)
    wl = 0.2 * jax.random.normal(keys[0], (c, cl_in), jnp.float32)
    sl, bl = _bn_fold(keys[1], c)
    wr = 0.2 * jax.random.normal(keys[2], (c, cr_in), jnp.float32)
    sr, br = _bn_fold(keys[3], c)

    # branch index -> module:
    #   0: comb_iter_0_left BS5(xl)    1: comb_iter_1_left BS7(xr)
    #   2: comb_iter_2_left BS5(xr)    3: comb_iter_2_right BS3(xr)
    #   4: comb_iter_3_left BS3(comb2) 5: comb_iter_4_left BS3(xl)
    branch_ks = [5, 7, 5, 3, 3, 3]
    bkeys = jax.random.split(keys[4], 6)
    branches = [_branch_raw(bk, c, k) for bk, k in zip(bkeys, branch_ks)]

    group_a = _pack_group([branches[i] for i in (0, 1, 2, 3, 5)])
    group_b = _pack_group([branches[4]])

    return ((sl[:, None] * wl).astype(jnp.bfloat16), bl[:, None],
            (sr[:, None] * wr).astype(jnp.bfloat16), br[:, None],
            *group_a, *group_b)


# ----------------------------------------------------------------------------
if __name__ == "__main__":
    N, L = 2, 128                      # L multiple of 128 -> lane-dense stores
    CL_IN, CR_IN, C = 16, 24, 32       # in_ch_left, in_ch_right, out_channels

    key = jax.random.PRNGKey(0)
    k_xl, k_xr, k_p = jax.random.split(key, 3)
    x_left = jax.random.normal(k_xl, (N, CL_IN, L), jnp.float32)   # NCL
    x_right = jax.random.normal(k_xr, (N, CR_IN, L), jnp.float32)  # NCL
    params = make_cell_params(k_p, CL_IN, CR_IN, C)

    # Pure-JAX reference: identical math (same packed params), jnp.roll instead
    # of pltpu.roll, no Pallas.
    def ref_one(xl_b, xr_b):
        masks = _edge_masks(L, L)
        combs = _cell_math(xl_b, xr_b, params, masks, roll=jnp.roll)
        return jnp.concatenate(combs, axis=0)

    ref = jax.block_until_ready(jax.vmap(ref_one)(x_left, x_right))

    # Check both the per-batch-element path and the lane-folded path.
    for fold in (1, 2):
        out = jax.block_until_ready(
            pnas_cell_forward(x_left, x_right, params, lane_fold=fold))
        assert out.shape == (N, 5 * C, L), out.shape
        np.testing.assert_allclose(np.asarray(out), np.asarray(ref),
                                   rtol=2e-2, atol=2e-2)

    print("KERNEL_OK")
</pallas_src>

<mosaic_0001>
module attributes {stable_mosaic.version = 11 : i64} {
  func.func @cell_kernel(%arg0: i32, %arg1: memref<1x16x128xf32, #tpu.memory_space<vmem>>, %arg2: memref<1x24x128xf32, #tpu.memory_space<vmem>>, %arg3: memref<32x16xbf16, #tpu.memory_space<vmem>>, %arg4: memref<32x1xf32, #tpu.memory_space<vmem>>, %arg5: memref<32x24xbf16, #tpu.memory_space<vmem>>, %arg6: memref<32x1xf32, #tpu.memory_space<vmem>>, %arg7: memref<160x8xf32, #tpu.memory_space<vmem>>, %arg8: memref<160x160xbf16, #tpu.memory_space<vmem>>, %arg9: memref<160x1xf32, #tpu.memory_space<vmem>>, %arg10: memref<160x8xf32, #tpu.memory_space<vmem>>, %arg11: memref<160x160xbf16, #tpu.memory_space<vmem>>, %arg12: memref<160x1xf32, #tpu.memory_space<vmem>>, %arg13: memref<32x8xf32, #tpu.memory_space<vmem>>, %arg14: memref<32x32xbf16, #tpu.memory_space<vmem>>, %arg15: memref<32x1xf32, #tpu.memory_space<vmem>>, %arg16: memref<32x8xf32, #tpu.memory_space<vmem>>, %arg17: memref<32x32xbf16, #tpu.memory_space<vmem>>, %arg18: memref<32x1xf32, #tpu.memory_space<vmem>>, %arg19: memref<1x160x128xf32, #tpu.memory_space<vmem>>) attributes {dimension_semantics = [#tpu.dimension_semantics<parallel>], iteration_bounds = array<i64: 2>, scalar_prefetch = 0 : i64, scratch_operands = 0 : i64, tpu.core_type = #tpu.core_type<tc>, window_params = [{transform_indices = @transform_0, window_bounds = array<i64: 1, 16, 128>}, {transform_indices = @transform_1, window_bounds = array<i64: 1, 24, 128>}, {pipeline_mode = #tpu.pipeline_mode<synchronous>, transform_indices = @transform_2, window_bounds = array<i64: 32, 16>}, {pipeline_mode = #tpu.pipeline_mode<synchronous>, transform_indices = @transform_3, window_bounds = array<i64: 32, 1>}, {pipeline_mode = #tpu.pipeline_mode<synchronous>, transform_indices = @transform_4, window_bounds = array<i64: 32, 24>}, {pipeline_mode = #tpu.pipeline_mode<synchronous>, transform_indices = @transform_5, window_bounds = array<i64: 32, 1>}, {pipeline_mode = #tpu.pipeline_mode<synchronous>, transform_indices = @transform_6, window_bounds = array<i64: 160, 8>}, {pipeline_mode = #tpu.pipeline_mode<synchronous>, transform_indices = @transform_7, window_bounds = array<i64: 160, 160>}, {pipeline_mode = #tpu.pipeline_mode<synchronous>, transform_indices = @transform_8, window_bounds = array<i64: 160, 1>}, {pipeline_mode = #tpu.pipeline_mode<synchronous>, transform_indices = @transform_9, window_bounds = array<i64: 160, 8>}, {pipeline_mode = #tpu.pipeline_mode<synchronous>, transform_indices = @transform_10, window_bounds = array<i64: 160, 160>}, {pipeline_mode = #tpu.pipeline_mode<synchronous>, transform_indices = @transform_11, window_bounds = array<i64: 160, 1>}, {pipeline_mode = #tpu.pipeline_mode<synchronous>, transform_indices = @transform_12, window_bounds = array<i64: 32, 8>}, {pipeline_mode = #tpu.pipeline_mode<synchronous>, transform_indices = @transform_13, window_bounds = array<i64: 32, 32>}, {pipeline_mode = #tpu.pipeline_mode<synchronous>, transform_indices = @transform_14, window_bounds = array<i64: 32, 1>}, {pipeline_mode = #tpu.pipeline_mode<synchronous>, transform_indices = @transform_15, window_bounds = array<i64: 32, 8>}, {pipeline_mode = #tpu.pipeline_mode<synchronous>, transform_indices = @transform_16, window_bounds = array<i64: 32, 32>}, {pipeline_mode = #tpu.pipeline_mode<synchronous>, transform_indices = @transform_17, window_bounds = array<i64: 32, 1>}, {transform_indices = @transform_18, window_bounds = array<i64: 1, 160, 128>}]} {
    %c0 = arith.constant 0 : index
    %c0_0 = arith.constant 0 : index
    %0 = vector.load %arg3[%c0, %c0_0] : memref<32x16xbf16, #tpu.memory_space<vmem>>, vector<32x16xbf16>
    %c0_1 = arith.constant 0 : index
    %c0_2 = arith.constant 0 : index
    %1 = vector.load %arg4[%c0_1, %c0_2] : memref<32x1xf32, #tpu.memory_space<vmem>>, vector<32x1xf32>
    %c0_3 = arith.constant 0 : index
    %c0_4 = arith.constant 0 : index
    %2 = vector.load %arg5[%c0_3, %c0_4] : memref<32x24xbf16, #tpu.memory_space<vmem>>, vector<32x24xbf16>
    %c0_5 = arith.constant 0 : index
    %c0_6 = arith.constant 0 : index
    %3 = vector.load %arg6[%c0_5, %c0_6] : memref<32x1xf32, #tpu.memory_space<vmem>>, vector<32x1xf32>
    %c0_7 = arith.constant 0 : index
    %c0_8 = arith.constant 0 : index
    %4 = vector.load %arg7[%c0_7, %c0_8] : memref<160x8xf32, #tpu.memory_space<vmem>>, vector<160x8xf32>
    %c0_9 = arith.constant 0 : index
    %c0_10 = arith.constant 0 : index
    %5 = vector.load %arg8[%c0_9, %c0_10] : memref<160x160xbf16, #tpu.memory_space<vmem>>, vector<160x160xbf16>
    %c0_11 = arith.constant 0 : index
    %c0_12 = arith.constant 0 : index
    %6 = vector.load %arg9[%c0_11, %c0_12] : memref<160x1xf32, #tpu.memory_space<vmem>>, vector<160x1xf32>
    %c0_13 = arith.constant 0 : index
    %c0_14 = arith.constant 0 : index
    %7 = vector.load %arg10[%c0_13, %c0_14] : memref<160x8xf32, #tpu.memory_space<vmem>>, vector<160x8xf32>
    %c0_15 = arith.constant 0 : index
    %c0_16 = arith.constant 0 : index
    %8 = vector.load %arg11[%c0_15, %c0_16] : memref<160x160xbf16, #tpu.memory_space<vmem>>, vector<160x160xbf16>
    %c0_17 = arith.constant 0 : index
    %c0_18 = arith.constant 0 : index
    %9 = vector.load %arg12[%c0_17, %c0_18] : memref<160x1xf32, #tpu.memory_space<vmem>>, vector<160x1xf32>
    %c0_19 = arith.constant 0 : index
    %c0_20 = arith.constant 0 : index
    %10 = vector.load %arg13[%c0_19, %c0_20] : memref<32x8xf32, #tpu.memory_space<vmem>>, vector<32x8xf32>
    %c0_21 = arith.constant 0 : index
    %c0_22 = arith.constant 0 : index
    %11 = vector.load %arg14[%c0_21, %c0_22] : memref<32x32xbf16, #tpu.memory_space<vmem>>, vector<32x32xbf16>
    %c0_23 = arith.constant 0 : index
    %c0_24 = arith.constant 0 : index
    %12 = vector.load %arg15[%c0_23, %c0_24] : memref<32x1xf32, #tpu.memory_space<vmem>>, vector<32x1xf32>
    %c0_25 = arith.constant 0 : index
    %c0_26 = arith.constant 0 : index
    %13 = vector.load %arg16[%c0_25, %c0_26] : memref<32x8xf32, #tpu.memory_space<vmem>>, vector<32x8xf32>
    %c0_27 = arith.constant 0 : index
    %c0_28 = arith.constant 0 : index
    %14 = vector.load %arg17[%c0_27, %c0_28] : memref<32x32xbf16, #tpu.memory_space<vmem>>, vector<32x32xbf16>
    %c0_29 = arith.constant 0 : index
    %c0_30 = arith.constant 0 : index
    %15 = vector.load %arg18[%c0_29, %c0_30] : memref<32x1xf32, #tpu.memory_space<vmem>>, vector<32x1xf32>
    %16 = tpu.iota {dimensions = array<i32: 1>} : vector<1x128xi32>
    %c127_i32 = arith.constant 127 : i32
    %17 = vector.broadcast %c127_i32 : i32 to vector<1x128xi32>
    %18 = arith.cmpi slt, %16, %17 : vector<1x128xi32>
    %c1_i32 = arith.constant 1 : i32
    %19 = vector.broadcast %c1_i32 : i32 to vector<1x128xi32>
    %20 = arith.cmpi sge, %16, %19 : vector<1x128xi32>
    %c126_i32 = arith.constant 126 : i32
    %21 = vector.broadcast %c126_i32 : i32 to vector<1x128xi32>
    %22 = arith.cmpi slt, %16, %21 : vector<1x128xi32>
    %c2_i32 = arith.constant 2 : i32
    %23 = vector.broadcast %c2_i32 : i32 to vector<1x128xi32>
    %24 = arith.cmpi sge, %16, %23 : vector<1x128xi32>
    %c125_i32 = arith.constant 125 : i32
    %25 = vector.broadcast %c125_i32 : i32 to vector<1x128xi32>
    %26 = arith.cmpi slt, %16, %25 : vector<1x128xi32>
    %c3_i32 = arith.constant 3 : i32
    %27 = vector.broadcast %c3_i32 : i32 to vector<1x128xi32>
    %28 = arith.cmpi sge, %16, %27 : vector<1x128xi32>
    %c0_31 = arith.constant 0 : index
    %c0_32 = arith.constant 0 : index
    %c0_33 = arith.constant 0 : index
    %29 = vector.load %arg1[%c0_31, %c0_32, %c0_33] : memref<1x16x128xf32, #tpu.memory_space<vmem>>, vector<1x16x128xf32>
    %30 = vector.shape_cast %29 : vector<1x16x128xf32> to vector<16x128xf32>
    %c0_34 = arith.constant 0 : index
    %c0_35 = arith.constant 0 : index
    %c0_36 = arith.constant 0 : index
    %31 = vector.load %arg2[%c0_34, %c0_35, %c0_36] : memref<1x24x128xf32, #tpu.memory_space<vmem>>, vector<1x24x128xf32>
    %32 = vector.shape_cast %31 : vector<1x24x128xf32> to vector<24x128xf32>
    %cst = arith.constant 0.000000e+00 : f32
    %33 = vector.broadcast %cst : f32 to vector<16x128xf32>
    %34 = arith.maximumf %30, %33 : vector<16x128xf32>
    %35 = arith.truncf %34 : vector<16x128xf32> to vector<16x128xbf16>
    %cst_37 = arith.constant dense<0.000000e+00> : vector<32x128xf32>
    %36 = tpu.matmul %0, %35, %cst_37 {dimension_numbers = #tpu.dot_dimension_numbers<[1], [0], [0], [1], [0, 0, 1, 1], [], []>} : vector<32x16xbf16>, vector<16x128xbf16>, vector<32x128xf32> -> vector<32x128xf32>
    %37 = vector.broadcast %1 : vector<32x1xf32> to vector<32x128xf32>
    %38 = arith.addf %36, %37 : vector<32x128xf32>
    %cst_38 = arith.constant 0.000000e+00 : f32
    %39 = vector.broadcast %cst_38 : f32 to vector<24x128xf32>
    %40 = arith.maximumf %32, %39 : vector<24x128xf32>
    %41 = arith.truncf %40 : vector<24x128xf32> to vector<24x128xbf16>
    %cst_39 = arith.constant dense<0.000000e+00> : vector<32x128xf32>
    %42 = tpu.matmul %2, %41, %cst_39 {dimension_numbers = #tpu.dot_dimension_numbers<[1], [0], [0], [1], [0, 0, 1, 1], [], []>} : vector<32x24xbf16>, vector<24x128xbf16>, vector<32x128xf32> -> vector<32x128xf32>
    %43 = vector.broadcast %3 : vector<32x1xf32> to vector<32x128xf32>
    %44 = arith.addf %42, %43 : vector<32x128xf32>
    %cst_40 = arith.constant 0.000000e+00 : f32
    %45 = vector.broadcast %cst_40 : f32 to vector<32x128xf32>
    %46 = arith.maximumf %38, %45 : vector<32x128xf32>
    %cst_41 = arith.constant 0.000000e+00 : f32
    %47 = vector.broadcast %cst_41 : f32 to vector<32x128xf32>
    %48 = arith.maximumf %44, %47 : vector<32x128xf32>
    %c2_i32_42 = arith.constant 2 : i32
    %49 = tpu.dynamic_rotate %46 by %c2_i32_42 dim 1 : vector<32x128xf32>, i32 -> vector<32x128xf32>
    %cst_43 = arith.constant 0.000000e+00 : f32
    %50 = vector.shape_cast %24 : vector<1x128xi1> to vector<1x128xi1>
    %51 = vector.broadcast %50 : vector<1x128xi1> to vector<32x128xi1>
    %52 = vector.broadcast %cst_43 : f32 to vector<32x128xf32>
    %53 = arith.select %51, %49, %52 : vector<32x128xi1>, vector<32x128xf32>
    %c1_i32_44 = arith.constant 1 : i32
    %54 = tpu.dynamic_rotate %46 by %c1_i32_44 dim 1 : vector<32x128xf32>, i32 -> vector<32x128xf32>
    %cst_45 = arith.constant 0.000000e+00 : f32
    %55 = vector.shape_cast %20 : vector<1x128xi1> to vector<1x128xi1>
    %56 = vector.broadcast %55 : vector<1x128xi1> to vector<32x128xi1>
    %57 = vector.broadcast %cst_45 : f32 to vector<32x128xf32>
    %58 = arith.select %56, %54, %57 : vector<32x128xi1>, vector<32x128xf32>
    %c127_i32_46 = arith.constant 127 : i32
    %59 = tpu.dynamic_rotate %46 by %c127_i32_46 dim 1 : vector<32x128xf32>, i32 -> vector<32x128xf32>
    %cst_47 = arith.constant 0.000000e+00 : f32
    %60 = vector.shape_cast %18 : vector<1x128xi1> to vector<1x128xi1>
    %61 = vector.broadcast %60 : vector<1x128xi1> to vector<32x128xi1>
    %62 = vector.broadcast %cst_47 : f32 to vector<32x128xf32>
    %63 = arith.select %61, %59, %62 : vector<32x128xi1>, vector<32x128xf32>
    %c126_i32_48 = arith.constant 126 : i32
    %64 = tpu.dynamic_rotate %46 by %c126_i32_48 dim 1 : vector<32x128xf32>, i32 -> vector<32x128xf32>
    %cst_49 = arith.constant 0.000000e+00 : f32
    %65 = vector.shape_cast %22 : vector<1x128xi1> to vector<1x128xi1>
    %66 = vector.broadcast %65 : vector<1x128xi1> to vector<32x128xi1>
    %67 = vector.broadcast %cst_49 : f32 to vector<32x128xf32>
    %68 = arith.select %66, %64, %67 : vector<32x128xi1>, vector<32x128xf32>
    %c3_i32_50 = arith.constant 3 : i32
    %69 = tpu.dynamic_rotate %48 by %c3_i32_50 dim 1 : vector<32x128xf32>, i32 -> vector<32x128xf32>
    %cst_51 = arith.constant 0.000000e+00 : f32
    %70 = vector.shape_cast %28 : vector<1x128xi1> to vector<1x128xi1>
    %71 = vector.broadcast %70 : vector<1x128xi1> to vector<32x128xi1>
    %72 = vector.broadcast %cst_51 : f32 to vector<32x128xf32>
    %73 = arith.select %71, %69, %72 : vector<32x128xi1>, vector<32x128xf32>
    %c2_i32_52 = arith.constant 2 : i32
    %74 = tpu.dynamic_rotate %48 by %c2_i32_52 dim 1 : vector<32x128xf32>, i32 -> vector<32x128xf32>
    %cst_53 = arith.constant 0.000000e+00 : f32
    %75 = vector.shape_cast %24 : vector<1x128xi1> to vector<1x128xi1>
    %76 = vector.broadcast %75 : vector<1x128xi1> to vector<32x128xi1>
    %77 = vector.broadcast %cst_53 : f32 to vector<32x128xf32>
    %78 = arith.select %76, %74, %77 : vector<32x128xi1>, vector<32x128xf32>
    %c1_i32_54 = arith.constant 1 : i32
    %79 = tpu.dynamic_rotate %48 by %c1_i32_54 dim 1 : vector<32x128xf32>, i32 -> vector<32x128xf32>
    %cst_55 = arith.constant 0.000000e+00 : f32
    %80 = vector.shape_cast %20 : vector<1x128xi1> to vector<1x128xi1>
    %81 = vector.broadcast %80 : vector<1x128xi1> to vector<32x128xi1>
    %82 = vector.broadcast %cst_55 : f32 to vector<32x128xf32>
    %83 = arith.select %81, %79, %82 : vector<32x128xi1>, vector<32x128xf32>
    %c127_i32_56 = arith.constant 127 : i32
    %84 = tpu.dynamic_rotate %48 by %c127_i32_56 dim 1 : vector<32x128xf32>, i32 -> vector<32x128xf32>
    %cst_57 = arith.constant 0.000000e+00 : f32
    %85 = vector.shape_cast %18 : vector<1x128xi1> to vector<1x128xi1>
    %86 = vector.broadcast %85 : vector<1x128xi1> to vector<32x128xi1>
    %87 = vector.broadcast %cst_57 : f32 to vector<32x128xf32>
    %88 = arith.select %86, %84, %87 : vector<32x128xi1>, vector<32x128xf32>
    %c126_i32_58 = arith.constant 126 : i32
    %89 = tpu.dynamic_rotate %48 by %c126_i32_58 dim 1 : vector<32x128xf32>, i32 -> vector<32x128xf32>
    %cst_59 = arith.constant 0.000000e+00 : f32
    %90 = vector.shape_cast %22 : vector<1x128xi1> to vector<1x128xi1>
    %91 = vector.broadcast %90 : vector<1x128xi1> to vector<32x128xi1>
    %92 = vector.broadcast %cst_59 : f32 to vector<32x128xf32>
    %93 = arith.select %91, %89, %92 : vector<32x128xi1>, vector<32x128xf32>
    %c125_i32_60 = arith.constant 125 : i32
    %94 = tpu.dynamic_rotate %48 by %c125_i32_60 dim 1 : vector<32x128xf32>, i32 -> vector<32x128xf32>
    %cst_61 = arith.constant 0.000000e+00 : f32
    %95 = vector.shape_cast %26 : vector<1x128xi1> to vector<1x128xi1>
    %96 = vector.broadcast %95 : vector<1x128xi1> to vector<32x128xi1>
    %97 = vector.broadcast %cst_61 : f32 to vector<32x128xf32>
    %98 = arith.select %96, %94, %97 : vector<32x128xi1>, vector<32x128xf32>
    %99 = vector.extract_strided_slice %4 {offsets = [0, 3], sizes = [32, 1], strides = [1, 1]} : vector<160x8xf32> to vector<32x1xf32>
    %100 = vector.broadcast %99 : vector<32x1xf32> to vector<32x128xf32>
    %101 = arith.mulf %46, %100 : vector<32x128xf32>
    %102 = vector.extract_strided_slice %4 {offsets = [0, 4], sizes = [32, 1], strides = [1, 1]} : vector<160x8xf32> to vector<32x1xf32>
    %103 = vector.broadcast %102 : vector<32x1xf32> to vector<32x128xf32>
    %104 = arith.mulf %63, %103 : vector<32x128xf32>
    %105 = arith.addf %101, %104 : vector<32x128xf32>
    %106 = vector.extract_strided_slice %4 {offsets = [0, 2], sizes = [32, 1], strides = [1, 1]} : vector<160x8xf32> to vector<32x1xf32>
    %107 = vector.broadcast %106 : vector<32x1xf32> to vector<32x128xf32>
    %108 = arith.mulf %58, %107 : vector<32x128xf32>
    %109 = arith.addf %105, %108 : vector<32x128xf32>
    %110 = vector.extract_strided_slice %4 {offsets = [0, 5], sizes = [32, 1], strides = [1, 1]} : vector<160x8xf32> to vector<32x1xf32>
    %111 = vector.broadcast %110 : vector<32x1xf32> to vector<32x128xf32>
    %112 = arith.mulf %68, %111 : vector<32x128xf32>
    %113 = arith.addf %109, %112 : vector<32x128xf32>
    %114 = vector.extract_strided_slice %4 {offsets = [0, 1], sizes = [32, 1], strides = [1, 1]} : vector<160x8xf32> to vector<32x1xf32>
    %115 = vector.broadcast %114 : vector<32x1xf32> to vector<32x128xf32>
    %116 = arith.mulf %53, %115 : vector<32x128xf32>
    %117 = arith.addf %113, %116 : vector<32x128xf32>
    %118 = vector.extract_strided_slice %4 {offsets = [32, 3], sizes = [32, 1], strides = [1, 1]} : vector<160x8xf32> to vector<32x1xf32>
    %119 = vector.broadcast %118 : vector<32x1xf32> to vector<32x128xf32>
    %120 = arith.mulf %48, %119 : vector<32x128xf32>
    %121 = vector.extract_strided_slice %4 {offsets = [32, 4], sizes = [32, 1], strides = [1, 1]} : vector<160x8xf32> to vector<32x1xf32>
    %122 = vector.broadcast %121 : vector<32x1xf32> to vector<32x128xf32>
    %123 = arith.mulf %88, %122 : vector<32x128xf32>
    %124 = arith.addf %120, %123 : vector<32x128xf32>
    %125 = vector.extract_strided_slice %4 {offsets = [32, 2], sizes = [32, 1], strides = [1, 1]} : vector<160x8xf32> to vector<32x1xf32>
    %126 = vector.broadcast %125 : vector<32x1xf32> to vector<32x128xf32>
    %127 = arith.mulf %83, %126 : vector<32x128xf32>
    %128 = arith.addf %124, %127 : vector<32x128xf32>
    %129 = vector.extract_strided_slice %4 {offsets = [32, 5], sizes = [32, 1], strides = [1, 1]} : vector<160x8xf32> to vector<32x1xf32>
    %130 = vector.broadcast %129 : vector<32x1xf32> to vector<32x128xf32>
    %131 = arith.mulf %93, %130 : vector<32x128xf32>
    %132 = arith.addf %128, %131 : vector<32x128xf32>
    %133 = vector.extract_strided_slice %4 {offsets = [32, 1], sizes = [32, 1], strides = [1, 1]} : vector<160x8xf32> to vector<32x1xf32>
    %134 = vector.broadcast %133 : vector<32x1xf32> to vector<32x128xf32>
    %135 = arith.mulf %78, %134 : vector<32x128xf32>
    %136 = arith.addf %132, %135 : vector<32x128xf32>
    %137 = vector.extract_strided_slice %4 {offsets = [32, 6], sizes = [32, 1], strides = [1, 1]} : vector<160x8xf32> to vector<32x1xf32>
    %138 = vector.broadcast %137 : vector<32x1xf32> to vector<32x128xf32>
    %139 = arith.mulf %98, %138 : vector<32x128xf32>
    %140 = arith.addf %136, %139 : vector<32x128xf32>
    %141 = vector.extract_strided_slice %4 {offsets = [32, 0], sizes = [32, 1], strides = [1, 1]} : vector<160x8xf32> to vector<32x1xf32>
    %142 = vector.broadcast %141 : vector<32x1xf32> to vector<32x128xf32>
    %143 = arith.mulf %73, %142 : vector<32x128xf32>
    %144 = arith.addf %140, %143 : vector<32x128xf32>
    %145 = vector.extract_strided_slice %4 {offsets = [64, 3], sizes = [32, 1], strides = [1, 1]} : vector<160x8xf32> to vector<32x1xf32>
    %146 = vector.broadcast %145 : vector<32x1xf32> to vector<32x128xf32>
    %147 = arith.mulf %48, %146 : vector<32x128xf32>
    %148 = vector.extract_strided_slice %4 {offsets = [64, 4], sizes = [32, 1], strides = [1, 1]} : vector<160x8xf32> to vector<32x1xf32>
    %149 = vector.broadcast %148 : vector<32x1xf32> to vector<32x128xf32>
    %150 = arith.mulf %88, %149 : vector<32x128xf32>
    %151 = arith.addf %147, %150 : vector<32x128xf32>
    %152 = vector.extract_strided_slice %4 {offsets = [64, 2], sizes = [32, 1], strides = [1, 1]} : vector<160x8xf32> to vector<32x1xf32>
    %153 = vector.broadcast %152 : vector<32x1xf32> to vector<32x128xf32>
    %154 = arith.mulf %83, %153 : vector<32x128xf32>
    %155 = arith.addf %151, %154 : vector<32x128xf32>
    %156 = vector.extract_strided_slice %4 {offsets = [64, 5], sizes = [32, 1], strides = [1, 1]} : vector<160x8xf32> to vector<32x1xf32>
    %157 = vector.broadcast %156 : vector<32x1xf32> to vector<32x128xf32>
    %158 = arith.mulf %93, %157 : vector<32x128xf32>
    %159 = arith.addf %155, %158 : vector<32x128xf32>
    %160 = vector.extract_strided_slice %4 {offsets = [64, 1], sizes = [32, 1], strides = [1, 1]} : vector<160x8xf32> to vector<32x1xf32>
    %161 = vector.broadcast %160 : vector<32x1xf32> to vector<32x128xf32>
    %162 = arith.mulf %78, %161 : vector<32x128xf32>
    %163 = arith.addf %159, %162 : vector<32x128xf32>
    %164 = vector.extract_strided_slice %4 {offsets = [96, 3], sizes = [32, 1], strides = [1, 1]} : vector<160x8xf32> to vector<32x1xf32>
    %165 = vector.broadcast %164 : vector<32x1xf32> to vector<32x128xf32>
    %166 = arith.mulf %48, %165 : vector<32x128xf32>
    %167 = vector.extract_strided_slice %4 {offsets = [96, 4], sizes = [32, 1], strides = [1, 1]} : vector<160x8xf32> to vector<32x1xf32>
    %168 = vector.broadcast %167 : vector<32x1xf32> to vector<32x128xf32>
    %169 = arith.mulf %88, %168 : vector<32x128xf32>
    %170 = arith.addf %166, %169 : vector<32x128xf32>
    %171 = vector.extract_strided_slice %4 {offsets = [96, 2], sizes = [32, 1], strides = [1, 1]} : vector<160x8xf32> to vector<32x1xf32>
    %172 = vector.broadcast %171 : vector<32x1xf32> to vector<32x128xf32>
    %173 = arith.mulf %83, %172 : vector<32x128xf32>
    %174 = arith.addf %170, %173 : vector<32x128xf32>
    %175 = vector.extract_strided_slice %4 {offsets = [128, 3], sizes = [32, 1], strides = [1, 1]} : vector<160x8xf32> to vector<32x1xf32>
    %176 = vector.broadcast %175 : vector<32x1xf32> to vector<32x128xf32>
    %177 = arith.mulf %46, %176 : vector<32x128xf32>
    %178 = vector.extract_strided_slice %4 {offsets = [128, 4], sizes = [32, 1], strides = [1, 1]} : vector<160x8xf32> to vector<32x1xf32>
    %179 = vector.broadcast %178 : vector<32x1xf32> to vector<32x128xf32>
    %180 = arith.mulf %63, %179 : vector<32x128xf32>
    %181 = arith.addf %177, %180 : vector<32x128xf32>
    %182 = vector.extract_strided_slice %4 {offsets = [128, 2], sizes = [32, 1], strides = [1, 1]} : vector<160x8xf32> to vector<32x1xf32>
    %183 = vector.broadcast %182 : vector<32x1xf32> to vector<32x128xf32>
    %184 = arith.mulf %58, %183 : vector<32x128xf32>
    %185 = arith.addf %181, %184 : vector<32x128xf32>
    %186 = tpu.concatenate %117, %144, %163, %174, %185 in 0 : vector<32x128xf32>, vector<32x128xf32>, vector<32x128xf32>, vector<32x128xf32>, vector<32x128xf32> -> vector<160x128xf32>
    %187 = arith.truncf %186 : vector<160x128xf32> to vector<160x128xbf16>
    %cst_62 = arith.constant dense<0.000000e+00> : vector<160x128xf32>
    %188 = tpu.matmul %5, %187, %cst_62 {dimension_numbers = #tpu.dot_dimension_numbers<[1], [0], [0], [1], [0, 0, 1, 1], [], []>} : vector<160x160xbf16>, vector<160x128xbf16>, vector<160x128xf32> -> vector<160x128xf32>
    %189 = vector.broadcast %6 : vector<160x1xf32> to vector<160x128xf32>
    %190 = arith.addf %188, %189 : vector<160x128xf32>
    %cst_63 = arith.constant 0.000000e+00 : f32
    %191 = vector.broadcast %cst_63 : f32 to vector<160x128xf32>
    %192 = arith.maximumf %190, %191 : vector<160x128xf32>
    %193 = vector.extract_strided_slice %192 {offsets = [0, 0], sizes = [32, 128], strides = [1, 1]} : vector<160x128xf32> to vector<32x128xf32>
    %194 = vector.extract_strided_slice %7 {offsets = [0, 0], sizes = [32, 8], strides = [1, 1]} : vector<160x8xf32> to vector<32x8xf32>
    %195 = vector.extract_strided_slice %194 {offsets = [0, 3], sizes = [32, 1], strides = [1, 1]} : vector<32x8xf32> to vector<32x1xf32>
    %196 = vector.broadcast %195 : vector<32x1xf32> to vector<32x128xf32>
    %197 = arith.mulf %193, %196 : vector<32x128xf32>
    %c127_i32_64 = arith.constant 127 : i32
    %198 = tpu.dynamic_rotate %193 by %c127_i32_64 dim 1 : vector<32x128xf32>, i32 -> vector<32x128xf32>
    %cst_65 = arith.constant 0.000000e+00 : f32
    %199 = vector.shape_cast %18 : vector<1x128xi1> to vector<1x128xi1>
    %200 = vector.broadcast %199 : vector<1x128xi1> to vector<32x128xi1>
    %201 = vector.broadcast %cst_65 : f32 to vector<32x128xf32>
    %202 = arith.select %200, %198, %201 : vector<32x128xi1>, vector<32x128xf32>
    %203 = vector.extract_strided_slice %194 {offsets = [0, 4], sizes = [32, 1], strides = [1, 1]} : vector<32x8xf32> to vector<32x1xf32>
    %204 = vector.broadcast %203 : vector<32x1xf32> to vector<32x128xf32>
    %205 = arith.mulf %202, %204 : vector<32x128xf32>
    %206 = arith.addf %197, %205 : vector<32x128xf32>
    %c1_i32_66 = arith.constant 1 : i32
    %207 = tpu.dynamic_rotate %193 by %c1_i32_66 dim 1 : vector<32x128xf32>, i32 -> vector<32x128xf32>
    %cst_67 = arith.constant 0.000000e+00 : f32
    %208 = vector.shape_cast %20 : vector<1x128xi1> to vector<1x128xi1>
    %209 = vector.broadcast %208 : vector<1x128xi1> to vector<32x128xi1>
    %210 = vector.broadcast %cst_67 : f32 to vector<32x128xf32>
    %211 = arith.select %209, %207, %210 : vector<32x128xi1>, vector<32x128xf32>
    %212 = vector.extract_strided_slice %194 {offsets = [0, 2], sizes = [32, 1], strides = [1, 1]} : vector<32x8xf32> to vector<32x1xf32>
    %213 = vector.broadcast %212 : vector<32x1xf32> to vector<32x128xf32>
    %214 = arith.mulf %211, %213 : vector<32x128xf32>
    %215 = arith.addf %206, %214 : vector<32x128xf32>
    %c126_i32_68 = arith.constant 126 : i32
    %216 = tpu.dynamic_rotate %193 by %c126_i32_68 dim 1 : vector<32x128xf32>, i32 -> vector<32x128xf32>
    %cst_69 = arith.constant 0.000000e+00 : f32
    %217 = vector.shape_cast %22 : vector<1x128xi1> to vector<1x128xi1>
    %218 = vector.broadcast %217 : vector<1x128xi1> to vector<32x128xi1>
    %219 = vector.broadcast %cst_69 : f32 to vector<32x128xf32>
    %220 = arith.select %218, %216, %219 : vector<32x128xi1>, vector<32x128xf32>
    %221 = vector.extract_strided_slice %194 {offsets = [0, 5], sizes = [32, 1], strides = [1, 1]} : vector<32x8xf32> to vector<32x1xf32>
    %222 = vector.broadcast %221 : vector<32x1xf32> to vector<32x128xf32>
    %223 = arith.mulf %220, %222 : vector<32x128xf32>
    %224 = arith.addf %215, %223 : vector<32x128xf32>
    %c2_i32_70 = arith.constant 2 : i32
    %225 = tpu.dynamic_rotate %193 by %c2_i32_70 dim 1 : vector<32x128xf32>, i32 -> vector<32x128xf32>
    %cst_71 = arith.constant 0.000000e+00 : f32
    %226 = vector.shape_cast %24 : vector<1x128xi1> to vector<1x128xi1>
    %227 = vector.broadcast %226 : vector<1x128xi1> to vector<32x128xi1>
    %228 = vector.broadcast %cst_71 : f32 to vector<32x128xf32>
    %229 = arith.select %227, %225, %228 : vector<32x128xi1>, vector<32x128xf32>
    %230 = vector.extract_strided_slice %194 {offsets = [0, 1], sizes = [32, 1], strides = [1, 1]} : vector<32x8xf32> to vector<32x1xf32>
    %231 = vector.broadcast %230 : vector<32x1xf32> to vector<32x128xf32>
    %232 = arith.mulf %229, %231 : vector<32x128xf32>
    %233 = arith.addf %224, %232 : vector<32x128xf32>
    %234 = vector.extract_strided_slice %192 {offsets = [32, 0], sizes = [32, 128], strides = [1, 1]} : vector<160x128xf32> to vector<32x128xf32>
    %235 = vector.extract_strided_slice %7 {offsets = [32, 0], sizes = [32, 8], strides = [1, 1]} : vector<160x8xf32> to vector<32x8xf32>
    %236 = vector.extract_strided_slice %235 {offsets = [0, 3], sizes = [32, 1], strides = [1, 1]} : vector<32x8xf32> to vector<32x1xf32>
    %237 = vector.broadcast %236 : vector<32x1xf32> to vector<32x128xf32>
    %238 = arith.mulf %234, %237 : vector<32x128xf32>
    %c127_i32_72 = arith.constant 127 : i32
    %239 = tpu.dynamic_rotate %234 by %c127_i32_72 dim 1 : vector<32x128xf32>, i32 -> vector<32x128xf32>
    %cst_73 = arith.constant 0.000000e+00 : f32
    %240 = vector.shape_cast %18 : vector<1x128xi1> to vector<1x128xi1>
    %241 = vector.broadcast %240 : vector<1x128xi1> to vector<32x128xi1>
    %242 = vector.broadcast %cst_73 : f32 to vector<32x128xf32>
    %243 = arith.select %241, %239, %242 : vector<32x128xi1>, vector<32x128xf32>
    %244 = vector.extract_strided_slice %235 {offsets = [0, 4], sizes = [32, 1], strides = [1, 1]} : vector<32x8xf32> to vector<32x1xf32>
    %245 = vector.broadcast %244 : vector<32x1xf32> to vector<32x128xf32>
    %246 = arith.mulf %243, %245 : vector<32x128xf32>
    %247 = arith.addf %238, %246 : vector<32x128xf32>
    %c1_i32_74 = arith.constant 1 : i32
    %248 = tpu.dynamic_rotate %234 by %c1_i32_74 dim 1 : vector<32x128xf32>, i32 -> vector<32x128xf32>
    %cst_75 = arith.constant 0.000000e+00 : f32
    %249 = vector.shape_cast %20 : vector<1x128xi1> to vector<1x128xi1>
    %250 = vector.broadcast %249 : vector<1x128xi1> to vector<32x128xi1>
    %251 = vector.broadcast %cst_75 : f32 to vector<32x128xf32>
    %252 = arith.select %250, %248, %251 : vector<32x128xi1>, vector<32x128xf32>
    %253 = vector.extract_strided_slice %235 {offsets = [0, 2], sizes = [32, 1], strides = [1, 1]} : vector<32x8xf32> to vector<32x1xf32>
    %254 = vector.broadcast %253 : vector<32x1xf32> to vector<32x128xf32>
    %255 = arith.mulf %252, %254 : vector<32x128xf32>
    %256 = arith.addf %247, %255 : vector<32x128xf32>
    %c126_i32_76 = arith.constant 126 : i32
    %257 = tpu.dynamic_rotate %234 by %c126_i32_76 dim 1 : vector<32x128xf32>, i32 -> vector<32x128xf32>
    %cst_77 = arith.constant 0.000000e+00 : f32
    %258 = vector.shape_cast %22 : vector<1x128xi1> to vector<1x128xi1>
    %259 = vector.broadcast %258 : vector<1x128xi1> to vector<32x128xi1>
    %260 = vector.broadcast %cst_77 : f32 to vector<32x128xf32>
    %261 = arith.select %259, %257, %260 : vector<32x128xi1>, vector<32x128xf32>
    %262 = vector.extract_strided_slice %235 {offsets = [0, 5], sizes = [32, 1], strides = [1, 1]} : vector<32x8xf32> to vector<32x1xf32>
    %263 = vector.broadcast %262 : vector<32x1xf32> to vector<32x128xf32>
    %264 = arith.mulf %261, %263 : vector<32x128xf32>
    %265 = arith.addf %256, %264 : vector<32x128xf32>
    %c2_i32_78 = arith.constant 2 : i32
    %266 = tpu.dynamic_rotate %234 by %c2_i32_78 dim 1 : vector<32x128xf32>, i32 -> vector<32x128xf32>
    %cst_79 = arith.constant 0.000000e+00 : f32
    %267 = vector.shape_cast %24 : vector<1x128xi1> to vector<1x128xi1>
    %268 = vector.broadcast %267 : vector<1x128xi1> to vector<32x128xi1>
    %269 = vector.broadcast %cst_79 : f32 to vector<32x128xf32>
    %270 = arith.select %268, %266, %269 : vector<32x128xi1>, vector<32x128xf32>
    %271 = vector.extract_strided_slice %235 {offsets = [0, 1], sizes = [32, 1], strides = [1, 1]} : vector<32x8xf32> to vector<32x1xf32>
    %272 = vector.broadcast %271 : vector<32x1xf32> to vector<32x128xf32>
    %273 = arith.mulf %270, %272 : vector<32x128xf32>
    %274 = arith.addf %265, %273 : vector<32x128xf32>
    %c125_i32_80 = arith.constant 125 : i32
    %275 = tpu.dynamic_rotate %234 by %c125_i32_80 dim 1 : vector<32x128xf32>, i32 -> vector<32x128xf32>
    %cst_81 = arith.constant 0.000000e+00 : f32
    %276 = vector.shape_cast %26 : vector<1x128xi1> to vector<1x128xi1>
    %277 = vector.broadcast %276 : vector<1x128xi1> to vector<32x128xi1>
    %278 = vector.broadcast %cst_81 : f32 to vector<32x128xf32>
    %279 = arith.select %277, %275, %278 : vector<32x128xi1>, vector<32x128xf32>
    %280 = vector.extract_strided_slice %235 {offsets = [0, 6], sizes = [32, 1], strides = [1, 1]} : vector<32x8xf32> to vector<32x1xf32>
    %281 = vector.broadcast %280 : vector<32x1xf32> to vector<32x128xf32>
    %282 = arith.mulf %279, %281 : vector<32x128xf32>
    %283 = arith.addf %274, %282 : vector<32x128xf32>
    %c3_i32_82 = arith.constant 3 : i32
    %284 = tpu.dynamic_rotate %234 by %c3_i32_82 dim 1 : vector<32x128xf32>, i32 -> vector<32x128xf32>
    %cst_83 = arith.constant 0.000000e+00 : f32
    %285 = vector.shape_cast %28 : vector<1x128xi1> to vector<1x128xi1>
    %286 = vector.broadcast %285 : vector<1x128xi1> to vector<32x128xi1>
    %287 = vector.broadcast %cst_83 : f32 to vector<32x128xf32>
    %288 = arith.select %286, %284, %287 : vector<32x128xi1>, vector<32x128xf32>
    %289 = vector.extract_strided_slice %235 {offsets = [0, 0], sizes = [32, 1], strides = [1, 1]} : vector<32x8xf32> to vector<32x1xf32>
    %290 = vector.broadcast %289 : vector<32x1xf32> to vector<32x128xf32>
    %291 = arith.mulf %288, %290 : vector<32x128xf32>
    %292 = arith.addf %283, %291 : vector<32x128xf32>
    %293 = vector.extract_strided_slice %192 {offsets = [64, 0], sizes = [32, 128], strides = [1, 1]} : vector<160x128xf32> to vector<32x128xf32>
    %294 = vector.extract_strided_slice %7 {offsets = [64, 0], sizes = [32, 8], strides = [1, 1]} : vector<160x8xf32> to vector<32x8xf32>
    %295 = vector.extract_strided_slice %294 {offsets = [0, 3], sizes = [32, 1], strides = [1, 1]} : vector<32x8xf32> to vector<32x1xf32>
    %296 = vector.broadcast %295 : vector<32x1xf32> to vector<32x128xf32>
    %297 = arith.mulf %293, %296 : vector<32x128xf32>
    %c127_i32_84 = arith.constant 127 : i32
    %298 = tpu.dynamic_rotate %293 by %c127_i32_84 dim 1 : vector<32x128xf32>, i32 -> vector<32x128xf32>
    %cst_85 = arith.constant 0.000000e+00 : f32
    %299 = vector.shape_cast %18 : vector<1x128xi1> to vector<1x128xi1>
    %300 = vector.broadcast %299 : vector<1x128xi1> to vector<32x128xi1>
    %301 = vector.broadcast %cst_85 : f32 to vector<32x128xf32>
    %302 = arith.select %300, %298, %301 : vector<32x128xi1>, vector<32x128xf32>
    %303 = vector.extract_strided_slice %294 {offsets = [0, 4], sizes = [32, 1], strides = [1, 1]} : vector<32x8xf32> to vector<32x1xf32>
    %304 = vector.broadcast %303 : vector<32x1xf32> to vector<32x128xf32>
    %305 = arith.mulf %302, %304 : vector<32x128xf32>
    %306 = arith.addf %297, %305 : vector<32x128xf32>
    %c1_i32_86 = arith.constant 1 : i32
    %307 = tpu.dynamic_rotate %293 by %c1_i32_86 dim 1 : vector<32x128xf32>, i32 -> vector<32x128xf32>
    %cst_87 = arith.constant 0.000000e+00 : f32
    %308 = vector.shape_cast %20 : vector<1x128xi1> to vector<1x128xi1>
    %309 = vector.broadcast %308 : vector<1x128xi1> to vector<32x128xi1>
    %310 = vector.broadcast %cst_87 : f32 to vector<32x128xf32>
    %311 = arith.select %309, %307, %310 : vector<32x128xi1>, vector<32x128xf32>
    %312 = vector.extract_strided_slice %294 {offsets = [0, 2], sizes = [32, 1], strides = [1, 1]} : vector<32x8xf32> to vector<32x1xf32>
    %313 = vector.broadcast %312 : vector<32x1xf32> to vector<32x128xf32>
    %314 = arith.mulf %311, %313 : vector<32x128xf32>
    %315 = arith.addf %306, %314 : vector<32x128xf32>
    %c126_i32_88 = arith.constant 126 : i32
    %316 = tpu.dynamic_rotate %293 by %c126_i32_88 dim 1 : vector<32x128xf32>, i32 -> vector<32x128xf32>
    %cst_89 = arith.constant 0.000000e+00 : f32
    %317 = vector.shape_cast %22 : vector<1x128xi1> to vector<1x128xi1>
    %318 = vector.broadcast %317 : vector<1x128xi1> to vector<32x128xi1>
    %319 = vector.broadcast %cst_89 : f32 to vector<32x128xf32>
    %320 = arith.select %318, %316, %319 : vector<32x128xi1>, vector<32x128xf32>
    %321 = vector.extract_strided_slice %294 {offsets = [0, 5], sizes = [32, 1], strides = [1, 1]} : vector<32x8xf32> to vector<32x1xf32>
    %322 = vector.broadcast %321 : vector<32x1xf32> to vector<32x128xf32>
    %323 = arith.mulf %320, %322 : vector<32x128xf32>
    %324 = arith.addf %315, %323 : vector<32x128xf32>
    %c2_i32_90 = arith.constant 2 : i32
    %325 = tpu.dynamic_rotate %293 by %c2_i32_90 dim 1 : vector<32x128xf32>, i32 -> vector<32x128xf32>
    %cst_91 = arith.constant 0.000000e+00 : f32
    %326 = vector.shape_cast %24 : vector<1x128xi1> to vector<1x128xi1>
    %327 = vector.broadcast %326 : vector<1x128xi1> to vector<32x128xi1>
    %328 = vector.broadcast %cst_91 : f32 to vector<32x128xf32>
    %329 = arith.select %327, %325, %328 : vector<32x128xi1>, vector<32x128xf32>
    %330 = vector.extract_strided_slice %294 {offsets = [0, 1], sizes = [32, 1], strides = [1, 1]} : vector<32x8xf32> to vector<32x1xf32>
    %331 = vector.broadcast %330 : vector<32x1xf32> to vector<32x128xf32>
    %332 = arith.mulf %329, %331 : vector<32x128xf32>
    %333 = arith.addf %324, %332 : vector<32x128xf32>
    %334 = vector.extract_strided_slice %192 {offsets = [96, 0], sizes = [64, 128], strides = [1, 1]} : vector<160x128xf32> to vector<64x128xf32>
    %335 = vector.extract_strided_slice %7 {offsets = [96, 0], sizes = [64, 8], strides = [1, 1]} : vector<160x8xf32> to vector<64x8xf32>
    %336 = vector.extract_strided_slice %335 {offsets = [0, 3], sizes = [64, 1], strides = [1, 1]} : vector<64x8xf32> to vector<64x1xf32>
    %337 = vector.broadcast %336 : vector<64x1xf32> to vector<64x128xf32>
    %338 = arith.mulf %334, %337 : vector<64x128xf32>
    %c127_i32_92 = arith.constant 127 : i32
    %339 = tpu.dynamic_rotate %334 by %c127_i32_92 dim 1 : vector<64x128xf32>, i32 -> vector<64x128xf32>
    %cst_93 = arith.constant 0.000000e+00 : f32
    %340 = vector.shape_cast %18 : vector<1x128xi1> to vector<1x128xi1>
    %341 = vector.broadcast %340 : vector<1x128xi1> to vector<64x128xi1>
    %342 = vector.broadcast %cst_93 : f32 to vector<64x128xf32>
    %343 = arith.select %341, %339, %342 : vector<64x128xi1>, vector<64x128xf32>
    %344 = vector.extract_strided_slice %335 {offsets = [0, 4], sizes = [64, 1], strides = [1, 1]} : vector<64x8xf32> to vector<64x1xf32>
    %345 = vector.broadcast %344 : vector<64x1xf32> to vector<64x128xf32>
    %346 = arith.mulf %343, %345 : vector<64x128xf32>
    %347 = arith.addf %338, %346 : vector<64x128xf32>
    %c1_i32_94 = arith.constant 1 : i32
    %348 = tpu.dynamic_rotate %334 by %c1_i32_94 dim 1 : vector<64x128xf32>, i32 -> vector<64x128xf32>
    %cst_95 = arith.constant 0.000000e+00 : f32
    %349 = vector.shape_cast %20 : vector<1x128xi1> to vector<1x128xi1>
    %350 = vector.broadcast %349 : vector<1x128xi1> to vector<64x128xi1>
    %351 = vector.broadcast %cst_95 : f32 to vector<64x128xf32>
    %352 = arith.select %350, %348, %351 : vector<64x128xi1>, vector<64x128xf32>
    %353 = vector.extract_strided_slice %335 {offsets = [0, 2], sizes = [64, 1], strides = [1, 1]} : vector<64x8xf32> to vector<64x1xf32>
    %354 = vector.broadcast %353 : vector<64x1xf32> to vector<64x128xf32>
    %355 = arith.mulf %352, %354 : vector<64x128xf32>
    %356 = arith.addf %347, %355 : vector<64x128xf32>
    %357 = tpu.concatenate %233, %292, %333, %356 in 0 : vector<32x128xf32>, vector<32x128xf32>, vector<32x128xf32>, vector<64x128xf32> -> vector<160x128xf32>
    %358 = arith.truncf %357 : vector<160x128xf32> to vector<160x128xbf16>
    %cst_96 = arith.constant dense<0.000000e+00> : vector<160x128xf32>
    %359 = tpu.matmul %8, %358, %cst_96 {dimension_numbers = #tpu.dot_dimension_numbers<[1], [0], [0], [1], [0, 0, 1, 1], [], []>} : vector<160x160xbf16>, vector<160x128xbf16>, vector<160x128xf32> -> vector<160x128xf32>
    %360 = vector.broadcast %9 : vector<160x1xf32> to vector<160x128xf32>
    %361 = arith.addf %359, %360 : vector<160x128xf32>
    %362 = vector.extract_strided_slice %361 {offsets = [0, 0], sizes = [32, 128], strides = [1, 1]} : vector<160x128xf32> to vector<32x128xf32>
    %363 = vector.extract_strided_slice %361 {offsets = [32, 0], sizes = [32, 128], strides = [1, 1]} : vector<160x128xf32> to vector<32x128xf32>
    %364 = vector.extract_strided_slice %361 {offsets = [64, 0], sizes = [32, 128], strides = [1, 1]} : vector<160x128xf32> to vector<32x128xf32>
    %365 = vector.extract_strided_slice %361 {offsets = [96, 0], sizes = [32, 128], strides = [1, 1]} : vector<160x128xf32> to vector<32x128xf32>
    %366 = vector.extract_strided_slice %361 {offsets = [128, 0], sizes = [32, 128], strides = [1, 1]} : vector<160x128xf32> to vector<32x128xf32>
    %367 = arith.addf %364, %365 : vector<32x128xf32>
    %cst_97 = arith.constant 0.000000e+00 : f32
    %368 = vector.broadcast %cst_97 : f32 to vector<32x128xf32>
    %369 = arith.maximumf %367, %368 : vector<32x128xf32>
    %370 = vector.extract_strided_slice %10 {offsets = [0, 3], sizes = [32, 1], strides = [1, 1]} : vector<32x8xf32> to vector<32x1xf32>
    %371 = vector.broadcast %370 : vector<32x1xf32> to vector<32x128xf32>
    %372 = arith.mulf %369, %371 : vector<32x128xf32>
    %c127_i32_98 = arith.constant 127 : i32
    %373 = tpu.dynamic_rotate %369 by %c127_i32_98 dim 1 : vector<32x128xf32>, i32 -> vector<32x128xf32>
    %cst_99 = arith.constant 0.000000e+00 : f32
    %374 = vector.shape_cast %18 : vector<1x128xi1> to vector<1x128xi1>
    %375 = vector.broadcast %374 : vector<1x128xi1> to vector<32x128xi1>
    %376 = vector.broadcast %cst_99 : f32 to vector<32x128xf32>
    %377 = arith.select %375, %373, %376 : vector<32x128xi1>, vector<32x128xf32>
    %378 = vector.extract_strided_slice %10 {offsets = [0, 4], sizes = [32, 1], strides = [1, 1]} : vector<32x8xf32> to vector<32x1xf32>
    %379 = vector.broadcast %378 : vector<32x1xf32> to vector<32x128xf32>
    %380 = arith.mulf %377, %379 : vector<32x128xf32>
    %381 = arith.addf %372, %380 : vector<32x128xf32>
    %c1_i32_100 = arith.constant 1 : i32
    %382 = tpu.dynamic_rotate %369 by %c1_i32_100 dim 1 : vector<32x128xf32>, i32 -> vector<32x128xf32>
    %cst_101 = arith.constant 0.000000e+00 : f32
    %383 = vector.shape_cast %20 : vector<1x128xi1> to vector<1x128xi1>
    %384 = vector.broadcast %383 : vector<1x128xi1> to vector<32x128xi1>
    %385 = vector.broadcast %cst_101 : f32 to vector<32x128xf32>
    %386 = arith.select %384, %382, %385 : vector<32x128xi1>, vector<32x128xf32>
    %387 = vector.extract_strided_slice %10 {offsets = [0, 2], sizes = [32, 1], strides = [1, 1]} : vector<32x8xf32> to vector<32x1xf32>
    %388 = vector.broadcast %387 : vector<32x1xf32> to vector<32x128xf32>
    %389 = arith.mulf %386, %388 : vector<32x128xf32>
    %390 = arith.addf %381, %389 : vector<32x128xf32>
    %391 = arith.truncf %390 : vector<32x128xf32> to vector<32x128xbf16>
    %cst_102 = arith.constant dense<0.000000e+00> : vector<32x128xf32>
    %392 = tpu.matmul %11, %391, %cst_102 {dimension_numbers = #tpu.dot_dimension_numbers<[1], [0], [0], [1], [0, 0, 1, 1], [], []>} : vector<32x32xbf16>, vector<32x128xbf16>, vector<32x128xf32> -> vector<32x128xf32>
    %393 = vector.broadcast %12 : vector<32x1xf32> to vector<32x128xf32>
    %394 = arith.addf %392, %393 : vector<32x128xf32>
    %cst_103 = arith.constant 0.000000e+00 : f32
    %395 = vector.broadcast %cst_103 : f32 to vector<32x128xf32>
    %396 = arith.maximumf %394, %395 : vector<32x128xf32>
    %397 = vector.extract_strided_slice %13 {offsets = [0, 3], sizes = [32, 1], strides = [1, 1]} : vector<32x8xf32> to vector<32x1xf32>
    %398 = vector.broadcast %397 : vector<32x1xf32> to vector<32x128xf32>
    %399 = arith.mulf %396, %398 : vector<32x128xf32>
    %c127_i32_104 = arith.constant 127 : i32
    %400 = tpu.dynamic_rotate %396 by %c127_i32_104 dim 1 : vector<32x128xf32>, i32 -> vector<32x128xf32>
    %cst_105 = arith.constant 0.000000e+00 : f32
    %401 = vector.shape_cast %18 : vector<1x128xi1> to vector<1x128xi1>
    %402 = vector.broadcast %401 : vector<1x128xi1> to vector<32x128xi1>
    %403 = vector.broadcast %cst_105 : f32 to vector<32x128xf32>
    %404 = arith.select %402, %400, %403 : vector<32x128xi1>, vector<32x128xf32>
    %405 = vector.extract_strided_slice %13 {offsets = [0, 4], sizes = [32, 1], strides = [1, 1]} : vector<32x8xf32> to vector<32x1xf32>
    %406 = vector.broadcast %405 : vector<32x1xf32> to vector<32x128xf32>
    %407 = arith.mulf %404, %406 : vector<32x128xf32>
    %408 = arith.addf %399, %407 : vector<32x128xf32>
    %c1_i32_106 = arith.constant 1 : i32
    %409 = tpu.dynamic_rotate %396 by %c1_i32_106 dim 1 : vector<32x128xf32>, i32 -> vector<32x128xf32>
    %cst_107 = arith.constant 0.000000e+00 : f32
    %410 = vector.shape_cast %20 : vector<1x128xi1> to vector<1x128xi1>
    %411 = vector.broadcast %410 : vector<1x128xi1> to vector<32x128xi1>
    %412 = vector.broadcast %cst_107 : f32 to vector<32x128xf32>
    %413 = arith.select %411, %409, %412 : vector<32x128xi1>, vector<32x128xf32>
    %414 = vector.extract_strided_slice %13 {offsets = [0, 2], sizes = [32, 1], strides = [1, 1]} : vector<32x8xf32> to vector<32x1xf32>
    %415 = vector.broadcast %414 : vector<32x1xf32> to vector<32x128xf32>
    %416 = arith.mulf %413, %415 : vector<32x128xf32>
    %417 = arith.addf %408, %416 : vector<32x128xf32>
    %418 = arith.truncf %417 : vector<32x128xf32> to vector<32x128xbf16>
    %cst_108 = arith.constant dense<0.000000e+00> : vector<32x128xf32>
    %419 = tpu.matmul %14, %418, %cst_108 {dimension_numbers = #tpu.dot_dimension_numbers<[1], [0], [0], [1], [0, 0, 1, 1], [], []>} : vector<32x32xbf16>, vector<32x128xbf16>, vector<32x128xf32> -> vector<32x128xf32>
    %420 = vector.broadcast %15 : vector<32x1xf32> to vector<32x128xf32>
    %421 = arith.addf %419, %420 : vector<32x128xf32>
    %c1_i32_109 = arith.constant 1 : i32
    %422 = tpu.dynamic_rotate %38 by %c1_i32_109 dim 1 : vector<32x128xf32>, i32 -> vector<32x128xf32>
    %cst_110 = arith.constant 0xFF800000 : f32
    %423 = vector.shape_cast %20 : vector<1x128xi1> to vector<1x128xi1>
    %424 = vector.broadcast %423 : vector<1x128xi1> to vector<32x128xi1>
    %425 = vector.broadcast %cst_110 : f32 to vector<32x128xf32>
    %426 = arith.select %424, %422, %425 : vector<32x128xi1>, vector<32x128xf32>
    %c127_i32_111 = arith.constant 127 : i32
    %427 = tpu.dynamic_rotate %38 by %c127_i32_111 dim 1 : vector<32x128xf32>, i32 -> vector<32x128xf32>
    %cst_112 = arith.constant 0xFF800000 : f32
    %428 = vector.shape_cast %18 : vector<1x128xi1> to vector<1x128xi1>
    %429 = vector.broadcast %428 : vector<1x128xi1> to vector<32x128xi1>
    %430 = vector.broadcast %cst_112 : f32 to vector<32x128xf32>
    %431 = arith.select %429, %427, %430 : vector<32x128xi1>, vector<32x128xf32>
    %432 = arith.maximumf %426, %38 : vector<32x128xf32>
    %433 = arith.maximumf %432, %431 : vector<32x128xf32>
    %c1_i32_113 = arith.constant 1 : i32
    %434 = tpu.dynamic_rotate %44 by %c1_i32_113 dim 1 : vector<32x128xf32>, i32 -> vector<32x128xf32>
    %cst_114 = arith.constant 0xFF800000 : f32
    %435 = vector.shape_cast %20 : vector<1x128xi1> to vector<1x128xi1>
    %436 = vector.broadcast %435 : vector<1x128xi1> to vector<32x128xi1>
    %437 = vector.broadcast %cst_114 : f32 to vector<32x128xf32>
    %438 = arith.select %436, %434, %437 : vector<32x128xi1>, vector<32x128xf32>
    %c127_i32_115 = arith.constant 127 : i32
    %439 = tpu.dynamic_rotate %44 by %c127_i32_115 dim 1 : vector<32x128xf32>, i32 -> vector<32x128xf32>
    %cst_116 = arith.constant 0xFF800000 : f32
    %440 = vector.shape_cast %18 : vector<1x128xi1> to vector<1x128xi1>
    %441 = vector.broadcast %440 : vector<1x128xi1> to vector<32x128xi1>
    %442 = vector.broadcast %cst_116 : f32 to vector<32x128xf32>
    %443 = arith.select %441, %439, %442 : vector<32x128xi1>, vector<32x128xf32>
    %444 = arith.maximumf %438, %44 : vector<32x128xf32>
    %445 = arith.maximumf %444, %443 : vector<32x128xf32>
    %446 = arith.addf %362, %433 : vector<32x128xf32>
    %447 = arith.addf %363, %445 : vector<32x128xf32>
    %448 = arith.addf %421, %445 : vector<32x128xf32>
    %449 = arith.addf %366, %44 : vector<32x128xf32>
    %c0_117 = arith.constant 0 : index
    %c0_118 = arith.constant 0 : index
    %c0_119 = arith.constant 0 : index
    %450 = vector.load %arg19[%c0_117, %c0_118, %c0_119] : memref<1x160x128xf32, #tpu.memory_space<vmem>>, vector<1x32x128xf32>
    %451 = vector.shape_cast %450 : vector<1x32x128xf32> to vector<32x128xf32>
    %452 = vector.shape_cast %446 : vector<32x128xf32> to vector<1x32x128xf32>
    tpu.vector_store %arg19[%c0_117, %c0_118, %c0_119], %452 {strides = array<i32>} : memref<1x160x128xf32, #tpu.memory_space<vmem>>, vector<1x32x128xf32>,
    %c0_120 = arith.constant 0 : index
    %c32 = arith.constant 32 : index
    %c0_121 = arith.constant 0 : index
    %453 = vector.load %arg19[%c0_120, %c32, %c0_121] : memref<1x160x128xf32, #tpu.memory_space<vmem>>, vector<1x32x128xf32>
    %454 = vector.shape_cast %453 : vector<1x32x128xf32> to vector<32x128xf32>
    %455 = vector.shape_cast %447 : vector<32x128xf32> to vector<1x32x128xf32>
    tpu.vector_store %arg19[%c0_120, %c32, %c0_121], %455 {strides = array<i32>} : memref<1x160x128xf32, #tpu.memory_space<vmem>>, vector<1x32x128xf32>,
    %c0_122 = arith.constant 0 : index
    %c64 = arith.constant 64 : index
    %c0_123 = arith.constant 0 : index
    %456 = vector.load %arg19[%c0_122, %c64, %c0_123] : memref<1x160x128xf32, #tpu.memory_space<vmem>>, vector<1x32x128xf32>
    %457 = vector.shape_cast %456 : vector<1x32x128xf32> to vector<32x128xf32>
    %458 = vector.shape_cast %367 : vector<32x128xf32> to vector<1x32x128xf32>
    tpu.vector_store %arg19[%c0_122, %c64, %c0_123], %458 {strides = array<i32>} : memref<1x160x128xf32, #tpu.memory_space<vmem>>, vector<1x32x128xf32>,
    %c0_124 = arith.constant 0 : index
    %c96 = arith.constant 96 : index
    %c0_125 = arith.constant 0 : index
    %459 = vector.load %arg19[%c0_124, %c96, %c0_125] : memref<1x160x128xf32, #tpu.memory_space<vmem>>, vector<1x32x128xf32>
    %460 = vector.shape_cast %459 : vector<1x32x128xf32> to vector<32x128xf32>
    %461 = vector.shape_cast %448 : vector<32x128xf32> to vector<1x32x128xf32>
    tpu.vector_store %arg19[%c0_124, %c96, %c0_125], %461 {strides = array<i32>} : memref<1x160x128xf32, #tpu.memory_space<vmem>>, vector<1x32x128xf32>,
    %c0_126 = arith.constant 0 : index
    %c128 = arith.constant 128 : index
    %c0_127 = arith.constant 0 : index
    %462 = vector.load %arg19[%c0_126, %c128, %c0_127] : memref<1x160x128xf32, #tpu.memory_space<vmem>>, vector<1x32x128xf32>
    %463 = vector.shape_cast %462 : vector<1x32x128xf32> to vector<32x128xf32>
    %464 = vector.shape_cast %449 : vector<32x128xf32> to vector<1x32x128xf32>
    tpu.vector_store %arg19[%c0_126, %c128, %c0_127], %464 {strides = array<i32>} : memref<1x160x128xf32, #tpu.memory_space<vmem>>, vector<1x32x128xf32>,
    return
  }
  func.func @transform_0(%arg0: i32) -> (i32, i32, i32) {
    %c0_i32 = arith.constant 0 : i32
    %c0_i32_0 = arith.constant 0 : i32
    %c0_i32_1 = arith.constant 0 : i32
    return %arg0, %c0_i32, %c0_i32_0 : i32, i32, i32
  }
  func.func @transform_1(%arg0: i32) -> (i32, i32, i32) {
    %c0_i32 = arith.constant 0 : i32
    %c0_i32_0 = arith.constant 0 : i32
    %c0_i32_1 = arith.constant 0 : i32
    return %arg0, %c0_i32, %c0_i32_0 : i32, i32, i32
  }
  func.func @transform_2(%arg0: i32) -> (i32, i32) {
    %c0_i32 = arith.constant 0 : i32
    %c0_i32_0 = arith.constant 0 : i32
    %c0_i32_1 = arith.constant 0 : i32
    return %c0_i32, %c0_i32_0 : i32, i32
  }
  func.func @transform_3(%arg0: i32) -> (i32, i32) {
    %c0_i32 = arith.constant 0 : i32
    %c0_i32_0 = arith.constant 0 : i32
    %c0_i32_1 = arith.constant 0 : i32
    return %c0_i32, %c0_i32_0 : i32, i32
  }
  func.func @transform_4(%arg0: i32) -> (i32, i32) {
    %c0_i32 = arith.constant 0 : i32
    %c0_i32_0 = arith.constant 0 : i32
    %c0_i32_1 = arith.constant 0 : i32
    return %c0_i32, %c0_i32_0 : i32, i32
  }
  func.func @transform_5(%arg0: i32) -> (i32, i32) {
    %c0_i32 = arith.constant 0 : i32
    %c0_i32_0 = arith.constant 0 : i32
    %c0_i32_1 = arith.constant 0 : i32
    return %c0_i32, %c0_i32_0 : i32, i32
  }
  func.func @transform_6(%arg0: i32) -> (i32, i32) {
    %c0_i32 = arith.constant 0 : i32
    %c0_i32_0 = arith.constant 0 : i32
    %c0_i32_1 = arith.constant 0 : i32
    return %c0_i32, %c0_i32_0 : i32, i32
  }
  func.func @transform_7(%arg0: i32) -> (i32, i32) {
    %c0_i32 = arith.constant 0 : i32
    %c0_i32_0 = arith.constant 0 : i32
    %c0_i32_1 = arith.constant 0 : i32
    return %c0_i32, %c0_i32_0 : i32, i32
  }
  func.func @transform_8(%arg0: i32) -> (i32, i32) {
    %c0_i32 = arith.constant 0 : i32
    %c0_i32_0 = arith.constant 0 : i32
    %c0_i32_1 = arith.constant 0 : i32
    return %c0_i32, %c0_i32_0 : i32, i32
  }
  func.func @transform_9(%arg0: i32) -> (i32, i32) {
    %c0_i32 = arith.constant 0 : i32
    %c0_i32_0 = arith.constant 0 : i32
    %c0_i32_1 = arith.constant 0 : i32
    return %c0_i32, %c0_i32_0 : i32, i32
  }
  func.func @transform_10(%arg0: i32) -> (i32, i32) {
    %c0_i32 = arith.constant 0 : i32
    %c0_i32_0 = arith.constant 0 : i32
    %c0_i32_1 = arith.constant 0 : i32
    return %c0_i32, %c0_i32_0 : i32, i32
  }
  func.func @transform_11(%arg0: i32) -> (i32, i32) {
    %c0_i32 = arith.constant 0 : i32
    %c0_i32_0 = arith.constant 0 : i32
    %c0_i32_1 = arith.constant 0 : i32
    return %c0_i32, %c0_i32_0 : i32, i32
  }
  func.func @transform_12(%arg0: i32) -> (i32, i32) {
    %c0_i32 = arith.constant 0 : i32
    %c0_i32_0 = arith.constant 0 : i32
    %c0_i32_1 = arith.constant 0 : i32
    return %c0_i32, %c0_i32_0 : i32, i32
  }
  func.func @transform_13(%arg0: i32) -> (i32, i32) {
    %c0_i32 = arith.constant 0 : i32
    %c0_i32_0 = arith.constant 0 : i32
    %c0_i32_1 = arith.constant 0 : i32
    return %c0_i32, %c0_i32_0 : i32, i32
  }
  func.func @transform_14(%arg0: i32) -> (i32, i32) {
    %c0_i32 = arith.constant 0 : i32
    %c0_i32_0 = arith.constant 0 : i32
    %c0_i32_1 = arith.constant 0 : i32
    return %c0_i32, %c0_i32_0 : i32, i32
  }
  func.func @transform_15(%arg0: i32) -> (i32, i32) {
    %c0_i32 = arith.constant 0 : i32
    %c0_i32_0 = arith.constant 0 : i32
    %c0_i32_1 = arith.constant 0 : i32
    return %c0_i32, %c0_i32_0 : i32, i32
  }
  func.func @transform_16(%arg0: i32) -> (i32, i32) {
    %c0_i32 = arith.constant 0 : i32
    %c0_i32_0 = arith.constant 0 : i32
    %c0_i32_1 = arith.constant 0 : i32
    return %c0_i32, %c0_i32_0 : i32, i32
  }
  func.func @transform_17(%arg0: i32) -> (i32, i32) {
    %c0_i32 = arith.constant 0 : i32
    %c0_i32_0 = arith.constant 0 : i32
    %c0_i32_1 = arith.constant 0 : i32
    return %c0_i32, %c0_i32_0 : i32, i32
  }
  func.func @transform_18(%arg0: i32) -> (i32, i32, i32) {
    %c0_i32 = arith.constant 0 : i32
    %c0_i32_0 = arith.constant 0 : i32
    %c0_i32_1 = arith.constant 0 : i32
    return %arg0, %c0_i32, %c0_i32_0 : i32, i32, i32
  }
}

</mosaic_0001>

<llo_original>
// kernel: tpu_custom_call.1
$region0: #{tpu_custom_call.1}
  #allocation0 [shape = 'u32[]', space=smem, size = 0x4, offset = 0x4, fixed_abs, tag = 'smem constant byte address 0x4 - core index']
  #allocation1 [shape = 'u32[144,128]{1,0:T(1,128)}', space=vmem, size = 0x12000, scoped, tag = 'internal scratch']
  %s0 = inlined_call_operand.vmem [shape: f32[2,16,128], index: 0, kind: input, shape index: {}]
  %s1 = inlined_call_operand.vmem [shape: f32[2,24,128], index: 1, kind: input, shape index: {}]
  %s2 = inlined_call_operand.vmem [shape: bf16[32,16], index: 2, kind: input, shape index: {}]
  %s3 = inlined_call_operand.vmem [shape: f32[32,1], index: 3, kind: input, shape index: {}]
  %s4 = inlined_call_operand.vmem [shape: bf16[32,24], index: 4, kind: input, shape index: {}]
  %s5 = inlined_call_operand.vmem [shape: f32[32,1], index: 5, kind: input, shape index: {}]
  %s6 = inlined_call_operand.vmem [shape: f32[160,8], index: 6, kind: input, shape index: {}]
  %s7 = inlined_call_operand.vmem [shape: bf16[160,160], index: 7, kind: input, shape index: {}]
  %s8 = inlined_call_operand.vmem [shape: f32[160,1], index: 8, kind: input, shape index: {}]
  %s9 = inlined_call_operand.vmem [shape: f32[160,8], index: 9, kind: input, shape index: {}]
  %s10 = inlined_call_operand.vmem [shape: bf16[160,160], index: 10, kind: input, shape index: {}]
  %s11 = inlined_call_operand.vmem [shape: f32[160,1], index: 11, kind: input, shape index: {}]
  %s12 = inlined_call_operand.vmem [shape: f32[32,8], index: 12, kind: input, shape index: {}]
  %s13 = inlined_call_operand.vmem [shape: bf16[32,32], index: 13, kind: input, shape index: {}]
  %s14 = inlined_call_operand.vmem [shape: f32[32,1], index: 14, kind: input, shape index: {}]
  %s15 = inlined_call_operand.vmem [shape: f32[32,8], index: 15, kind: input, shape index: {}]
  %s16 = inlined_call_operand.vmem [shape: bf16[32,32], index: 16, kind: input, shape index: {}]
  %s17 = inlined_call_operand.vmem [shape: f32[32,1], index: 17, kind: input, shape index: {}]
  %s18 = inlined_call_operand.hbm [shape: f32[2,160,128], index: 18, kind: output, shape index: {}]
  %s19 = sld [smem:[#allocation0]]
  $region105: #{tpu_custom_call.1} parent=0
    _
  %s21 = ssub.s32 1, %s19
  %s22 = scalar_select 0, %s21, %s19
  $region1: #{tpu_custom_call.1} parent=0
    #allocation2 [shape = 'u8[163840]{0}', space=vmem, size = 0x28000, scoped, tag = 'output window, operand 0']
    #allocation3 [shape = 's32[2]{0}', space=sflag, size = 0x8, scoped, tag = 'scoped memory for tpu_custom_call.1']
    %23 = vsyncpa [#allocation3], 0
    %s24 = scalar_lea.sflag [#allocation3], 1
    %25 = vsyncpa %s24, 0
    loop: start=0, step=1, limit=4
    $region2: #{tpu_custom_call.1} parent=1 // loop_pre_header
      _
    $region3: #{tpu_custom_call.1} parent=1 // loop_header
      %s27 = sphi 0, %s31
      %p28 = scmp.ge.s32.totalorder %s27, 4
      %s37 = sphi 0, %s39
      %s40 = sphi 0, %s37
      %s41 = sphi 0, %s40
      %s57 = sphi 0, %s41
      %s63 = sphi 0, %s65
      %s66 = sphi 0, %s63
      %s67 = sphi 0, %s66
      %s83 = sphi 0, %s67
      %s87 = sphi 0, %s87
      %s89 = sphi 0, %s87
      %s90 = sphi 0, %s89
      %s104 = sphi 0, %s90
      %s108 = sphi 0, %s108
      %s110 = sphi 0, %s108
      %s111 = sphi 0, %s110
      %s125 = sphi 0, %s111
      %s129 = sphi 0, %s129
      %s131 = sphi 0, %s129
      %s132 = sphi 0, %s131
      %s146 = sphi 0, %s132
      %s150 = sphi 0, %s150
      %s152 = sphi 0, %s150
      %s153 = sphi 0, %s152
      %s167 = sphi 0, %s153
      %s171 = sphi 0, %s171
      %s173 = sphi 0, %s171
      %s174 = sphi 0, %s173
      %s188 = sphi 0, %s174
      %s192 = sphi 0, %s192
      %s194 = sphi 0, %s192
      %s195 = sphi 0, %s194
      %s209 = sphi 0, %s195
      %s213 = sphi 0, %s213
      %s215 = sphi 0, %s213
      %s216 = sphi 0, %s215
      %s230 = sphi 0, %s216
      %s234 = sphi 0, %s234
      %s236 = sphi 0, %s234
      %s237 = sphi 0, %s236
      %s251 = sphi 0, %s237
      %s255 = sphi 0, %s255
      %s257 = sphi 0, %s255
      %s258 = sphi 0, %s257
      %s272 = sphi 0, %s258
      %s276 = sphi 0, %s276
      %s278 = sphi 0, %s276
      %s279 = sphi 0, %s278
      %s293 = sphi 0, %s279
      %s297 = sphi 0, %s297
      %s299 = sphi 0, %s297
      %s300 = sphi 0, %s299
      %s314 = sphi 0, %s300
      %s318 = sphi 0, %s318
      %s320 = sphi 0, %s318
      %s321 = sphi 0, %s320
      %s335 = sphi 0, %s321
      %s339 = sphi 0, %s339
      %s341 = sphi 0, %s339
      %s342 = sphi 0, %s341
      %s356 = sphi 0, %s342
      %s360 = sphi 0, %s360
      %s362 = sphi 0, %s360
      %s363 = sphi 0, %s362
      %s377 = sphi 0, %s363
      %s381 = sphi 0, %s381
      %s383 = sphi 0, %s381
      %s384 = sphi 0, %s383
      %s398 = sphi 0, %s384
      %s402 = sphi 0, %s402
      %s404 = sphi 0, %s402
      %s405 = sphi 0, %s404
      %s419 = sphi 0, %s405
      %s425 = sphi 0, %s427
      %s428 = sphi 0, %s425
      %s429 = sphi 0, %s428
      %s445 = sphi 0, %s429
    $region4: #{tpu_custom_call.1} parent=1 // loop_header_branch
      %30 = sbr.rel (%p28) target = $region8
    $region5: #{tpu_custom_call.1} parent=1 // loop_body
      %s32 = ssub.s32 %s27, 1
      %s33 = ssub.s32 %s27, 2
      %s34 = sadd.s32 %s27, 1
      %s35 = ssub.s32 %s27, %s34
      %p36 = scmp.eq.s32.totalorder %s35, 0
      %s38 = sadd.s32 %s37, 1
      %s39 = scalar_select %p36, %s37, %s38
      %p42 = pneg %p36
      %p43 = scmp.eq.s32.totalorder %s27, 1
      %p44 = por %p42, %p43
      %p45 = scmp.ne.s32.totalorder %s37, %s40
      %p46 = scmp.eq.s32.totalorder %s27, 0
      %p47 = por %p45, %p46
      %p48 = scmp.ne.s32.totalorder %s37, %s40
      %p49 = scmp.eq.s32.totalorder %s32, 1
      %p50 = por %p48, %p49
      %p51 = scmp.ne.s32.totalorder %s40, %s41
      %p52 = scmp.eq.s32.totalorder %s32, 0
      %p53 = por %p51, %p52
      %p54 = scmp.ne.s32.totalorder %s40, %s41
      %p55 = scmp.eq.s32.totalorder %s33, 1
      %p56 = por %p54, %p55
      %p58 = scmp.ne.s32.totalorder %s41, %s57
      %p59 = scmp.eq.s32.totalorder %s33, 0
      %p60 = por %p58, %p59
      %s61 = ssub.s32 %s27, %s34
      %p62 = scmp.eq.s32.totalorder %s61, 0
      %s64 = sadd.s32 %s63, 1
      %s65 = scalar_select %p62, %s63, %s64
      %p68 = pneg %p62
      %p69 = scmp.eq.s32.totalorder %s27, 1
      %p70 = por %p68, %p69
      %p71 = scmp.ne.s32.totalorder %s63, %s66
      %p72 = scmp.eq.s32.totalorder %s27, 0
      %p73 = por %p71, %p72
      %p74 = scmp.ne.s32.totalorder %s63, %s66
      %p75 = scmp.eq.s32.totalorder %s32, 1
      %p76 = por %p74, %p75
      %p77 = scmp.ne.s32.totalorder %s66, %s67
      %p78 = scmp.eq.s32.totalorder %s32, 0
      %p79 = por %p77, %p78
      %p80 = scmp.ne.s32.totalorder %s66, %s67
      %p81 = scmp.eq.s32.totalorder %s33, 1
      %p82 = por %p80, %p81
      %p84 = scmp.ne.s32.totalorder %s67, %s83
      %p85 = scmp.eq.s32.totalorder %s33, 0
      %p86 = por %p84, %p85
      %s88 = sadd.s32 %s87, 1
      %p91 = scmp.eq.s32.totalorder %s27, 1
      %p92 = scmp.ne.s32.totalorder %s87, %s89
      %p93 = scmp.eq.s32.totalorder %s27, 0
      %p94 = por %p92, %p93
      %p95 = scmp.ne.s32.totalorder %s87, %s89
      %p96 = scmp.eq.s32.totalorder %s32, 1
      %p97 = por %p95, %p96
      %p98 = scmp.ne.s32.totalorder %s89, %s90
      %p99 = scmp.eq.s32.totalorder %s32, 0
      %p100 = por %p98, %p99
      %p101 = scmp.ne.s32.totalorder %s89, %s90
      %p102 = scmp.eq.s32.totalorder %s33, 1
      %p103 = por %p101, %p102
      %p105 = scmp.ne.s32.totalorder %s90, %s104
      %p106 = scmp.eq.s32.totalorder %s33, 0
      %p107 = por %p105, %p106
      %s109 = sadd.s32 %s108, 1
      %p112 = scmp.eq.s32.totalorder %s27, 1
      %p113 = scmp.ne.s32.totalorder %s108, %s110
      %p114 = scmp.eq.s32.totalorder %s27, 0
      %p115 = por %p113, %p114
      %p116 = scmp.ne.s32.totalorder %s108, %s110
      %p117 = scmp.eq.s32.totalorder %s32, 1
      %p118 = por %p116, %p117
      %p119 = scmp.ne.s32.totalorder %s110, %s111
      %p120 = scmp.eq.s32.totalorder %s32, 0
      %p121 = por %p119, %p120
      %p122 = scmp.ne.s32.totalorder %s110, %s111
      %p123 = scmp.eq.s32.totalorder %s33, 1
      %p124 = por %p122, %p123
      %p126 = scmp.ne.s32.totalorder %s111, %s125
      %p127 = scmp.eq.s32.totalorder %s33, 0
      %p128 = por %p126, %p127
      %s130 = sadd.s32 %s129, 1
      %p133 = scmp.eq.s32.totalorder %s27, 1
      %p134 = scmp.ne.s32.totalorder %s129, %s131
      %p135 = scmp.eq.s32.totalorder %s27, 0
      %p136 = por %p134, %p135
      %p137 = scmp.ne.s32.totalorder %s129, %s131
      %p138 = scmp.eq.s32.totalorder %s32, 1
      %p139 = por %p137, %p138
      %p140 = scmp.ne.s32.totalorder %s131, %s132
      %p141 = scmp.eq.s32.totalorder %s32, 0
      %p142 = por %p140, %p141
      %p143 = scmp.ne.s32.totalorder %s131, %s132
      %p144 = scmp.eq.s32.totalorder %s33, 1
      %p145 = por %p143, %p144
      %p147 = scmp.ne.s32.totalorder %s132, %s146
      %p148 = scmp.eq.s32.totalorder %s33, 0
      %p149 = por %p147, %p148
      %s151 = sadd.s32 %s150, 1
      %p154 = scmp.eq.s32.totalorder %s27, 1
      %p155 = scmp.ne.s32.totalorder %s150, %s152
      %p156 = scmp.eq.s32.totalorder %s27, 0
      %p157 = por %p155, %p156
      %p158 = scmp.ne.s32.totalorder %s150, %s152
      %p159 = scmp.eq.s32.totalorder %s32, 1
      %p160 = por %p158, %p159
      %p161 = scmp.ne.s32.totalorder %s152, %s153
      %p162 = scmp.eq.s32.totalorder %s32, 0
      %p163 = por %p161, %p162
      %p164 = scmp.ne.s32.totalorder %s152, %s153
      %p165 = scmp.eq.s32.totalorder %s33, 1
      %p166 = por %p164, %p165
      %p168 = scmp.ne.s32.totalorder %s153, %s167
      %p169 = scmp.eq.s32.totalorder %s33, 0
      %p170 = por %p168, %p169
      %s172 = sadd.s32 %s171, 1
      %p175 = scmp.eq.s32.totalorder %s27, 1
      %p176 = scmp.ne.s32.totalorder %s171, %s173
      %p177 = scmp.eq.s32.totalorder %s27, 0
      %p178 = por %p176, %p177
      %p179 = scmp.ne.s32.totalorder %s171, %s173
      %p180 = scmp.eq.s32.totalorder %s32, 1
      %p181 = por %p179, %p180
      %p182 = scmp.ne.s32.totalorder %s173, %s174
      %p183 = scmp.eq.s32.totalorder %s32, 0
      %p184 = por %p182, %p183
      %p185 = scmp.ne.s32.totalorder %s173, %s174
      %p186 = scmp.eq.s32.totalorder %s33, 1
      %p187 = por %p185, %p186
      %p189 = scmp.ne.s32.totalorder %s174, %s188
      %p190 = scmp.eq.s32.totalorder %s33, 0
      %p191 = por %p189, %p190
      %s193 = sadd.s32 %s192, 1
      %p196 = scmp.eq.s32.totalorder %s27, 1
      %p197 = scmp.ne.s32.totalorder %s192, %s194
      %p198 = scmp.eq.s32.totalorder %s27, 0
      %p199 = por %p197, %p198
      %p200 = scmp.ne.s32.totalorder %s192, %s194
      %p201 = scmp.eq.s32.totalorder %s32, 1
      %p202 = por %p200, %p201
      %p203 = scmp.ne.s32.totalorder %s194, %s195
      %p204 = scmp.eq.s32.totalorder %s32, 0
      %p205 = por %p203, %p204
      %p206 = scmp.ne.s32.totalorder %s194, %s195
      %p207 = scmp.eq.s32.totalorder %s33, 1
      %p208 = por %p206, %p207
      %p210 = scmp.ne.s32.totalorder %s195, %s209
      %p211 = scmp.eq.s32.totalorder %s33, 0
      %p212 = por %p210, %p211
      %s214 = sadd.s32 %s213, 1
      %p217 = scmp.eq.s32.totalorder %s27, 1
      %p218 = scmp.ne.s32.totalorder %s213, %s215
      %p219 = scmp.eq.s32.totalorder %s27, 0
      %p220 = por %p218, %p219
      %p221 = scmp.ne.s32.totalorder %s213, %s215
      %p222 = scmp.eq.s32.totalorder %s32, 1
      %p223 = por %p221, %p222
      %p224 = scmp.ne.s32.totalorder %s215, %s216
      %p225 = scmp.eq.s32.totalorder %s32, 0
      %p226 = por %p224, %p225
      %p227 = scmp.ne.s32.totalorder %s215, %s216
      %p228 = scmp.eq.s32.totalorder %s33, 1
      %p229 = por %p227, %p228
      %p231 = scmp.ne.s32.totalorder %s216, %s230
      %p232 = scmp.eq.s32.totalorder %s33, 0
      %p233 = por %p231, %p232
      %s235 = sadd.s32 %s234, 1
      %p238 = scmp.eq.s32.totalorder %s27, 1
      %p239 = scmp.ne.s32.totalorder %s234, %s236
      %p240 = scmp.eq.s32.totalorder %s27, 0
      %p241 = por %p239, %p240
      %p242 = scmp.ne.s32.totalorder %s234, %s236
      %p243 = scmp.eq.s32.totalorder %s32, 1
      %p244 = por %p242, %p243
      %p245 = scmp.ne.s32.totalorder %s236, %s237
      %p246 = scmp.eq.s32.totalorder %s32, 0
      %p247 = por %p245, %p246
      %p248 = scmp.ne.s32.totalorder %s236, %s237
      %p249 = scmp.eq.s32.totalorder %s33, 1
      %p250 = por %p248, %p249
      %p252 = scmp.ne.s32.totalorder %s237, %s251
      %p253 = scmp.eq.s32.totalorder %s33, 0
      %p254 = por %p252, %p253
      %s256 = sadd.s32 %s255, 1
      %p259 = scmp.eq.s32.totalorder %s27, 1
      %p260 = scmp.ne.s32.totalorder %s255, %s257
      %p261 = scmp.eq.s32.totalorder %s27, 0
      %p262 = por %p260, %p261
      %p263 = scmp.ne.s32.totalorder %s255, %s257
      %p264 = scmp.eq.s32.totalorder %s32, 1
      %p265 = por %p263, %p264
      %p266 = scmp.ne.s32.totalorder %s257, %s258
      %p267 = scmp.eq.s32.totalorder %s32, 0
      %p268 = por %p266, %p267
      %p269 = scmp.ne.s32.totalorder %s257, %s258
      %p270 = scmp.eq.s32.totalorder %s33, 1
      %p271 = por %p269, %p270
      %p273 = scmp.ne.s32.totalorder %s258, %s272
      %p274 = scmp.eq.s32.totalorder %s33, 0
      %p275 = por %p273, %p274
      %s277 = sadd.s32 %s276, 1
      %p280 = scmp.eq.s32.totalorder %s27, 1
      %p281 = scmp.ne.s32.totalorder %s276, %s278
      %p282 = scmp.eq.s32.totalorder %s27, 0
      %p283 = por %p281, %p282
      %p284 = scmp.ne.s32.totalorder %s276, %s278
      %p285 = scmp.eq.s32.totalorder %s32, 1
      %p286 = por %p284, %p285
      %p287 = scmp.ne.s32.totalorder %s278, %s279
      %p288 = scmp.eq.s32.totalorder %s32, 0
      %p289 = por %p287, %p288
      %p290 = scmp.ne.s32.totalorder %s278, %s279
      %p291 = scmp.eq.s32.totalorder %s33, 1
      %p292 = por %p290, %p291
      %p294 = scmp.ne.s32.totalorder %s279, %s293
      %p295 = scmp.eq.s32.totalorder %s33, 0
      %p296 = por %p294, %p295
      %s298 = sadd.s32 %s297, 1
      %p301 = scmp.eq.s32.totalorder %s27, 1
      %p302 = scmp.ne.s32.totalorder %s297, %s299
      %p303 = scmp.eq.s32.totalorder %s27, 0
      %p304 = por %p302, %p303
      %p305 = scmp.ne.s32.totalorder %s297, %s299
      %p306 = scmp.eq.s32.totalorder %s32, 1
      %p307 = por %p305, %p306
      %p308 = scmp.ne.s32.totalorder %s299, %s300
      %p309 = scmp.eq.s32.totalorder %s32, 0
      %p310 = por %p308, %p309
      %p311 = scmp.ne.s32.totalorder %s299, %s300
      %p312 = scmp.eq.s32.totalorder %s33, 1
      %p313 = por %p311, %p312
      %p315 = scmp.ne.s32.totalorder %s300, %s314
      %p316 = scmp.eq.s32.totalorder %s33, 0
      %p317 = por %p315, %p316
      %s319 = sadd.s32 %s318, 1
      %p322 = scmp.eq.s32.totalorder %s27, 1
      %p323 = scmp.ne.s32.totalorder %s318, %s320
      %p324 = scmp.eq.s32.totalorder %s27, 0
      %p325 = por %p323, %p324
      %p326 = scmp.ne.s32.totalorder %s318, %s320
      %p327 = scmp.eq.s32.totalorder %s32, 1
      %p328 = por %p326, %p327
      %p329 = scmp.ne.s32.totalorder %s320, %s321
      %p330 = scmp.eq.s32.totalorder %s32, 0
      %p331 = por %p329, %p330
      %p332 = scmp.ne.s32.totalorder %s320, %s321
      %p333 = scmp.eq.s32.totalorder %s33, 1
      %p334 = por %p332, %p333
      %p336 = scmp.ne.s32.totalorder %s321, %s335
      %p337 = scmp.eq.s32.totalorder %s33, 0
      %p338 = por %p336, %p337
      %s340 = sadd.s32 %s339, 1
      %p343 = scmp.eq.s32.totalorder %s27, 1
      %p344 = scmp.ne.s32.totalorder %s339, %s341
      %p345 = scmp.eq.s32.totalorder %s27, 0
      %p346 = por %p344, %p345
      %p347 = scmp.ne.s32.totalorder %s339, %s341
      %p348 = scmp.eq.s32.totalorder %s32, 1
      %p349 = por %p347, %p348
      %p350 = scmp.ne.s32.totalorder %s341, %s342
      %p351 = scmp.eq.s32.totalorder %s32, 0
      %p352 = por %p350, %p351
      %p353 = scmp.ne.s32.totalorder %s341, %s342
      %p354 = scmp.eq.s32.totalorder %s33, 1
      %p355 = por %p353, %p354
      %p357 = scmp.ne.s32.totalorder %s342, %s356
      %p358 = scmp.eq.s32.totalorder %s33, 0
      %p359 = por %p357, %p358
      %s361 = sadd.s32 %s360, 1
      %p364 = scmp.eq.s32.totalorder %s27, 1
      %p365 = scmp.ne.s32.totalorder %s360, %s362
      %p366 = scmp.eq.s32.totalorder %s27, 0
      %p367 = por %p365, %p366
      %p368 = scmp.ne.s32.totalorder %s360, %s362
      %p369 = scmp.eq.s32.totalorder %s32, 1
      %p370 = por %p368, %p369
      %p371 = scmp.ne.s32.totalorder %s362, %s363
      %p372 = scmp.eq.s32.totalorder %s32, 0
      %p373 = por %p371, %p372
      %p374 = scmp.ne.s32.totalorder %s362, %s363
      %p375 = scmp.eq.s32.totalorder %s33, 1
      %p376 = por %p374, %p375
      %p378 = scmp.ne.s32.totalorder %s363, %s377
      %p379 = scmp.eq.s32.totalorder %s33, 0
      %p380 = por %p378, %p379
      %s382 = sadd.s32 %s381, 1
      %p385 = scmp.eq.s32.totalorder %s27, 1
      %p386 = scmp.ne.s32.totalorder %s381, %s383
      %p387 = scmp.eq.s32.totalorder %s27, 0
      %p388 = por %p386, %p387
      %p389 = scmp.ne.s32.totalorder %s381, %s383
      %p390 = scmp.eq.s32.totalorder %s32, 1
      %p391 = por %p389, %p390
      %p392 = scmp.ne.s32.totalorder %s383, %s384
      %p393 = scmp.eq.s32.totalorder %s32, 0
      %p394 = por %p392, %p393
      %p395 = scmp.ne.s32.totalorder %s383, %s384
      %p396 = scmp.eq.s32.totalorder %s33, 1
      %p397 = por %p395, %p396
      %p399 = scmp.ne.s32.totalorder %s384, %s398
      %p400 = scmp.eq.s32.totalorder %s33, 0
      %p401 = por %p399, %p400
      %s403 = sadd.s32 %s402, 1
      %p406 = scmp.eq.s32.totalorder %s27, 1
      %p407 = scmp.ne.s32.totalorder %s402, %s404
      %p408 = scmp.eq.s32.totalorder %s27, 0
      %p409 = por %p407, %p408
      %p410 = scmp.ne.s32.totalorder %s402, %s404
      %p411 = scmp.eq.s32.totalorder %s32, 1
      %p412 = por %p410, %p411
      %p413 = scmp.ne.s32.totalorder %s404, %s405
      %p414 = scmp.eq.s32.totalorder %s32, 0
      %p415 = por %p413, %p414
      %p416 = scmp.ne.s32.totalorder %s404, %s405
      %p417 = scmp.eq.s32.totalorder %s33, 1
      %p418 = por %p416, %p417
      %p420 = scmp.ne.s32.totalorder %s405, %s419
      %p421 = scmp.eq.s32.totalorder %s33, 0
      %p422 = por %p420, %p421
      %s423 = ssub.s32 %s27, %s34
      %p424 = scmp.eq.s32.totalorder %s423, 0
      %s426 = sadd.s32 %s425, 1
      %s427 = scalar_select %p424, %s425, %s426
      %p430 = pneg %p424
      %p431 = scmp.eq.s32.totalorder %s27, 1
      %p432 = por %p430, %p431
      %p433 = scmp.ne.s32.totalorder %s425, %s428
      %p434 = scmp.eq.s32.totalorder %s27, 0
      %p435 = por %p433, %p434
      %p436 = scmp.ne.s32.totalorder %s425, %s428
      %p437 = scmp.eq.s32.totalorder %s32, 1
      %p438 = por %p436, %p437
      %p439 = scmp.ne.s32.totalorder %s428, %s429
      %p440 = scmp.eq.s32.totalorder %s32, 0
      %p441 = por %p439, %p440
      %p442 = scmp.ne.s32.totalorder %s428, %s429
      %p443 = scmp.eq.s32.totalorder %s33, 1
      %p444 = por %p442, %p443
      %p446 = scmp.ne.s32.totalorder %s429, %s445
      %p447 = scmp.eq.s32.totalorder %s33, 0
      %p448 = por %p446, %p447
      %p449 = scmp.le.s32.totalorder 1, %s27
      %p450 = scmp.lt.s32.totalorder %s27, 3
      %p451 = pnand %p449, %p450
      %p452 = pneg %p451
      // Predicated region
      $region9: #{tpu_custom_call.1} parent=5 // pred_check
        _
      $region10: #{tpu_custom_call.1} parent=5 // pred_check_branch
        %454 = sbr.rel (%p451) target = $region12
      $region11: #{tpu_custom_call.1} parent=5 // pred_region
        %s455 = ssub.s32 %s27, 1
        // Predicated region
        $region13: #{tpu_custom_call.1} parent=11 // pred_check
          %p456 = pneg %p100
        $region14: #{tpu_custom_call.1} parent=11 // pred_check_branch
          %458 = sbr.rel (%p456) target = $region16
        $region15: #{tpu_custom_call.1} parent=11 // pred_region
          _
        $region16: #{tpu_custom_call.1} parent=11 // pred_fallthru
          _
        // Predicated region
        $region17: #{tpu_custom_call.1} parent=11 // pred_check
          %p459 = pneg %p121
        $region18: #{tpu_custom_call.1} parent=11 // pred_check_branch
          %461 = sbr.rel (%p459) target = $region20
        $region19: #{tpu_custom_call.1} parent=11 // pred_region
          _
        $region20: #{tpu_custom_call.1} parent=11 // pred_fallthru
          _
        // Predicated region
        $region21: #{tpu_custom_call.1} parent=11 // pred_check
          %p462 = pneg %p142
        $region22: #{tpu_custom_call.1} parent=11 // pred_check_branch
          %464 = sbr.rel (%p462) target = $region24
        $region23: #{tpu_custom_call.1} parent=11 // pred_region
          _
        $region24: #{tpu_custom_call.1} parent=11 // pred_fallthru
          _
        // Predicated region
        $region25: #{tpu_custom_call.1} parent=11 // pred_check
          %p465 = pneg %p163
        $region26: #{tpu_custom_call.1} parent=11 // pred_check_branch
          %467 = sbr.rel (%p465) target = $region28
        $region27: #{tpu_custom_call.1} parent=11 // pred_region
          _
        $region28: #{tpu_custom_call.1} parent=11 // pred_fallthru
          _
        // Predicated region
        $region29: #{tpu_custom_call.1} parent=11 // pred_check
          %p468 = pneg %p184
        $region30: #{tpu_custom_call.1} parent=11 // pred_check_branch
          %470 = sbr.rel (%p468) target = $region32
        $region31: #{tpu_custom_call.1} parent=11 // pred_region
          _
        $region32: #{tpu_custom_call.1} parent=11 // pred_fallthru
          _
        // Predicated region
        $region33: #{tpu_custom_call.1} parent=11 // pred_check
          %p471 = pneg %p205
        $region34: #{tpu_custom_call.1} parent=11 // pred_check_branch
          %473 = sbr.rel (%p471) target = $region36
        $region35: #{tpu_custom_call.1} parent=11 // pred_region
          _
        $region36: #{tpu_custom_call.1} parent=11 // pred_fallthru
          _
        // Predicated region
        $region37: #{tpu_custom_call.1} parent=11 // pred_check
          %p474 = pneg %p226
        $region38: #{tpu_custom_call.1} parent=11 // pred_check_branch
          %476 = sbr.rel (%p474) target = $region40
        $region39: #{tpu_custom_call.1} parent=11 // pred_region
          _
        $region40: #{tpu_custom_call.1} parent=11 // pred_fallthru
          _
        // Predicated region
        $region41: #{tpu_custom_call.1} parent=11 // pred_check
          %p477 = pneg %p247
        $region42: #{tpu_custom_call.1} parent=11 // pred_check_branch
          %479 = sbr.rel (%p477) target = $region44
        $region43: #{tpu_custom_call.1} parent=11 // pred_region
          _
        $region44: #{tpu_custom_call.1} parent=11 // pred_fallthru
          _
        // Predicated region
        $region45: #{tpu_custom_call.1} parent=11 // pred_check
          %p480 = pneg %p268
        $region46: #{tpu_custom_call.1} parent=11 // pred_check_branch
          %482 = sbr.rel (%p480) target = $region48
        $region47: #{tpu_custom_call.1} parent=11 // pred_region
          _
        $region48: #{tpu_custom_call.1} parent=11 // pred_fallthru
          _
        // Predicated region
        $region49: #{tpu_custom_call.1} parent=11 // pred_check
          %p483 = pneg %p289
        $region50: #{tpu_custom_call.1} parent=11 // pred_check_branch
          %485 = sbr.rel (%p483) target = $region52
        $region51: #{tpu_custom_call.1} parent=11 // pred_region
          _
        $region52: #{tpu_custom_call.1} parent=11 // pred_fallthru
          _
        // Predicated region
        $region53: #{tpu_custom_call.1} parent=11 // pred_check
          %p486 = pneg %p310
        $region54: #{tpu_custom_call.1} parent=11 // pred_check_branch
          %488 = sbr.rel (%p486) target = $region56
        $region55: #{tpu_custom_call.1} parent=11 // pred_region
          _
        $region56: #{tpu_custom_call.1} parent=11 // pred_fallthru
          _
        // Predicated region
        $region57: #{tpu_custom_call.1} parent=11 // pred_check
          %p489 = pneg %p331
        $region58: #{tpu_custom_call.1} parent=11 // pred_check_branch
          %491 = sbr.rel (%p489) target = $region60
        $region59: #{tpu_custom_call.1} parent=11 // pred_region
          _
        $region60: #{tpu_custom_call.1} parent=11 // pred_fallthru
          _
        // Predicated region
        $region61: #{tpu_custom_call.1} parent=11 // pred_check
          %p492 = pneg %p352
        $region62: #{tpu_custom_call.1} parent=11 // pred_check_branch
          %494 = sbr.rel (%p492) target = $region64
        $region63: #{tpu_custom_call.1} parent=11 // pred_region
          _
        $region64: #{tpu_custom_call.1} parent=11 // pred_fallthru
          _
        // Predicated region
        $region65: #{tpu_custom_call.1} parent=11 // pred_check
          %p495 = pneg %p373
        $region66: #{tpu_custom_call.1} parent=11 // pred_check_branch
          %497 = sbr.rel (%p495) target = $region68
        $region67: #{tpu_custom_call.1} parent=11 // pred_region
          _
        $region68: #{tpu_custom_call.1} parent=11 // pred_fallthru
          _
        // Predicated region
        $region69: #{tpu_custom_call.1} parent=11 // pred_check
          %p498 = pneg %p394
        $region70: #{tpu_custom_call.1} parent=11 // pred_check_branch
          %500 = sbr.rel (%p498) target = $region72
        $region71: #{tpu_custom_call.1} parent=11 // pred_region
          _
        $region72: #{tpu_custom_call.1} parent=11 // pred_fallthru
          _
        // Predicated region
        $region73: #{tpu_custom_call.1} parent=11 // pred_check
          %p501 = pneg %p415
        $region74: #{tpu_custom_call.1} parent=11 // pred_check_branch
          %503 = sbr.rel (%p501) target = $region76
        $region75: #{tpu_custom_call.1} parent=11 // pred_region
          _
        $region76: #{tpu_custom_call.1} parent=11 // pred_fallthru
          _
      $region12: #{tpu_custom_call.1} parent=5 // pred_fallthru
        _
      %p504 = scmp.lt.s32.totalorder %s27, 2
      // Predicated region
      $region77: #{tpu_custom_call.1} parent=5 // pred_check
        %p505 = pneg %p504
      $region78: #{tpu_custom_call.1} parent=5 // pred_check_branch
        %507 = sbr.rel (%p505) target = $region80
      $region79: #{tpu_custom_call.1} parent=5 // pred_region
        // Predicated region
        $region81: #{tpu_custom_call.1} parent=79 // pred_check
          %p508 = pneg %p47
        $region82: #{tpu_custom_call.1} parent=79 // pred_check_branch
          %510 = sbr.rel (%p508) target = $region84
        $region83: #{tpu_custom_call.1} parent=79 // pred_region
          %p511 = scmp.lt.s32.totalorder %s27, 1
          %s512 = scalar_select %p511, %s27, 1
          %s513 = smul.addr %s512, 2
          %s514 = smul.addr %s513, 8
          %s515 = scalar_lea.vmem %s0, %s514
        $region84: #{tpu_custom_call.1} parent=79 // pred_fallthru
          _
        // Predicated region
        $region85: #{tpu_custom_call.1} parent=79 // pred_check
          %p516 = pneg %p73
        $region86: #{tpu_custom_call.1} parent=79 // pred_check_branch
          %518 = sbr.rel (%p516) target = $region88
        $region87: #{tpu_custom_call.1} parent=79 // pred_region
          %p519 = scmp.lt.s32.totalorder %s27, 1
          %s520 = scalar_select %p519, %s27, 1
          %s521 = smul.addr %s520, 3
          %s522 = smul.addr %s521, 8
          %s523 = scalar_lea.vmem %s1, %s522
        $region88: #{tpu_custom_call.1} parent=79 // pred_fallthru
          _
      $region80: #{tpu_custom_call.1} parent=5 // pred_fallthru
        _
      %p524 = scmp.le.s32.totalorder 1, %s27
      %p525 = scmp.lt.s32.totalorder %s27, 3
      %p526 = pnand %p524, %p525
      %p527 = pneg %p526
      // Predicated region
      $region89: #{tpu_custom_call.1} parent=5 // pred_check
        _
      $region90: #{tpu_custom_call.1} parent=5 // pred_check_branch
        %529 = sbr.rel (%p526) target = $region92
      $region91: #{tpu_custom_call.1} parent=5 // pred_region
        %s530 = ssub.s32 %s27, 1
        %p531 = scmp.lt.s32.totalorder %s32, 1
        %s532 = scalar_select %p531, %s32, 1
        %s533 = smul.addr %s532, 2
        %s534 = smul.addr %s533, 8
        %s535 = scalar_lea.vmem %s0, %s534
        %p536 = pneg %p53
        %p537 = pneg %p50
        %p538 = scmp.lt.s32.totalorder %s32, 1
        %s539 = scalar_select %p538, %s32, 1
        %s540 = smul.addr %s539, 3
        %s541 = smul.addr %s540, 8
        %s542 = scalar_lea.vmem %s1, %s541
        %p543 = pneg %p79
        %p544 = pneg %p76
        %p545 = pneg %p100
        %p546 = pneg %p97
        %p547 = pneg %p121
        %p548 = pneg %p118
        %p549 = pneg %p142
        %p550 = pneg %p139
        %p551 = pneg %p163
        %p552 = pneg %p160
        %p553 = pneg %p184
        %p554 = pneg %p181
        %p555 = pneg %p205
        %p556 = pneg %p202
        %p557 = pneg %p226
        %p558 = pneg %p223
        %p559 = pneg %p247
        %p560 = pneg %p244
        %p561 = pneg %p268
        %p562 = pneg %p265
        %p563 = pneg %p289
        %p564 = pneg %p286
        %p565 = pneg %p310
        %p566 = pneg %p307
        %p567 = pneg %p331
        %p568 = pneg %p328
        %p569 = pneg %p352
        %p570 = pneg %p349
        %p571 = pneg %p373
        %p572 = pneg %p370
        %p573 = pneg %p394
        %p574 = pneg %p391
        %p575 = pneg %p415
        %p576 = pneg %p412
        %p577 = pneg %p441
        %p578 = pneg %p438
        %s579 = sand.u32 %s428, 1
        %s580 = scalar_lea.sflag [#allocation3], %s579
        %s581 = sand.u32 %s428, 1
        %s582 = smul.addr %s581, 160
        %s583 = scalar_lea.vmem [#allocation2], %s582
        %p584 = scmp.lt.s32.totalorder %s32, 1
        %s585 = scalar_select %p584, %s32, 1
        %s586 = smul.addr %s585, 2
        %s587 = smul.addr %s586, 8
        %s588 = scalar_lea.vmem %s0, %s587
        %p589 = scmp.lt.s32.totalorder %s32, 1
        %s590 = scalar_select %p589, %s32, 1
        %s591 = smul.addr %s590, 3
        %s592 = smul.addr %s591, 8
        %s593 = scalar_lea.vmem %s1, %s592
        %v595 = vld [vmem:[%s2] sm:$0xf]
        %v596 = vld [vmem:[%s2 + $0x4] sm:$0xf]
        %v597 = vld [vmem:[%s2 + $0x8] sm:$0xf]
        %v598 = vld [vmem:[%s2 + $0xc] sm:$0xf]
        %v599 = vld [vmem:[%s3] sm:$0xff]
        %v600 = vld [vmem:[%s3 + $0x8] sm:$0xff]
        %v601 = vld [vmem:[%s3 + $0x10] sm:$0xff]
        %v602 = vld [vmem:[%s3 + $0x18] sm:$0xff]
        %v603 = vld [vmem:[%s4] sm:$0xf]
        %v604 = vld [vmem:[%s4 + $0x4] sm:$0xf]
        %v605 = vld [vmem:[%s4 + $0x8] sm:$0xf]
        %v606 = vld [vmem:[%s4 + $0xc] sm:$0xf]
        %v607 = vld [vmem:[%s5] sm:$0xff]
        %v608 = vld [vmem:[%s5 + $0x8] sm:$0xff]
        %v609 = vld [vmem:[%s5 + $0x10] sm:$0xff]
        %v610 = vld [vmem:[%s5 + $0x18] sm:$0xff]
        %v611 = vld [vmem:[%s6] sm:$0xff]
        %v612 = vld [vmem:[%s6 + $0x8] sm:$0xff]
        %v613 = vld [vmem:[%s6 + $0x10] sm:$0xff]
        %v614 = vld [vmem:[%s6 + $0x18] sm:$0xff]
        %v615 = vld [vmem:[%s6 + $0x20] sm:$0xff]
        %v616 = vld [vmem:[%s6 + $0x28] sm:$0xff]
        %v617 = vld [vmem:[%s6 + $0x30] sm:$0xff]
        %v618 = vld [vmem:[%s6 + $0x38] sm:$0xff]
        %v619 = vld [vmem:[%s6 + $0x40] sm:$0xff]
        %v620 = vld [vmem:[%s6 + $0x48] sm:$0xff]
        %v621 = vld [vmem:[%s6 + $0x50] sm:$0xff]
        %v622 = vld [vmem:[%s6 + $0x58] sm:$0xff]
        %v623 = vld [vmem:[%s6 + $0x60] sm:$0xff]
        %v624 = vld [vmem:[%s6 + $0x68] sm:$0xff]
        %v625 = vld [vmem:[%s6 + $0x70] sm:$0xff]
        %v626 = vld [vmem:[%s6 + $0x78] sm:$0xff]
        %v627 = vld [vmem:[%s6 + $0x80] sm:$0xff]
        %v628 = vld [vmem:[%s6 + $0x88] sm:$0xff]
        %v629 = vld [vmem:[%s6 + $0x90] sm:$0xff]
        %v630 = vld [vmem:[%s6 + $0x98] sm:$0xff]
        %v631 = vld [vmem:[%s7] sm:$0xff]
        %v632 = vld [vmem:[%s7 + $0x8] sm:$0xff]
        %v633 = vld [vmem:[%s7 + $0x10] sm:$0xff]
        %v634 = vld [vmem:[%s7 + $0x18] sm:$0xff]
        %v635 = vld [vmem:[%s7 + $0x20] sm:$0xff]
        %v636 = vld [vmem:[%s7 + $0x28] sm:$0xff]
        %v637 = vld [vmem:[%s7 + $0x30] sm:$0xff]
        %v638 = vld [vmem:[%s7 + $0x38] sm:$0xff]
        %v639 = vld [vmem:[%s7 + $0x40] sm:$0xff]
        %v640 = vld [vmem:[%s7 + $0x48] sm:$0xff]
        %v641 = vld [vmem:[%s7 + $0x50] sm:$0xff]
        %v642 = vld [vmem:[%s7 + $0x58] sm:$0xff]
        %v643 = vld [vmem:[%s7 + $0x60] sm:$0xff]
        %v644 = vld [vmem:[%s7 + $0x68] sm:$0xff]
        %v645 = vld [vmem:[%s7 + $0x70] sm:$0xff]
        %v646 = vld [vmem:[%s7 + $0x78] sm:$0xff]
        %v647 = vld [vmem:[%s7 + $0x80] sm:$0xff]
        %v648 = vld [vmem:[%s7 + $0x88] sm:$0xff]
        %v649 = vld [vmem:[%s7 + $0x90] sm:$0xff]
        %v650 = vld [vmem:[%s7 + $0x98] sm:$0xff]
        %v651 = vld [vmem:[%s8] sm:$0xff]
        %v652 = vld [vmem:[%s8 + $0x8] sm:$0xff]
        %v653 = vld [vmem:[%s8 + $0x10] sm:$0xff]
        %v654 = vld [vmem:[%s8 + $0x18] sm:$0xff]
        %v655 = vld [vmem:[%s8 + $0x20] sm:$0xff]
        %v656 = vld [vmem:[%s8 + $0x28] sm:$0xff]
        %v657 = vld [vmem:[%s8 + $0x30] sm:$0xff]
        %v658 = vld [vmem:[%s8 + $0x38] sm:$0xff]
        %v659 = vld [vmem:[%s8 + $0x40] sm:$0xff]
        %v660 = vld [vmem:[%s8 + $0x48] sm:$0xff]
        %v661 = vld [vmem:[%s8 + $0x50] sm:$0xff]
        %v662 = vld [vmem:[%s8 + $0x58] sm:$0xff]
        %v663 = vld [vmem:[%s8 + $0x60] sm:$0xff]
        %v664 = vld [vmem:[%s8 + $0x68] sm:$0xff]
        %v665 = vld [vmem:[%s8 + $0x70] sm:$0xff]
        %v666 = vld [vmem:[%s8 + $0x78] sm:$0xff]
        %v667 = vld [vmem:[%s8 + $0x80] sm:$0xff]
        %v668 = vld [vmem:[%s8 + $0x88] sm:$0xff]
        %v669 = vld [vmem:[%s8 + $0x90] sm:$0xff]
        %v670 = vld [vmem:[%s8 + $0x98] sm:$0xff]
        %v671 = vld [vmem:[%s9] sm:$0xff]
        %v672 = vld [vmem:[%s9 + $0x8] sm:$0xff]
        %v673 = vld [vmem:[%s9 + $0x10] sm:$0xff]
        %v674 = vld [vmem:[%s9 + $0x18] sm:$0xff]
        %v675 = vld [vmem:[%s9 + $0x20] sm:$0xff]
        %v676 = vld [vmem:[%s9 + $0x28] sm:$0xff]
        %v677 = vld [vmem:[%s9 + $0x30] sm:$0xff]
        %v678 = vld [vmem:[%s9 + $0x38] sm:$0xff]
        %v679 = vld [vmem:[%s9 + $0x40] sm:$0xff]
        %v680 = vld [vmem:[%s9 + $0x48] sm:$0xff]
        %v681 = vld [vmem:[%s9 + $0x50] sm:$0xff]
        %v682 = vld [vmem:[%s9 + $0x58] sm:$0xff]
        %v683 = vld [vmem:[%s9 + $0x60] sm:$0xff]
        %v684 = vld [vmem:[%s9 + $0x68] sm:$0xff]
        %v685 = vld [vmem:[%s9 + $0x70] sm:$0xff]
        %v686 = vld [vmem:[%s9 + $0x78] sm:$0xff]
        %v687 = vld [vmem:[%s9 + $0x80] sm:$0xff]
        %v688 = vld [vmem:[%s9 + $0x88] sm:$0xff]
        %v689 = vld [vmem:[%s9 + $0x90] sm:$0xff]
        %v690 = vld [vmem:[%s9 + $0x98] sm:$0xff]
        %v691 = vld [vmem:[%s10] sm:$0xff]
        %v692 = vld [vmem:[%s10 + $0x8] sm:$0xff]
        %v693 = vld [vmem:[%s10 + $0x10] sm:$0xff]
        %v694 = vld [vmem:[%s10 + $0x18] sm:$0xff]
        %v695 = vld [vmem:[%s10 + $0x20] sm:$0xff]
        %v696 = vld [vmem:[%s10 + $0x28] sm:$0xff]
        %v697 = vld [vmem:[%s10 + $0x30] sm:$0xff]
        %v698 = vld [vmem:[%s10 + $0x38] sm:$0xff]
        %v699 = vld [vmem:[%s10 + $0x40] sm:$0xff]
        %v700 = vld [vmem:[%s10 + $0x48] sm:$0xff]
        %v701 = vld [vmem:[%s10 + $0x50] sm:$0xff]
        %v702 = vld [vmem:[%s10 + $0x58] sm:$0xff]
        %v703 = vld [vmem:[%s10 + $0x60] sm:$0xff]
        %v704 = vld [vmem:[%s10 + $0x68] sm:$0xff]
        %v705 = vld [vmem:[%s10 + $0x70] sm:$0xff]
        %v706 = vld [vmem:[%s10 + $0x78] sm:$0xff]
        %v707 = vld [vmem:[%s10 + $0x80] sm:$0xff]
        %v708 = vld [vmem:[%s10 + $0x88] sm:$0xff]
        %v709 = vld [vmem:[%s10 + $0x90] sm:$0xff]
        %v710 = vld [vmem:[%s10 + $0x98] sm:$0xff]
        %v711 = vld [vmem:[%s11] sm:$0xff]
        %v712 = vld [vmem:[%s11 + $0x8] sm:$0xff]
        %v713 = vld [vmem:[%s11 + $0x10] sm:$0xff]
        %v714 = vld [vmem:[%s11 + $0x18] sm:$0xff]
        %v715 = vld [vmem:[%s11 + $0x20] sm:$0xff]
        %v716 = vld [vmem:[%s11 + $0x28] sm:$0xff]
        %v717 = vld [vmem:[%s11 + $0x30] sm:$0xff]
        %v718 = vld [vmem:[%s11 + $0x38] sm:$0xff]
        %v719 = vld [vmem:[%s11 + $0x40] sm:$0xff]
        %v720 = vld [vmem:[%s11 + $0x48] sm:$0xff]
        %v721 = vld [vmem:[%s11 + $0x50] sm:$0xff]
        %v722 = vld [vmem:[%s11 + $0x58] sm:$0xff]
        %v723 = vld [vmem:[%s11 + $0x60] sm:$0xff]
        %v724 = vld [vmem:[%s11 + $0x68] sm:$0xff]
        %v725 = vld [vmem:[%s11 + $0x70] sm:$0xff]
        %v726 = vld [vmem:[%s11 + $0x78] sm:$0xff]
        %v727 = vld [vmem:[%s11 + $0x80] sm:$0xff]
        %v728 = vld [vmem:[%s11 + $0x88] sm:$0xff]
        %v729 = vld [vmem:[%s11 + $0x90] sm:$0xff]
        %v730 = vld [vmem:[%s11 + $0x98] sm:$0xff]
        %v731 = vld [vmem:[%s12] sm:$0xff]
        %v732 = vld [vmem:[%s12 + $0x8] sm:$0xff]
        %v733 = vld [vmem:[%s12 + $0x10] sm:$0xff]
        %v734 = vld [vmem:[%s12 + $0x18] sm:$0xff]
        %v735 = vld [vmem:[%s13] sm:$0xf]
        %v736 = vld [vmem:[%s13 + $0x4] sm:$0xf]
        %v737 = vld [vmem:[%s13 + $0x8] sm:$0xf]
        %v738 = vld [vmem:[%s13 + $0xc] sm:$0xf]
        %v739 = vld [vmem:[%s14] sm:$0xff]
        %v740 = vld [vmem:[%s14 + $0x8] sm:$0xff]
        %v741 = vld [vmem:[%s14 + $0x10] sm:$0xff]
        %v742 = vld [vmem:[%s14 + $0x18] sm:$0xff]
        %v743 = vld [vmem:[%s15] sm:$0xff]
        %v744 = vld [vmem:[%s15 + $0x8] sm:$0xff]
        %v745 = vld [vmem:[%s15 + $0x10] sm:$0xff]
        %v746 = vld [vmem:[%s15 + $0x18] sm:$0xff]
        %v747 = vld [vmem:[%s16] sm:$0xf]
        %v748 = vld [vmem:[%s16 + $0x4] sm:$0xf]
        %v749 = vld [vmem:[%s16 + $0x8] sm:$0xf]
        %v750 = vld [vmem:[%s16 + $0xc] sm:$0xf]
        %v751 = vld [vmem:[%s17] sm:$0xff]
        %v752 = vld [vmem:[%s17 + $0x8] sm:$0xff]
        %v753 = vld [vmem:[%s17 + $0x10] sm:$0xff]
        %v754 = vld [vmem:[%s17 + $0x18] sm:$0xff]
        %v755 = vlaneseq
        %v756 = vand.u32 %v755, 127
        %vm757 = vcmp.lt.s32.totalorder %v756, 127
        %vm758 = vcmp.ge.s32.totalorder %v756, 1
        %vm759 = vcmp.lt.s32.totalorder %v756, 126
        %vm760 = vcmp.ge.s32.totalorder %v756, 2
        %vm761 = vcmp.lt.s32.totalorder %v756, 125
        %vm762 = vcmp.ge.s32.totalorder %v756, 3
        %v763 = vld [vmem:[%s588] sm:$0xff]
        %v764 = vld [vmem:[%s588 + $0x8] sm:$0xff]
        %v765 = vld [vmem:[%s593] sm:$0xff]
        %v766 = vld [vmem:[%s593 + $0x8] sm:$0xff]
        %v767 = vld [vmem:[%s593 + $0x10] sm:$0xff]
        %v768 = vmax.f32 %v763, 0.0
        %v769 = vmax.f32 %v764, 0.0
        %v770 = vpack.c.bf16 %v769, %v768
        %772 = vset.pattern.permute.xlu0 0
        %773 = vperm.xlu0 %772, %v599
        %v774 = vpop.permute.xlu0 %773
        %777 = vset.pattern.permute.xlu0 0
        %778 = vperm.xlu0 %777, %v600
        %v779 = vpop.permute.xlu0 %778
        %782 = vset.pattern.permute.xlu0 0
        %783 = vperm.xlu0 %782, %v601
        %v784 = vpop.permute.xlu0 %783
        %787 = vset.pattern.permute.xlu0 0
        %788 = vperm.xlu0 %787, %v602
        %v789 = vpop.permute.xlu0 %788
        %v795 = vunpack.c.l.b16 %v595
        %v796 = vunpack.c.l.b16 %v596
        %v797 = vunpack.c.l.b16 %v597
        %v798 = vunpack.c.l.b16 %v598
        %v799 = vpack.c.b16 %v796, %v795
        %v800 = vpack.c.b16 %v798, %v797
        %vm801 = vcmask 130048
        %v803 = vsel %vm801, %v799, 0
        %v806 = vsel %vm801, %v800, 0
        %808 = vmatprep.subr.bf16.mxu0 0
        %809 = vmatpush1.bf16.msra.mxu0 %v770
        %810 = vmatprep.subr.bf16.mxu0 0
        %811 = vmatpush1.bf16.msra.mxu0 0
        %812 = vmatprep.subr.bf16.mxu0 0
        %813 = vmatpush1.bf16.msra.mxu0 0
        %814 = vmatprep.subr.bf16.mxu0 0
        %815 = vmatpush1.bf16.msra.mxu0 0
        %816 = vmatprep.subr.bf16.mxu0 0
        %817 = vmatpush1.bf16.msra.mxu0 0
        %818 = vmatprep.subr.bf16.mxu0 0
        %819 = vmatpush1.bf16.msra.mxu0 0
        %820 = vmatprep.subr.bf16.mxu0 0
        %821 = vmatpush1.bf16.msra.mxu0 0
        %822 = vmatprep.subr.bf16.mxu0 0
        %823 = vmatpush1.bf16.msra.mxu0 0
        %824 = vmatprep.subr.bf16.mxu0 0
        %825 = vmatpush1.bf16.msra.mxu0 0
        %826 = vmatprep.subr.bf16.mxu0 0
        %827 = vmatpush1.bf16.msra.mxu0 0
        %828 = vmatprep.subr.bf16.mxu0 0
        %829 = vmatpush1.bf16.msra.mxu0 0
        %830 = vmatprep.subr.bf16.mxu0 0
        %831 = vmatpush1.bf16.msra.mxu0 0
        %832 = vmatprep.subr.bf16.mxu0 0
        %833 = vmatpush1.bf16.msra.mxu0 0
        %834 = vmatprep.subr.bf16.mxu0 0
        %835 = vmatpush1.bf16.msra.mxu0 0
        %836 = vmatprep.subr.bf16.mxu0 0
        %837 = vmatpush1.bf16.msra.mxu0 0
        %838 = vmatprep.subr.bf16.mxu0 0
        %839 = vmatpush1.bf16.msra.mxu0 0
        %840 = vmatprep.mubr.bf16.mxu0 0
        %841 = vmatmul.mubr.bf16.gmra.mrb[0].mxu0 %v803
        %v842 = vpop.f32.mrb[0].mxu0
        %v843 = vadd.f32 %v774, %v842
        %v844 = vpop.f32.mrb[0].mxu0
        %v845 = vpop.f32.mrb[0].mxu0
        %v846 = vadd.f32 %v779, %v845
        %v847 = vpop.f32.mrb[0].mxu0
        %848 = vmatprep.mubr.bf16.mxu0 0
        %849 = vmatmul.mubr.bf16.gmra.mrb[0].mxu0 %v806
        %v850 = vpop.f32.mrb[0].mxu0
        %v851 = vadd.f32 %v784, %v850
        %v852 = vpop.f32.mrb[0].mxu0
        %v853 = vpop.f32.mrb[0].mxu0
        %v854 = vadd.f32 %v789, %v853
        %v855 = vpop.f32.mrb[0].mxu0
        %856 = vdwg.mxu0
        %v857 = vmax.f32 %v765, 0.0
        %v858 = vmax.f32 %v766, 0.0
        %v859 = vmax.f32 %v767, 0.0
        %v860 = vpack.c.bf16 %v858, %v857
        %v861 = vpack.c.bf16 %v859, %v859
        %863 = vset.pattern.permute.xlu0 0
        %864 = vperm.xlu0 %863, %v607
        %v865 = vpop.permute.xlu0 %864
        %868 = vset.pattern.permute.xlu0 0
        %869 = vperm.xlu0 %868, %v608
        %v870 = vpop.permute.xlu0 %869
        %873 = vset.pattern.permute.xlu0 0
        %874 = vperm.xlu0 %873, %v609
        %v875 = vpop.permute.xlu0 %874
        %878 = vset.pattern.permute.xlu0 0
        %879 = vperm.xlu0 %878, %v610
        %v880 = vpop.permute.xlu0 %879
        %v886 = vunpack.c.l.b16 %v603
        %v887 = vunpack.c.l.b16 %v604
        %v888 = vunpack.c.l.b16 %v605
        %v889 = vunpack.c.l.b16 %v606
        %v890 = vpack.c.b16 %v887, %v886
        %v891 = vpack.c.b16 %v889, %v888
        %vm892 = vcmask 195584
        %v894 = vsel %vm892, %v890, 0
        %v897 = vsel %vm892, %v891, 0
        %vm899 = vcmask 1043456
        %v901 = vsel %vm899, %v861, 0
        %903 = vmatprep.subr.bf16.mxu0 0
        %904 = vmatpush1.bf16.msra.mxu0 %v860
        %905 = vmatprep.subr.bf16.mxu0 0
        %906 = vmatpush1.bf16.msra.mxu0 %v901
        %907 = vmatprep.subr.bf16.mxu0 0
        %908 = vmatpush1.bf16.msra.mxu0 0
        %909 = vmatprep.subr.bf16.mxu0 0
        %910 = vmatpush1.bf16.msra.mxu0 0
        %911 = vmatprep.subr.bf16.mxu0 0
        %912 = vmatpush1.bf16.msra.mxu0 0
        %913 = vmatprep.subr.bf16.mxu0 0
        %914 = vmatpush1.bf16.msra.mxu0 0
        %915 = vmatprep.subr.bf16.mxu0 0
        %916 = vmatpush1.bf16.msra.mxu0 0
        %917 = vmatprep.subr.bf16.mxu0 0
        %918 = vmatpush1.bf16.msra.mxu0 0
        %919 = vmatprep.subr.bf16.mxu0 0
        %920 = vmatpush1.bf16.msra.mxu0 0
        %921 = vmatprep.subr.bf16.mxu0 0
        %922 = vmatpush1.bf16.msra.mxu0 0
        %923 = vmatprep.subr.bf16.mxu0 0
        %924 = vmatpush1.bf16.msra.mxu0 0
        %925 = vmatprep.subr.bf16.mxu0 0
        %926 = vmatpush1.bf16.msra.mxu0 0
        %927 = vmatprep.subr.bf16.mxu0 0
        %928 = vmatpush1.bf16.msra.mxu0 0
        %929 = vmatprep.subr.bf16.mxu0 0
        %930 = vmatpush1.bf16.msra.mxu0 0
        %931 = vmatprep.subr.bf16.mxu0 0
        %932 = vmatpush1.bf16.msra.mxu0 0
        %933 = vmatprep.subr.bf16.mxu0 0
        %934 = vmatpush1.bf16.msra.mxu0 0
        %935 = vmatprep.mubr.bf16.mxu0 0
        %936 = vmatmul.mubr.bf16.gmra.mrb[0].mxu0 %v894
        %v937 = vpop.f32.mrb[0].mxu0
        %v938 = vadd.f32 %v865, %v937
        %v939 = vpop.f32.mrb[0].mxu0
        %v940 = vpop.f32.mrb[0].mxu0
        %v941 = vadd.f32 %v870, %v940
        %v942 = vpop.f32.mrb[0].mxu0
        %943 = vmatprep.mubr.bf16.mxu0 0
        %944 = vmatmul.mubr.bf16.gmra.mrb[0].mxu0 %v897
        %v945 = vpop.f32.mrb[0].mxu0
        %v946 = vadd.f32 %v875, %v945
        %v947 = vpop.f32.mrb[0].mxu0
        %v948 = vpop.f32.mrb[0].mxu0
        %v949 = vadd.f32 %v880, %v948
        %v950 = vpop.f32.mrb[0].mxu0
        %951 = vdwg.mxu0
        %v952 = vmax.f32 %v843, 0.0
        %v953 = vmax.f32 %v846, 0.0
        %v954 = vmax.f32 %v851, 0.0
        %v955 = vmax.f32 %v854, 0.0
        %v956 = vmax.f32 %v938, 0.0
        %v957 = vmax.f32 %v941, 0.0
        %v958 = vmax.f32 %v946, 0.0
        %v959 = vmax.f32 %v949, 0.0
        %960 = vrot.lane.b32.xlu0 %v952, 2
        %v961 = vpop.permute.xlu0 %960
        %962 = vrot.lane.b32.xlu0 %v953, 2
        %v963 = vpop.permute.xlu0 %962
        %964 = vrot.lane.b32.xlu0 %v954, 2
        %v965 = vpop.permute.xlu0 %964
        %966 = vrot.lane.b32.xlu0 %v955, 2
        %v967 = vpop.permute.xlu0 %966
        %v968 = vsel %vm760, 1, 0
        %vm969 = vcmp.eq.s32.totalorder %v968, 1
        %v970 = vsel %vm969, %v961, 0.0
        %v971 = vsel %vm969, %v963, 0.0
        %v972 = vsel %vm969, %v965, 0.0
        %v973 = vsel %vm969, %v967, 0.0
        %974 = vrot.lane.b32.xlu0 %v952, 1
        %v975 = vpop.permute.xlu0 %974
        %976 = vrot.lane.b32.xlu0 %v953, 1
        %v977 = vpop.permute.xlu0 %976
        %978 = vrot.lane.b32.xlu0 %v954, 1
        %v979 = vpop.permute.xlu0 %978
        %980 = vrot.lane.b32.xlu0 %v955, 1
        %v981 = vpop.permute.xlu0 %980
        %v982 = vsel %vm758, 1, 0
        %vm983 = vcmp.eq.s32.totalorder %v982, 1
        %v984 = vsel %vm983, %v975, 0.0
        %v985 = vsel %vm983, %v977, 0.0
        %v986 = vsel %vm983, %v979, 0.0
        %v987 = vsel %vm983, %v981, 0.0
        %988 = vrot.lane.b32.xlu0 %v952, 127
        %v989 = vpop.permute.xlu0 %988
        %990 = vrot.lane.b32.xlu0 %v953, 127
        %v991 = vpop.permute.xlu0 %990
        %992 = vrot.lane.b32.xlu0 %v954, 127
        %v993 = vpop.permute.xlu0 %992
        %994 = vrot.lane.b32.xlu0 %v955, 127
        %v995 = vpop.permute.xlu0 %994
        %v996 = vsel %vm757, 1, 0
        %vm997 = vcmp.eq.s32.totalorder %v996, 1
        %v998 = vsel %vm997, %v989, 0.0
        %v999 = vsel %vm997, %v991, 0.0
        %v1000 = vsel %vm997, %v993, 0.0
        %v1001 = vsel %vm997, %v995, 0.0
        %1002 = vrot.lane.b32.xlu0 %v952, 126
        %v1003 = vpop.permute.xlu0 %1002
        %1004 = vrot.lane.b32.xlu0 %v953, 126
        %v1005 = vpop.permute.xlu0 %1004
        %1006 = vrot.lane.b32.xlu0 %v954, 126
        %v1007 = vpop.permute.xlu0 %1006
        %1008 = vrot.lane.b32.xlu0 %v955, 126
        %v1009 = vpop.permute.xlu0 %1008
        %v1010 = vsel %vm759, 1, 0
        %vm1011 = vcmp.eq.s32.totalorder %v1010, 1
        %v1012 = vsel %vm1011, %v1003, 0.0
        %v1013 = vsel %vm1011, %v1005, 0.0
        %v1014 = vsel %vm1011, %v1007, 0.0
        %v1015 = vsel %vm1011, %v1009, 0.0
        %1016 = vrot.lane.b32.xlu0 %v956, 3
        %v1017 = vpop.permute.xlu0 %1016
        %1018 = vrot.lane.b32.xlu0 %v957, 3
        %v1019 = vpop.permute.xlu0 %1018
        %1020 = vrot.lane.b32.xlu0 %v958, 3
        %v1021 = vpop.permute.xlu0 %1020
        %1022 = vrot.lane.b32.xlu0 %v959, 3
        %v1023 = vpop.permute.xlu0 %1022
        %v1024 = vsel %vm762, 1, 0
        %vm1025 = vcmp.eq.s32.totalorder %v1024, 1
        %v1026 = vsel %vm1025, %v1017, 0.0
        %v1027 = vsel %vm1025, %v1019, 0.0
        %v1028 = vsel %vm1025, %v1021, 0.0
        %v1029 = vsel %vm1025, %v1023, 0.0
        %1030 = vrot.lane.b32.xlu0 %v956, 2
        %v1031 = vpop.permute.xlu0 %1030
        %1032 = vrot.lane.b32.xlu0 %v957, 2
        %v1033 = vpop.permute.xlu0 %1032
        %1034 = vrot.lane.b32.xlu0 %v958, 2
        %v1035 = vpop.permute.xlu0 %1034
        %1036 = vrot.lane.b32.xlu0 %v959, 2
        %v1037 = vpop.permute.xlu0 %1036
        %v1038 = vsel %vm969, %v1031, 0.0
        %v1039 = vsel %vm969, %v1033, 0.0
        %v1040 = vsel %vm969, %v1035, 0.0
        %v1041 = vsel %vm969, %v1037, 0.0
        %1042 = vrot.lane.b32.xlu0 %v956, 1
        %v1043 = vpop.permute.xlu0 %1042
        %1044 = vrot.lane.b32.xlu0 %v957, 1
        %v1045 = vpop.permute.xlu0 %1044
        %1046 = vrot.lane.b32.xlu0 %v958, 1
        %v1047 = vpop.permute.xlu0 %1046
        %1048 = vrot.lane.b32.xlu0 %v959, 1
        %v1049 = vpop.permute.xlu0 %1048
        %v1050 = vsel %vm983, %v1043, 0.0
        %v1051 = vsel %vm983, %v1045, 0.0
        %v1052 = vsel %vm983, %v1047, 0.0
        %v1053 = vsel %vm983, %v1049, 0.0
        %1054 = vrot.lane.b32.xlu0 %v956, 127
        %v1055 = vpop.permute.xlu0 %1054
        %1056 = vrot.lane.b32.xlu0 %v957, 127
        %v1057 = vpop.permute.xlu0 %1056
        %1058 = vrot.lane.b32.xlu0 %v958, 127
        %v1059 = vpop.permute.xlu0 %1058
        %1060 = vrot.lane.b32.xlu0 %v959, 127
        %v1061 = vpop.permute.xlu0 %1060
        %v1062 = vsel %vm997, %v1055, 0.0
        %v1063 = vsel %vm997, %v1057, 0.0
        %v1064 = vsel %vm997, %v1059, 0.0
        %v1065 = vsel %vm997, %v1061, 0.0
        %1066 = vrot.lane.b32.xlu0 %v956, 126
        %v1067 = vpop.permute.xlu0 %1066
        %1068 = vrot.lane.b32.xlu0 %v957, 126
        %v1069 = vpop.permute.xlu0 %1068
        %1070 = vrot.lane.b32.xlu0 %v958, 126
        %v1071 = vpop.permute.xlu0 %1070
        %1072 = vrot.lane.b32.xlu0 %v959, 126
        %v1073 = vpop.permute.xlu0 %1072
        %v1074 = vsel %vm1011, %v1067, 0.0
        %v1075 = vsel %vm1011, %v1069, 0.0
        %v1076 = vsel %vm1011, %v1071, 0.0
        %v1077 = vsel %vm1011, %v1073, 0.0
        %1078 = vrot.lane.b32.xlu0 %v956, 125
        %v1079 = vpop.permute.xlu0 %1078
        %1080 = vrot.lane.b32.xlu0 %v957, 125
        %v1081 = vpop.permute.xlu0 %1080
        %1082 = vrot.lane.b32.xlu0 %v958, 125
        %v1083 = vpop.permute.xlu0 %1082
        %1084 = vrot.lane.b32.xlu0 %v959, 125
        %v1085 = vpop.permute.xlu0 %1084
        %v1086 = vsel %vm761, 1, 0
        %vm1087 = vcmp.eq.s32.totalorder %v1086, 1
        %v1088 = vsel %vm1087, %v1079, 0.0
        %v1089 = vsel %vm1087, %v1081, 0.0
        %v1090 = vsel %vm1087, %v1083, 0.0
        %v1091 = vsel %vm1087, %v1085, 0.0
        %1093 = vset.pattern.permute.xlu0 3
        %1094 = vperm.xlu0 %1093, %v611
        %v1095 = vpop.permute.xlu0 %1094
        %1098 = vset.pattern.permute.xlu0 3
        %1099 = vperm.xlu0 %1098, %v612
        %v1100 = vpop.permute.xlu0 %1099
        %1103 = vset.pattern.permute.xlu0 3
        %1104 = vperm.xlu0 %1103, %v613
        %v1105 = vpop.permute.xlu0 %1104
        %1108 = vset.pattern.permute.xlu0 3
        %1109 = vperm.xlu0 %1108, %v614
        %v1110 = vpop.permute.xlu0 %1109
        %v1112 = vmul.f32 %v952, %v1095
        %v1113 = vmul.f32 %v953, %v1100
        %v1114 = vmul.f32 %v954, %v1105
        %v1115 = vmul.f32 %v955, %v1110
        %1116 = vset.pattern.permute.xlu0 4
        %1117 = vperm.xlu0 %1116, %v611
        %v1118 = vpop.permute.xlu0 %1117
        %1120 = vset.pattern.permute.xlu0 4
        %1121 = vperm.xlu0 %1120, %v612
        %v1122 = vpop.permute.xlu0 %1121
        %1124 = vset.pattern.permute.xlu0 4
        %1125 = vperm.xlu0 %1124, %v613
        %v1126 = vpop.permute.xlu0 %1125
        %1128 = vset.pattern.permute.xlu0 4
        %1129 = vperm.xlu0 %1128, %v614
        %v1130 = vpop.permute.xlu0 %1129
        %v1132 = vmul.f32 %v998, %v1118
        %v1133 = vmul.f32 %v999, %v1122
        %v1134 = vmul.f32 %v1000, %v1126
        %v1135 = vmul.f32 %v1001, %v1130
        %v1136 = vadd.f32 %v1112, %v1132
        %v1137 = vadd.f32 %v1113, %v1133
        %v1138 = vadd.f32 %v1114, %v1134
        %v1139 = vadd.f32 %v1115, %v1135
        %1140 = vset.pattern.permute.xlu0 2
        %1141 = vperm.xlu0 %1140, %v611
        %v1142 = vpop.permute.xlu0 %1141
        %1144 = vset.pattern.permute.xlu0 2
        %1145 = vperm.xlu0 %1144, %v612
        %v1146 = vpop.permute.xlu0 %1145
        %1148 = vset.pattern.permute.xlu0 2
        %1149 = vperm.xlu0 %1148, %v613
        %v1150 = vpop.permute.xlu0 %1149
        %1152 = vset.pattern.permute.xlu0 2
        %1153 = vperm.xlu0 %1152, %v614
        %v1154 = vpop.permute.xlu0 %1153
        %v1156 = vmul.f32 %v984, %v1142
        %v1157 = vmul.f32 %v985, %v1146
        %v1158 = vmul.f32 %v986, %v1150
        %v1159 = vmul.f32 %v987, %v1154
        %v1160 = vadd.f32 %v1136, %v1156
        %v1161 = vadd.f32 %v1137, %v1157
        %v1162 = vadd.f32 %v1138, %v1158
        %v1163 = vadd.f32 %v1139, %v1159
        %1164 = vset.pattern.permute.xlu0 5
        %1165 = vperm.xlu0 %1164, %v611
        %v1166 = vpop.permute.xlu0 %1165
        %1168 = vset.pattern.permute.xlu0 5
        %1169 = vperm.xlu0 %1168, %v612
        %v1170 = vpop.permute.xlu0 %1169
        %1172 = vset.pattern.permute.xlu0 5
        %1173 = vperm.xlu0 %1172, %v613
        %v1174 = vpop.permute.xlu0 %1173
        %1176 = vset.pattern.permute.xlu0 5
        %1177 = vperm.xlu0 %1176, %v614
        %v1178 = vpop.permute.xlu0 %1177
        %v1180 = vmul.f32 %v1012, %v1166
        %v1181 = vmul.f32 %v1013, %v1170
        %v1182 = vmul.f32 %v1014, %v1174
        %v1183 = vmul.f32 %v1015, %v1178
        %v1184 = vadd.f32 %v1160, %v1180
        %v1185 = vadd.f32 %v1161, %v1181
        %v1186 = vadd.f32 %v1162, %v1182
        %v1187 = vadd.f32 %v1163, %v1183
        %1188 = vset.pattern.permute.xlu0 1
        %1189 = vperm.xlu0 %1188, %v611
        %v1190 = vpop.permute.xlu0 %1189
        %1192 = vset.pattern.permute.xlu0 1
        %1193 = vperm.xlu0 %1192, %v612
        %v1194 = vpop.permute.xlu0 %1193
        %1196 = vset.pattern.permute.xlu0 1
        %1197 = vperm.xlu0 %1196, %v613
        %v1198 = vpop.permute.xlu0 %1197
        %1200 = vset.pattern.permute.xlu0 1
        %1201 = vperm.xlu0 %1200, %v614
        %v1202 = vpop.permute.xlu0 %1201
        %v1204 = vmul.f32 %v970, %v1190
        %v1205 = vmul.f32 %v971, %v1194
        %v1206 = vmul.f32 %v972, %v1198
        %v1207 = vmul.f32 %v973, %v1202
        %v1208 = vadd.f32 %v1184, %v1204
        %v1209 = vadd.f32 %v1185, %v1205
        %v1210 = vadd.f32 %v1186, %v1206
        %v1211 = vadd.f32 %v1187, %v1207
        %1213 = vset.pattern.permute.xlu0 3
        %1214 = vperm.xlu0 %1213, %v615
        %v1215 = vpop.permute.xlu0 %1214
        %1218 = vset.pattern.permute.xlu0 3
        %1219 = vperm.xlu0 %1218, %v616
        %v1220 = vpop.permute.xlu0 %1219
        %1223 = vset.pattern.permute.xlu0 3
        %1224 = vperm.xlu0 %1223, %v617
        %v1225 = vpop.permute.xlu0 %1224
        %1228 = vset.pattern.permute.xlu0 3
        %1229 = vperm.xlu0 %1228, %v618
        %v1230 = vpop.permute.xlu0 %1229
        %v1232 = vmul.f32 %v956, %v1215
        %v1233 = vmul.f32 %v957, %v1220
        %v1234 = vmul.f32 %v958, %v1225
        %v1235 = vmul.f32 %v959, %v1230
        %1236 = vset.pattern.permute.xlu0 4
        %1237 = vperm.xlu0 %1236, %v615
        %v1238 = vpop.permute.xlu0 %1237
        %1240 = vset.pattern.permute.xlu0 4
        %1241 = vperm.xlu0 %1240, %v616
        %v1242 = vpop.permute.xlu0 %1241
        %1244 = vset.pattern.permute.xlu0 4
        %1245 = vperm.xlu0 %1244, %v617
        %v1246 = vpop.permute.xlu0 %1245
        %1248 = vset.pattern.permute.xlu0 4
        %1249 = vperm.xlu0 %1248, %v618
        %v1250 = vpop.permute.xlu0 %1249
        %v1252 = vmul.f32 %v1062, %v1238
        %v1253 = vmul.f32 %v1063, %v1242
        %v1254 = vmul.f32 %v1064, %v1246
        %v1255 = vmul.f32 %v1065, %v1250
        %v1256 = vadd.f32 %v1232, %v1252
        %v1257 = vadd.f32 %v1233, %v1253
        %v1258 = vadd.f32 %v1234, %v1254
        %v1259 = vadd.f32 %v1235, %v1255
        %1260 = vset.pattern.permute.xlu0 2
        %1261 = vperm.xlu0 %1260, %v615
        %v1262 = vpop.permute.xlu0 %1261
        %1264 = vset.pattern.permute.xlu0 2
        %1265 = vperm.xlu0 %1264, %v616
        %v1266 = vpop.permute.xlu0 %1265
        %1268 = vset.pattern.permute.xlu0 2
        %1269 = vperm.xlu0 %1268, %v617
        %v1270 = vpop.permute.xlu0 %1269
        %1272 = vset.pattern.permute.xlu0 2
        %1273 = vperm.xlu0 %1272, %v618
        %v1274 = vpop.permute.xlu0 %1273
        %v1276 = vmul.f32 %v1050, %v1262
        %v1277 = vmul.f32 %v1051, %v1266
        %v1278 = vmul.f32 %v1052, %v1270
        %v1279 = vmul.f32 %v1053, %v1274
        %v1280 = vadd.f32 %v1256, %v1276
        %v1281 = vadd.f32 %v1257, %v1277
        %v1282 = vadd.f32 %v1258, %v1278
        %v1283 = vadd.f32 %v1259, %v1279
        %1284 = vset.pattern.permute.xlu0 5
        %1285 = vperm.xlu0 %1284, %v615
        %v1286 = vpop.permute.xlu0 %1285
        %1288 = vset.pattern.permute.xlu0 5
        %1289 = vperm.xlu0 %1288, %v616
        %v1290 = vpop.permute.xlu0 %1289
        %1292 = vset.pattern.permute.xlu0 5
        %1293 = vperm.xlu0 %1292, %v617
        %v1294 = vpop.permute.xlu0 %1293
        %1296 = vset.pattern.permute.xlu0 5
        %1297 = vperm.xlu0 %1296, %v618
        %v1298 = vpop.permute.xlu0 %1297
        %v1300 = vmul.f32 %v1074, %v1286
        %v1301 = vmul.f32 %v1075, %v1290
        %v1302 = vmul.f32 %v1076, %v1294
        %v1303 = vmul.f32 %v1077, %v1298
        %v1304 = vadd.f32 %v1280, %v1300
        %v1305 = vadd.f32 %v1281, %v1301
        %v1306 = vadd.f32 %v1282, %v1302
        %v1307 = vadd.f32 %v1283, %v1303
        %1308 = vset.pattern.permute.xlu0 1
        %1309 = vperm.xlu0 %1308, %v615
        %v1310 = vpop.permute.xlu0 %1309
        %1312 = vset.pattern.permute.xlu0 1
        %1313 = vperm.xlu0 %1312, %v616
        %v1314 = vpop.permute.xlu0 %1313
        %1316 = vset.pattern.permute.xlu0 1
        %1317 = vperm.xlu0 %1316, %v617
        %v1318 = vpop.permute.xlu0 %1317
        %1320 = vset.pattern.permute.xlu0 1
        %1321 = vperm.xlu0 %1320, %v618
        %v1322 = vpop.permute.xlu0 %1321
        %v1324 = vmul.f32 %v1038, %v1310
        %v1325 = vmul.f32 %v1039, %v1314
        %v1326 = vmul.f32 %v1040, %v1318
        %v1327 = vmul.f32 %v1041, %v1322
        %v1328 = vadd.f32 %v1304, %v1324
        %v1329 = vadd.f32 %v1305, %v1325
        %v1330 = vadd.f32 %v1306, %v1326
        %v1331 = vadd.f32 %v1307, %v1327
        %1332 = vset.pattern.permute.xlu0 6
        %1333 = vperm.xlu0 %1332, %v615
        %v1334 = vpop.permute.xlu0 %1333
        %1336 = vset.pattern.permute.xlu0 6
        %1337 = vperm.xlu0 %1336, %v616
        %v1338 = vpop.permute.xlu0 %1337
        %1340 = vset.pattern.permute.xlu0 6
        %1341 = vperm.xlu0 %1340, %v617
        %v1342 = vpop.permute.xlu0 %1341
        %1344 = vset.pattern.permute.xlu0 6
        %1345 = vperm.xlu0 %1344, %v618
        %v1346 = vpop.permute.xlu0 %1345
        %v1348 = vmul.f32 %v1088, %v1334
        %v1349 = vmul.f32 %v1089, %v1338
        %v1350 = vmul.f32 %v1090, %v1342
        %v1351 = vmul.f32 %v1091, %v1346
        %v1352 = vadd.f32 %v1328, %v1348
        %v1353 = vadd.f32 %v1329, %v1349
        %v1354 = vadd.f32 %v1330, %v1350
        %v1355 = vadd.f32 %v1331, %v1351
        %1356 = vset.pattern.permute.xlu0 0
        %1357 = vperm.xlu0 %1356, %v615
        %v1358 = vpop.permute.xlu0 %1357
        %1360 = vset.pattern.permute.xlu0 0
        %1361 = vperm.xlu0 %1360, %v616
        %v1362 = vpop.permute.xlu0 %1361
        %1364 = vset.pattern.permute.xlu0 0
        %1365 = vperm.xlu0 %1364, %v617
        %v1366 = vpop.permute.xlu0 %1365
        %1368 = vset.pattern.permute.xlu0 0
        %1369 = vperm.xlu0 %1368, %v618
        %v1370 = vpop.permute.xlu0 %1369
        %v1372 = vmul.f32 %v1026, %v1358
        %v1373 = vmul.f32 %v1027, %v1362
        %v1374 = vmul.f32 %v1028, %v1366
        %v1375 = vmul.f32 %v1029, %v1370
        %v1376 = vadd.f32 %v1352, %v1372
        %v1377 = vadd.f32 %v1353, %v1373
        %v1378 = vadd.f32 %v1354, %v1374
        %v1379 = vadd.f32 %v1355, %v1375
        %1381 = vset.pattern.permute.xlu0 3
        %1382 = vperm.xlu0 %1381, %v619
        %v1383 = vpop.permute.xlu0 %1382
        %1386 = vset.pattern.permute.xlu0 3
        %1387 = vperm.xlu0 %1386, %v620
        %v1388 = vpop.permute.xlu0 %1387
        %1391 = vset.pattern.permute.xlu0 3
        %1392 = vperm.xlu0 %1391, %v621
        %v1393 = vpop.permute.xlu0 %1392
        %1396 = vset.pattern.permute.xlu0 3
        %1397 = vperm.xlu0 %1396, %v622
        %v1398 = vpop.permute.xlu0 %1397
        %v1400 = vmul.f32 %v956, %v1383
        %v1401 = vmul.f32 %v957, %v1388
        %v1402 = vmul.f32 %v958, %v1393
        %v1403 = vmul.f32 %v959, %v1398
        %1404 = vset.pattern.permute.xlu0 4
        %1405 = vperm.xlu0 %1404, %v619
        %v1406 = vpop.permute.xlu0 %1405
        %1408 = vset.pattern.permute.xlu0 4
        %1409 = vperm.xlu0 %1408, %v620
        %v1410 = vpop.permute.xlu0 %1409
        %1412 = vset.pattern.permute.xlu0 4
        %1413 = vperm.xlu0 %1412, %v621
        %v1414 = vpop.permute.xlu0 %1413
        %1416 = vset.pattern.permute.xlu0 4
        %1417 = vperm.xlu0 %1416, %v622
        %v1418 = vpop.permute.xlu0 %1417
        %v1420 = vmul.f32 %v1062, %v1406
        %v1421 = vmul.f32 %v1063, %v1410
        %v1422 = vmul.f32 %v1064, %v1414
        %v1423 = vmul.f32 %v1065, %v1418
        %v1424 = vadd.f32 %v1400, %v1420
        %v1425 = vadd.f32 %v1401, %v1421
        %v1426 = vadd.f32 %v1402, %v1422
        %v1427 = vadd.f32 %v1403, %v1423
        %1428 = vset.pattern.permute.xlu0 2
        %1429 = vperm.xlu0 %1428, %v619
        %v1430 = vpop.permute.xlu0 %1429
        %1432 = vset.pattern.permute.xlu0 2
        %1433 = vperm.xlu0 %1432, %v620
        %v1434 = vpop.permute.xlu0 %1433
        %1436 = vset.pattern.permute.xlu0 2
        %1437 = vperm.xlu0 %1436, %v621
        %v1438 = vpop.permute.xlu0 %1437
        %1440 = vset.pattern.permute.xlu0 2
        %1441 = vperm.xlu0 %1440, %v622
        %v1442 = vpop.permute.xlu0 %1441
        %v1444 = vmul.f32 %v1050, %v1430
        %v1445 = vmul.f32 %v1051, %v1434
        %v1446 = vmul.f32 %v1052, %v1438
        %v1447 = vmul.f32 %v1053, %v1442
        %v1448 = vadd.f32 %v1424, %v1444
        %v1449 = vadd.f32 %v1425, %v1445
        %v1450 = vadd.f32 %v1426, %v1446
        %v1451 = vadd.f32 %v1427, %v1447
        %1452 = vset.pattern.permute.xlu0 5
        %1453 = vperm.xlu0 %1452, %v619
        %v1454 = vpop.permute.xlu0 %1453
        %1456 = vset.pattern.permute.xlu0 5
        %1457 = vperm.xlu0 %1456, %v620
        %v1458 = vpop.permute.xlu0 %1457
        %1460 = vset.pattern.permute.xlu0 5
        %1461 = vperm.xlu0 %1460, %v621
        %v1462 = vpop.permute.xlu0 %1461
        %1464 = vset.pattern.permute.xlu0 5
        %1465 = vperm.xlu0 %1464, %v622
        %v1466 = vpop.permute.xlu0 %1465
        %v1468 = vmul.f32 %v1074, %v1454
        %v1469 = vmul.f32 %v1075, %v1458
        %v1470 = vmul.f32 %v1076, %v1462
        %v1471 = vmul.f32 %v1077, %v1466
        %v1472 = vadd.f32 %v1448, %v1468
        %v1473 = vadd.f32 %v1449, %v1469
        %v1474 = vadd.f32 %v1450, %v1470
        %v1475 = vadd.f32 %v1451, %v1471
        %1476 = vset.pattern.permute.xlu0 1
        %1477 = vperm.xlu0 %1476, %v619
        %v1478 = vpop.permute.xlu0 %1477
        %1480 = vset.pattern.permute.xlu0 1
        %1481 = vperm.xlu0 %1480, %v620
        %v1482 = vpop.permute.xlu0 %1481
        %1484 = vset.pattern.permute.xlu0 1
        %1485 = vperm.xlu0 %1484, %v621
        %v1486 = vpop.permute.xlu0 %1485
        %1488 = vset.pattern.permute.xlu0 1
        %1489 = vperm.xlu0 %1488, %v622
        %v1490 = vpop.permute.xlu0 %1489
        %v1492 = vmul.f32 %v1038, %v1478
        %v1493 = vmul.f32 %v1039, %v1482
        %v1494 = vmul.f32 %v1040, %v1486
        %v1495 = vmul.f32 %v1041, %v1490
        %v1496 = vadd.f32 %v1472, %v1492
        %v1497 = vadd.f32 %v1473, %v1493
        %v1498 = vadd.f32 %v1474, %v1494
        %v1499 = vadd.f32 %v1475, %v1495
        %1501 = vset.pattern.permute.xlu0 3
        %1502 = vperm.xlu0 %1501, %v623
        %v1503 = vpop.permute.xlu0 %1502
        %1506 = vset.pattern.permute.xlu0 3
        %1507 = vperm.xlu0 %1506, %v624
        %v1508 = vpop.permute.xlu0 %1507
        %1511 = vset.pattern.permute.xlu0 3
        %1512 = vperm.xlu0 %1511, %v625
        %v1513 = vpop.permute.xlu0 %1512
        %1516 = vset.pattern.permute.xlu0 3
        %1517 = vperm.xlu0 %1516, %v626
        %v1518 = vpop.permute.xlu0 %1517
        %v1520 = vmul.f32 %v956, %v1503
        %v1521 = vmul.f32 %v957, %v1508
        %v1522 = vmul.f32 %v958, %v1513
        %v1523 = vmul.f32 %v959, %v1518
        %1524 = vset.pattern.permute.xlu0 4
        %1525 = vperm.xlu0 %1524, %v623
        %v1526 = vpop.permute.xlu0 %1525
        %1528 = vset.pattern.permute.xlu0 4
        %1529 = vperm.xlu0 %1528, %v624
        %v1530 = vpop.permute.xlu0 %1529
        %1532 = vset.pattern.permute.xlu0 4
        %1533 = vperm.xlu0 %1532, %v625
        %v1534 = vpop.permute.xlu0 %1533
        %1536 = vset.pattern.permute.xlu0 4
        %1537 = vperm.xlu0 %1536, %v626
        %v1538 = vpop.permute.xlu0 %1537
        %v1540 = vmul.f32 %v1062, %v1526
        %v1541 = vmul.f32 %v1063, %v1530
        %v1542 = vmul.f32 %v1064, %v1534
        %v1543 = vmul.f32 %v1065, %v1538
        %v1544 = vadd.f32 %v1520, %v1540
        %v1545 = vadd.f32 %v1521, %v1541
        %v1546 = vadd.f32 %v1522, %v1542
        %v1547 = vadd.f32 %v1523, %v1543
        %1548 = vset.pattern.permute.xlu0 2
        %1549 = vperm.xlu0 %1548, %v623
        %v1550 = vpop.permute.xlu0 %1549
        %1552 = vset.pattern.permute.xlu0 2
        %1553 = vperm.xlu0 %1552, %v624
        %v1554 = vpop.permute.xlu0 %1553
        %1556 = vset.pattern.permute.xlu0 2
        %1557 = vperm.xlu0 %1556, %v625
        %v1558 = vpop.permute.xlu0 %1557
        %1560 = vset.pattern.permute.xlu0 2
        %1561 = vperm.xlu0 %1560, %v626
        %v1562 = vpop.permute.xlu0 %1561
        %v1564 = vmul.f32 %v1050, %v1550
        %v1565 = vmul.f32 %v1051, %v1554
        %v1566 = vmul.f32 %v1052, %v1558
        %v1567 = vmul.f32 %v1053, %v1562
        %v1568 = vadd.f32 %v1544, %v1564
        %v1569 = vadd.f32 %v1545, %v1565
        %v1570 = vadd.f32 %v1546, %v1566
        %v1571 = vadd.f32 %v1547, %v1567
        %1573 = vset.pattern.permute.xlu0 3
        %1574 = vperm.xlu0 %1573, %v627
        %v1575 = vpop.permute.xlu0 %1574
        %1578 = vset.pattern.permute.xlu0 3
        %1579 = vperm.xlu0 %1578, %v628
        %v1580 = vpop.permute.xlu0 %1579
        %1583 = vset.pattern.permute.xlu0 3
        %1584 = vperm.xlu0 %1583, %v629
        %v1585 = vpop.permute.xlu0 %1584
        %1588 = vset.pattern.permute.xlu0 3
        %1589 = vperm.xlu0 %1588, %v630
        %v1590 = vpop.permute.xlu0 %1589
        %v1592 = vmul.f32 %v952, %v1575
        %v1593 = vmul.f32 %v953, %v1580
        %v1594 = vmul.f32 %v954, %v1585
        %v1595 = vmul.f32 %v955, %v1590
        %1596 = vset.pattern.permute.xlu0 4
        %1597 = vperm.xlu0 %1596, %v627
        %v1598 = vpop.permute.xlu0 %1597
        %1600 = vset.pattern.permute.xlu0 4
        %1601 = vperm.xlu0 %1600, %v628
        %v1602 = vpop.permute.xlu0 %1601
        %1604 = vset.pattern.permute.xlu0 4
        %1605 = vperm.xlu0 %1604, %v629
        %v1606 = vpop.permute.xlu0 %1605
        %1608 = vset.pattern.permute.xlu0 4
        %1609 = vperm.xlu0 %1608, %v630
        %v1610 = vpop.permute.xlu0 %1609
        %v1612 = vmul.f32 %v998, %v1598
        %v1613 = vmul.f32 %v999, %v1602
        %v1614 = vmul.f32 %v1000, %v1606
        %v1615 = vmul.f32 %v1001, %v1610
        %v1616 = vadd.f32 %v1592, %v1612
        %v1617 = vadd.f32 %v1593, %v1613
        %v1618 = vadd.f32 %v1594, %v1614
        %v1619 = vadd.f32 %v1595, %v1615
        %1620 = vset.pattern.permute.xlu0 2
        %1621 = vperm.xlu0 %1620, %v627
        %v1622 = vpop.permute.xlu0 %1621
        %1624 = vset.pattern.permute.xlu0 2
        %1625 = vperm.xlu0 %1624, %v628
        %v1626 = vpop.permute.xlu0 %1625
        %1628 = vset.pattern.permute.xlu0 2
        %1629 = vperm.xlu0 %1628, %v629
        %v1630 = vpop.permute.xlu0 %1629
        %1632 = vset.pattern.permute.xlu0 2
        %1633 = vperm.xlu0 %1632, %v630
        %v1634 = vpop.permute.xlu0 %1633
        %v1636 = vmul.f32 %v984, %v1622
        %v1637 = vmul.f32 %v985, %v1626
        %v1638 = vmul.f32 %v986, %v1630
        %v1639 = vmul.f32 %v987, %v1634
        %v1640 = vadd.f32 %v1616, %v1636
        %v1641 = vadd.f32 %v1617, %v1637
        %v1642 = vadd.f32 %v1618, %v1638
        %v1643 = vadd.f32 %v1619, %v1639
        %v1644 = vpack.c.bf16 %v1209, %v1208
        %v1645 = vpack.c.bf16 %v1211, %v1210
        %v1646 = vpack.c.bf16 %v1377, %v1376
        %v1647 = vpack.c.bf16 %v1379, %v1378
        %v1648 = vpack.c.bf16 %v1497, %v1496
        %v1649 = vpack.c.bf16 %v1499, %v1498
        %v1650 = vpack.c.bf16 %v1569, %v1568
        %v1651 = vpack.c.bf16 %v1571, %v1570
        %v1652 = vpack.c.bf16 %v1641, %v1640
        %v1653 = vpack.c.bf16 %v1643, %v1642
        %1655 = vset.pattern.permute.xlu0 0
        %1656 = vperm.xlu0 %1655, %v651
        %v1657 = vpop.permute.xlu0 %1656
        %1660 = vset.pattern.permute.xlu0 0
        %1661 = vperm.xlu0 %1660, %v652
        %v1662 = vpop.permute.xlu0 %1661
        %1665 = vset.pattern.permute.xlu0 0
        %1666 = vperm.xlu0 %1665, %v653
        %v1667 = vpop.permute.xlu0 %1666
        %1670 = vset.pattern.permute.xlu0 0
        %1671 = vperm.xlu0 %1670, %v654
        %v1672 = vpop.permute.xlu0 %1671
        %1675 = vset.pattern.permute.xlu0 0
        %1676 = vperm.xlu0 %1675, %v655
        %v1677 = vpop.permute.xlu0 %1676
        %1680 = vset.pattern.permute.xlu0 0
        %1681 = vperm.xlu0 %1680, %v656
        %v1682 = vpop.permute.xlu0 %1681
        %1685 = vset.pattern.permute.xlu0 0
        %1686 = vperm.xlu0 %1685, %v657
        %v1687 = vpop.permute.xlu0 %1686
        %1690 = vset.pattern.permute.xlu0 0
        %1691 = vperm.xlu0 %1690, %v658
        %v1692 = vpop.permute.xlu0 %1691
        %1695 = vset.pattern.permute.xlu0 0
        %1696 = vperm.xlu0 %1695, %v659
        %v1697 = vpop.permute.xlu0 %1696
        %1700 = vset.pattern.permute.xlu0 0
        %1701 = vperm.xlu0 %1700, %v660
        %v1702 = vpop.permute.xlu0 %1701
        %1705 = vset.pattern.permute.xlu0 0
        %1706 = vperm.xlu0 %1705, %v661
        %v1707 = vpop.permute.xlu0 %1706
        %1710 = vset.pattern.permute.xlu0 0
        %1711 = vperm.xlu0 %1710, %v662
        %v1712 = vpop.permute.xlu0 %1711
        %1715 = vset.pattern.permute.xlu0 0
        %1716 = vperm.xlu0 %1715, %v663
        %v1717 = vpop.permute.xlu0 %1716
        %1720 = vset.pattern.permute.xlu0 0
        %1721 = vperm.xlu0 %1720, %v664
        %v1722 = vpop.permute.xlu0 %1721
        %1725 = vset.pattern.permute.xlu0 0
        %1726 = vperm.xlu0 %1725, %v665
        %v1727 = vpop.permute.xlu0 %1726
        %1730 = vset.pattern.permute.xlu0 0
        %1731 = vperm.xlu0 %1730, %v666
        %v1732 = vpop.permute.xlu0 %1731
        %1735 = vset.pattern.permute.xlu0 0
        %1736 = vperm.xlu0 %1735, %v667
        %v1737 = vpop.permute.xlu0 %1736
        %1740 = vset.pattern.permute.xlu0 0
        %1741 = vperm.xlu0 %1740, %v668
        %v1742 = vpop.permute.xlu0 %1741
        %1745 = vset.pattern.permute.xlu0 0
        %1746 = vperm.xlu0 %1745, %v669
        %v1747 = vpop.permute.xlu0 %1746
        %1750 = vset.pattern.permute.xlu0 0
        %1751 = vperm.xlu0 %1750, %v670
        %v1752 = vpop.permute.xlu0 %1751
        %v1774 = vunpack.c.l.b16 %v631
        %v1775 = vunpack.c.h.b16 %v631
        %v1776 = vunpack.c.l.b16 %v632
        %v1777 = vunpack.c.h.b16 %v632
        %v1778 = vunpack.c.l.b16 %v633
        %v1779 = vunpack.c.h.b16 %v633
        %v1780 = vunpack.c.l.b16 %v634
        %v1781 = vunpack.c.h.b16 %v634
        %v1782 = vunpack.c.l.b16 %v635
        %v1783 = vunpack.c.h.b16 %v635
        %v1784 = vunpack.c.l.b16 %v636
        %v1785 = vunpack.c.h.b16 %v636
        %v1786 = vunpack.c.l.b16 %v637
        %v1787 = vunpack.c.h.b16 %v637
        %v1788 = vunpack.c.l.b16 %v638
        %v1789 = vunpack.c.h.b16 %v638
        %v1790 = vunpack.c.l.b16 %v639
        %v1791 = vunpack.c.h.b16 %v639
        %v1792 = vunpack.c.l.b16 %v640
        %v1793 = vunpack.c.h.b16 %v640
        %v1794 = vunpack.c.l.b16 %v641
        %v1795 = vunpack.c.h.b16 %v641
        %v1796 = vunpack.c.l.b16 %v642
        %v1797 = vunpack.c.h.b16 %v642
        %v1798 = vunpack.c.l.b16 %v643
        %v1799 = vunpack.c.h.b16 %v643
        %v1800 = vunpack.c.l.b16 %v644
        %v1801 = vunpack.c.h.b16 %v644
        %v1802 = vunpack.c.l.b16 %v645
        %v1803 = vunpack.c.h.b16 %v645
        %v1804 = vunpack.c.l.b16 %v646
        %v1805 = vunpack.c.h.b16 %v646
        %v1806 = vunpack.c.l.b16 %v647
        %v1807 = vunpack.c.h.b16 %v647
        %v1808 = vunpack.c.l.b16 %v648
        %v1809 = vunpack.c.h.b16 %v648
        %v1810 = vunpack.c.l.b16 %v649
        %v1811 = vunpack.c.h.b16 %v649
        %v1812 = vunpack.c.l.b16 %v650
        %v1813 = vunpack.c.h.b16 %v650
        %v1814 = vpack.c.b16 %v1776, %v1774
        %v1815 = vpack.c.b16 %v1777, %v1775
        %v1816 = vpack.c.b16 %v1780, %v1778
        %v1817 = vpack.c.b16 %v1781, %v1779
        %v1818 = vpack.c.b16 %v1784, %v1782
        %v1819 = vpack.c.b16 %v1785, %v1783
        %v1820 = vpack.c.b16 %v1788, %v1786
        %v1821 = vpack.c.b16 %v1789, %v1787
        %v1822 = vpack.c.b16 %v1792, %v1790
        %v1823 = vpack.c.b16 %v1793, %v1791
        %v1824 = vpack.c.b16 %v1796, %v1794
        %v1825 = vpack.c.b16 %v1797, %v1795
        %v1826 = vpack.c.b16 %v1800, %v1798
        %v1827 = vpack.c.b16 %v1801, %v1799
        %v1828 = vpack.c.b16 %v1804, %v1802
        %v1829 = vpack.c.b16 %v1805, %v1803
        %v1830 = vpack.c.b16 %v1808, %v1806
        %v1831 = vpack.c.b16 %v1809, %v1807
        %v1832 = vpack.c.b16 %v1812, %v1810
        %v1833 = vpack.c.b16 %v1813, %v1811
        %vm1844 = vcmask 261120
        %v1846 = vsel %vm1844, %v1815, 0
        %v1849 = vsel %vm1844, %v1817, 0
        %v1852 = vsel %vm1844, %v1819, 0
        %v1855 = vsel %vm1844, %v1821, 0
        %v1858 = vsel %vm1844, %v1823, 0
        %v1861 = vsel %vm1844, %v1825, 0
        %v1864 = vsel %vm1844, %v1827, 0
        %v1867 = vsel %vm1844, %v1829, 0
        %v1870 = vsel %vm1844, %v1831, 0
        %v1873 = vsel %vm1844, %v1833, 0
        %1875 = vmatprep.subr.bf16.mxu0 0
        %1876 = vmatpush1.bf16.msra.mxu0 %v1644
        %1877 = vmatprep.subr.bf16.mxu0 0
        %1878 = vmatpush1.bf16.msra.mxu0 %v1645
        %1879 = vmatprep.subr.bf16.mxu0 0
        %1880 = vmatpush1.bf16.msra.mxu0 %v1646
        %1881 = vmatprep.subr.bf16.mxu0 0
        %1882 = vmatpush1.bf16.msra.mxu0 %v1647
        %1883 = vmatprep.subr.bf16.mxu0 0
        %1884 = vmatpush1.bf16.msra.mxu0 %v1648
        %1885 = vmatprep.subr.bf16.mxu0 0
        %1886 = vmatpush1.bf16.msra.mxu0 %v1649
        %1887 = vmatprep.subr.bf16.mxu0 0
        %1888 = vmatpush1.bf16.msra.mxu0 %v1650
        %1889 = vmatprep.subr.bf16.mxu0 0
        %1890 = vmatpush1.bf16.msra.mxu0 %v1651
        %1891 = vmatprep.subr.bf16.mxu0 0
        %1892 = vmatpush1.bf16.msra.mxu0 %v1652
        %1893 = vmatprep.subr.bf16.mxu0 0
        %1894 = vmatpush1.bf16.msra.mxu0 %v1653
        %1895 = vmatprep.subr.bf16.mxu0 0
        %1896 = vmatpush1.bf16.msra.mxu0 0
        %1897 = vmatprep.subr.bf16.mxu0 0
        %1898 = vmatpush1.bf16.msra.mxu0 0
        %1899 = vmatprep.subr.bf16.mxu0 0
        %1900 = vmatpush1.bf16.msra.mxu0 0
        %1901 = vmatprep.subr.bf16.mxu0 0
        %1902 = vmatpush1.bf16.msra.mxu0 0
        %1903 = vmatprep.subr.bf16.mxu0 0
        %1904 = vmatpush1.bf16.msra.mxu0 0
        %1905 = vmatprep.subr.bf16.mxu0 0
        %1906 = vmatpush1.bf16.msra.mxu0 0
        %1907 = vmatprep.mubr.bf16.mxu0 %v1846
        %1908 = vmatmul.mubr.bf16.gmra.mrb[0].mxu0 %v1814
        %v1909 = vpop.f32.mrb[0].mxu0
        %v1910 = vadd.f32 %v1657, %v1909
        %v1911 = vpop.f32.mrb[0].mxu0
        %v1912 = vpop.f32.mrb[0].mxu0
        %v1913 = vadd.f32 %v1662, %v1912
        %v1914 = vpop.f32.mrb[0].mxu0
        %1915 = vmatprep.mubr.bf16.mxu0 %v1849
        %1916 = vmatmul.mubr.bf16.gmra.mrb[0].mxu0 %v1816
        %v1917 = vpop.f32.mrb[0].mxu0
        %v1918 = vadd.f32 %v1667, %v1917
        %v1919 = vpop.f32.mrb[0].mxu0
        %v1920 = vpop.f32.mrb[0].mxu0
        %v1921 = vadd.f32 %v1672, %v1920
        %v1922 = vpop.f32.mrb[0].mxu0
        %1923 = vmatprep.mubr.bf16.mxu0 %v1852
        %1924 = vmatmul.mubr.bf16.gmra.mrb[0].mxu0 %v1818
        %v1925 = vpop.f32.mrb[0].mxu0
        %v1926 = vadd.f32 %v1677, %v1925
        %v1927 = vpop.f32.mrb[0].mxu0
        %v1928 = vpop.f32.mrb[0].mxu0
        %v1929 = vadd.f32 %v1682, %v1928
        %v1930 = vpop.f32.mrb[0].mxu0
        %1931 = vmatprep.mubr.bf16.mxu0 %v1855
        %1932 = vmatmul.mubr.bf16.gmra.mrb[0].mxu0 %v1820
        %v1933 = vpop.f32.mrb[0].mxu0
        %v1934 = vadd.f32 %v1687, %v1933
        %v1935 = vpop.f32.mrb[0].mxu0
        %v1936 = vpop.f32.mrb[0].mxu0
        %v1937 = vadd.f32 %v1692, %v1936
        %v1938 = vpop.f32.mrb[0].mxu0
        %1939 = vmatprep.mubr.bf16.mxu0 %v1858
        %1940 = vmatmul.mubr.bf16.gmra.mrb[0].mxu0 %v1822
        %v1941 = vpop.f32.mrb[0].mxu0
        %v1942 = vadd.f32 %v1697, %v1941
        %v1943 = vpop.f32.mrb[0].mxu0
        %v1944 = vpop.f32.mrb[0].mxu0
        %v1945 = vadd.f32 %v1702, %v1944
        %v1946 = vpop.f32.mrb[0].mxu0
        %1947 = vmatprep.mubr.bf16.mxu0 %v1861
        %1948 = vmatmul.mubr.bf16.gmra.mrb[0].mxu0 %v1824
        %v1949 = vpop.f32.mrb[0].mxu0
        %v1950 = vadd.f32 %v1707, %v1949
        %v1951 = vpop.f32.mrb[0].mxu0
        %v1952 = vpop.f32.mrb[0].mxu0
        %v1953 = vadd.f32 %v1712, %v1952
        %v1954 = vpop.f32.mrb[0].mxu0
        %1955 = vmatprep.mubr.bf16.mxu0 %v1864
        %1956 = vmatmul.mubr.bf16.gmra.mrb[0].mxu0 %v1826
        %v1957 = vpop.f32.mrb[0].mxu0
        %v1958 = vadd.f32 %v1717, %v1957
        %v1959 = vpop.f32.mrb[0].mxu0
        %v1960 = vpop.f32.mrb[0].mxu0
        %v1961 = vadd.f32 %v1722, %v1960
        %v1962 = vpop.f32.mrb[0].mxu0
        %1963 = vmatprep.mubr.bf16.mxu0 %v1867
        %1964 = vmatmul.mubr.bf16.gmra.mrb[0].mxu0 %v1828
        %v1965 = vpop.f32.mrb[0].mxu0
        %v1966 = vadd.f32 %v1727, %v1965
        %v1967 = vpop.f32.mrb[0].mxu0
        %v1968 = vpop.f32.mrb[0].mxu0
        %v1969 = vadd.f32 %v1732, %v1968
        %v1970 = vpop.f32.mrb[0].mxu0
        %1971 = vmatprep.mubr.bf16.mxu0 %v1870
        %1972 = vmatmul.mubr.bf16.gmra.mrb[0].mxu0 %v1830
        %v1973 = vpop.f32.mrb[0].mxu0
        %v1974 = vadd.f32 %v1737, %v1973
        %v1975 = vpop.f32.mrb[0].mxu0
        %v1976 = vpop.f32.mrb[0].mxu0
        %v1977 = vadd.f32 %v1742, %v1976
        %v1978 = vpop.f32.mrb[0].mxu0
        %1979 = vmatprep.mubr.bf16.mxu0 %v1873
        %1980 = vmatmul.mubr.bf16.gmra.mrb[0].mxu0 %v1832
        %v1981 = vpop.f32.mrb[0].mxu0
        %v1982 = vadd.f32 %v1747, %v1981
        %v1983 = vpop.f32.mrb[0].mxu0
        %v1984 = vpop.f32.mrb[0].mxu0
        %v1985 = vadd.f32 %v1752, %v1984
        %v1986 = vpop.f32.mrb[0].mxu0
        %1987 = vdwg.mxu0
        %v1988 = vmax.f32 %v1910, 0.0
        %v1989 = vmax.f32 %v1913, 0.0
        %v1990 = vmax.f32 %v1918, 0.0
        %v1991 = vmax.f32 %v1921, 0.0
        %v1992 = vmax.f32 %v1926, 0.0
        %v1993 = vmax.f32 %v1929, 0.0
        %v1994 = vmax.f32 %v1934, 0.0
        %v1995 = vmax.f32 %v1937, 0.0
        %v1996 = vmax.f32 %v1942, 0.0
        %v1997 = vmax.f32 %v1945, 0.0
        %v1998 = vmax.f32 %v1950, 0.0
        %v1999 = vmax.f32 %v1953, 0.0
        %v2000 = vmax.f32 %v1958, 0.0
        %v2001 = vmax.f32 %v1961, 0.0
        %v2002 = vmax.f32 %v1966, 0.0
        %v2003 = vmax.f32 %v1969, 0.0
        %v2004 = vmax.f32 %v1974, 0.0
        %v2005 = vmax.f32 %v1977, 0.0
        %v2006 = vmax.f32 %v1982, 0.0
        %v2007 = vmax.f32 %v1985, 0.0
        %2009 = vset.pattern.permute.xlu0 3
        %2010 = vperm.xlu0 %2009, %v671
        %v2011 = vpop.permute.xlu0 %2010
        %2014 = vset.pattern.permute.xlu0 3
        %2015 = vperm.xlu0 %2014, %v672
        %v2016 = vpop.permute.xlu0 %2015
        %2019 = vset.pattern.permute.xlu0 3
        %2020 = vperm.xlu0 %2019, %v673
        %v2021 = vpop.permute.xlu0 %2020
        %2024 = vset.pattern.permute.xlu0 3
        %2025 = vperm.xlu0 %2024, %v674
        %v2026 = vpop.permute.xlu0 %2025
        %v2028 = vmul.f32 %v1988, %v2011
        %v2029 = vmul.f32 %v1989, %v2016
        %v2030 = vmul.f32 %v1990, %v2021
        %v2031 = vmul.f32 %v1991, %v2026
        %2032 = vrot.lane.b32.xlu0 %v1988, 127
        %v2033 = vpop.permute.xlu0 %2032
        %2034 = vrot.lane.b32.xlu0 %v1989, 127
        %v2035 = vpop.permute.xlu0 %2034
        %2036 = vrot.lane.b32.xlu0 %v1990, 127
        %v2037 = vpop.permute.xlu0 %2036
        %2038 = vrot.lane.b32.xlu0 %v1991, 127
        %v2039 = vpop.permute.xlu0 %2038
        %v2040 = vsel %vm997, %v2033, 0.0
        %v2041 = vsel %vm997, %v2035, 0.0
        %v2042 = vsel %vm997, %v2037, 0.0
        %v2043 = vsel %vm997, %v2039, 0.0
        %2044 = vset.pattern.permute.xlu0 4
        %2045 = vperm.xlu0 %2044, %v671
        %v2046 = vpop.permute.xlu0 %2045
        %2048 = vset.pattern.permute.xlu0 4
        %2049 = vperm.xlu0 %2048, %v672
        %v2050 = vpop.permute.xlu0 %2049
        %2052 = vset.pattern.permute.xlu0 4
        %2053 = vperm.xlu0 %2052, %v673
        %v2054 = vpop.permute.xlu0 %2053
        %2056 = vset.pattern.permute.xlu0 4
        %2057 = vperm.xlu0 %2056, %v674
        %v2058 = vpop.permute.xlu0 %2057
        %v2060 = vmul.f32 %v2040, %v2046
        %v2061 = vmul.f32 %v2041, %v2050
        %v2062 = vmul.f32 %v2042, %v2054
        %v2063 = vmul.f32 %v2043, %v2058
        %v2064 = vadd.f32 %v2028, %v2060
        %v2065 = vadd.f32 %v2029, %v2061
        %v2066 = vadd.f32 %v2030, %v2062
        %v2067 = vadd.f32 %v2031, %v2063
        %2068 = vrot.lane.b32.xlu0 %v1988, 1
        %v2069 = vpop.permute.xlu0 %2068
        %2070 = vrot.lane.b32.xlu0 %v1989, 1
        %v2071 = vpop.permute.xlu0 %2070
        %2072 = vrot.lane.b32.xlu0 %v1990, 1
        %v2073 = vpop.permute.xlu0 %2072
        %2074 = vrot.lane.b32.xlu0 %v1991, 1
        %v2075 = vpop.permute.xlu0 %2074
        %v2076 = vsel %vm983, %v2069, 0.0
        %v2077 = vsel %vm983, %v2071, 0.0
        %v2078 = vsel %vm983, %v2073, 0.0
        %v2079 = vsel %vm983, %v2075, 0.0
        %2080 = vset.pattern.permute.xlu0 2
        %2081 = vperm.xlu0 %2080, %v671
        %v2082 = vpop.permute.xlu0 %2081
        %2084 = vset.pattern.permute.xlu0 2
        %2085 = vperm.xlu0 %2084, %v672
        %v2086 = vpop.permute.xlu0 %2085
        %2088 = vset.pattern.permute.xlu0 2
        %2089 = vperm.xlu0 %2088, %v673
        %v2090 = vpop.permute.xlu0 %2089
        %2092 = vset.pattern.permute.xlu0 2
        %2093 = vperm.xlu0 %2092, %v674
        %v2094 = vpop.permute.xlu0 %2093
        %v2096 = vmul.f32 %v2076, %v2082
        %v2097 = vmul.f32 %v2077, %v2086
        %v2098 = vmul.f32 %v2078, %v2090
        %v2099 = vmul.f32 %v2079, %v2094
        %v2100 = vadd.f32 %v2064, %v2096
        %v2101 = vadd.f32 %v2065, %v2097
        %v2102 = vadd.f32 %v2066, %v2098
        %v2103 = vadd.f32 %v2067, %v2099
        %2104 = vrot.lane.b32.xlu0 %v1988, 126
        %v2105 = vpop.permute.xlu0 %2104
        %2106 = vrot.lane.b32.xlu0 %v1989, 126
        %v2107 = vpop.permute.xlu0 %2106
        %2108 = vrot.lane.b32.xlu0 %v1990, 126
        %v2109 = vpop.permute.xlu0 %2108
        %2110 = vrot.lane.b32.xlu0 %v1991, 126
        %v2111 = vpop.permute.xlu0 %2110
        %v2112 = vsel %vm1011, %v2105, 0.0
        %v2113 = vsel %vm1011, %v2107, 0.0
        %v2114 = vsel %vm1011, %v2109, 0.0
        %v2115 = vsel %vm1011, %v2111, 0.0
        %2116 = vset.pattern.permute.xlu0 5
        %2117 = vperm.xlu0 %2116, %v671
        %v2118 = vpop.permute.xlu0 %2117
        %2120 = vset.pattern.permute.xlu0 5
        %2121 = vperm.xlu0 %2120, %v672
        %v2122 = vpop.permute.xlu0 %2121
        %2124 = vset.pattern.permute.xlu0 5
        %2125 = vperm.xlu0 %2124, %v673
        %v2126 = vpop.permute.xlu0 %2125
        %2128 = vset.pattern.permute.xlu0 5
        %2129 = vperm.xlu0 %2128, %v674
        %v2130 = vpop.permute.xlu0 %2129
        %v2132 = vmul.f32 %v2112, %v2118
        %v2133 = vmul.f32 %v2113, %v2122
        %v2134 = vmul.f32 %v2114, %v2126
        %v2135 = vmul.f32 %v2115, %v2130
        %v2136 = vadd.f32 %v2100, %v2132
        %v2137 = vadd.f32 %v2101, %v2133
        %v2138 = vadd.f32 %v2102, %v2134
        %v2139 = vadd.f32 %v2103, %v2135
        %2140 = vrot.lane.b32.xlu0 %v1988, 2
        %v2141 = vpop.permute.xlu0 %2140
        %2142 = vrot.lane.b32.xlu0 %v1989, 2
        %v2143 = vpop.permute.xlu0 %2142
        %2144 = vrot.lane.b32.xlu0 %v1990, 2
        %v2145 = vpop.permute.xlu0 %2144
        %2146 = vrot.lane.b32.xlu0 %v1991, 2
        %v2147 = vpop.permute.xlu0 %2146
        %v2148 = vsel %vm969, %v2141, 0.0
        %v2149 = vsel %vm969, %v2143, 0.0
        %v2150 = vsel %vm969, %v2145, 0.0
        %v2151 = vsel %vm969, %v2147, 0.0
        %2152 = vset.pattern.permute.xlu0 1
        %2153 = vperm.xlu0 %2152, %v671
        %v2154 = vpop.permute.xlu0 %2153
        %2156 = vset.pattern.permute.xlu0 1
        %2157 = vperm.xlu0 %2156, %v672
        %v2158 = vpop.permute.xlu0 %2157
        %2160 = vset.pattern.permute.xlu0 1
        %2161 = vperm.xlu0 %2160, %v673
        %v2162 = vpop.permute.xlu0 %2161
        %2164 = vset.pattern.permute.xlu0 1
        %2165 = vperm.xlu0 %2164, %v674
        %v2166 = vpop.permute.xlu0 %2165
        %v2168 = vmul.f32 %v2148, %v2154
        %v2169 = vmul.f32 %v2149, %v2158
        %v2170 = vmul.f32 %v2150, %v2162
        %v2171 = vmul.f32 %v2151, %v2166
        %v2172 = vadd.f32 %v2136, %v2168
        %v2173 = vadd.f32 %v2137, %v2169
        %v2174 = vadd.f32 %v2138, %v2170
        %v2175 = vadd.f32 %v2139, %v2171
        %2177 = vset.pattern.permute.xlu0 3
        %2178 = vperm.xlu0 %2177, %v675
        %v2179 = vpop.permute.xlu0 %2178
        %2182 = vset.pattern.permute.xlu0 3
        %2183 = vperm.xlu0 %2182, %v676
        %v2184 = vpop.permute.xlu0 %2183
        %2187 = vset.pattern.permute.xlu0 3
        %2188 = vperm.xlu0 %2187, %v677
        %v2189 = vpop.permute.xlu0 %2188
        %2192 = vset.pattern.permute.xlu0 3
        %2193 = vperm.xlu0 %2192, %v678
        %v2194 = vpop.permute.xlu0 %2193
        %v2196 = vmul.f32 %v1992, %v2179
        %v2197 = vmul.f32 %v1993, %v2184
        %v2198 = vmul.f32 %v1994, %v2189
        %v2199 = vmul.f32 %v1995, %v2194
        %2200 = vrot.lane.b32.xlu0 %v1992, 127
        %v2201 = vpop.permute.xlu0 %2200
        %2202 = vrot.lane.b32.xlu0 %v1993, 127
        %v2203 = vpop.permute.xlu0 %2202
        %2204 = vrot.lane.b32.xlu0 %v1994, 127
        %v2205 = vpop.permute.xlu0 %2204
        %2206 = vrot.lane.b32.xlu0 %v1995, 127
        %v2207 = vpop.permute.xlu0 %2206
        %v2208 = vsel %vm997, %v2201, 0.0
        %v2209 = vsel %vm997, %v2203, 0.0
        %v2210 = vsel %vm997, %v2205, 0.0
        %v2211 = vsel %vm997, %v2207, 0.0
        %2212 = vset.pattern.permute.xlu0 4
        %2213 = vperm.xlu0 %2212, %v675
        %v2214 = vpop.permute.xlu0 %2213
        %2216 = vset.pattern.permute.xlu0 4
        %2217 = vperm.xlu0 %2216, %v676
        %v2218 = vpop.permute.xlu0 %2217
        %2220 = vset.pattern.permute.xlu0 4
        %2221 = vperm.xlu0 %2220, %v677
        %v2222 = vpop.permute.xlu0 %2221
        %2224 = vset.pattern.permute.xlu0 4
        %2225 = vperm.xlu0 %2224, %v678
        %v2226 = vpop.permute.xlu0 %2225
        %v2228 = vmul.f32 %v2208, %v2214
        %v2229 = vmul.f32 %v2209, %v2218
        %v2230 = vmul.f32 %v2210, %v2222
        %v2231 = vmul.f32 %v2211, %v2226
        %v2232 = vadd.f32 %v2196, %v2228
        %v2233 = vadd.f32 %v2197, %v2229
        %v2234 = vadd.f32 %v2198, %v2230
        %v2235 = vadd.f32 %v2199, %v2231
        %2236 = vrot.lane.b32.xlu0 %v1992, 1
        %v2237 = vpop.permute.xlu0 %2236
        %2238 = vrot.lane.b32.xlu0 %v1993, 1
        %v2239 = vpop.permute.xlu0 %2238
        %2240 = vrot.lane.b32.xlu0 %v1994, 1
        %v2241 = vpop.permute.xlu0 %2240
        %2242 = vrot.lane.b32.xlu0 %v1995, 1
        %v2243 = vpop.permute.xlu0 %2242
        %v2244 = vsel %vm983, %v2237, 0.0
        %v2245 = vsel %vm983, %v2239, 0.0
        %v2246 = vsel %vm983, %v2241, 0.0
        %v2247 = vsel %vm983, %v2243, 0.0
        %2248 = vset.pattern.permute.xlu0 2
        %2249 = vperm.xlu0 %2248, %v675
        %v2250 = vpop.permute.xlu0 %2249
        %2252 = vset.pattern.permute.xlu0 2
        %2253 = vperm.xlu0 %2252, %v676
        %v2254 = vpop.permute.xlu0 %2253
        %2256 = vset.pattern.permute.xlu0 2
        %2257 = vperm.xlu0 %2256, %v677
        %v2258 = vpop.permute.xlu0 %2257
        %2260 = vset.pattern.permute.xlu0 2
        %2261 = vperm.xlu0 %2260, %v678
        %v2262 = vpop.permute.xlu0 %2261
        %v2264 = vmul.f32 %v2244, %v2250
        %v2265 = vmul.f32 %v2245, %v2254
        %v2266 = vmul.f32 %v2246, %v2258
        %v2267 = vmul.f32 %v2247, %v2262
        %v2268 = vadd.f32 %v2232, %v2264
        %v2269 = vadd.f32 %v2233, %v2265
        %v2270 = vadd.f32 %v2234, %v2266
        %v2271 = vadd.f32 %v2235, %v2267
        %2272 = vrot.lane.b32.xlu0 %v1992, 126
        %v2273 = vpop.permute.xlu0 %2272
        %2274 = vrot.lane.b32.xlu0 %v1993, 126
        %v2275 = vpop.permute.xlu0 %2274
        %2276 = vrot.lane.b32.xlu0 %v1994, 126
        %v2277 = vpop.permute.xlu0 %2276
        %2278 = vrot.lane.b32.xlu0 %v1995, 126
        %v2279 = vpop.permute.xlu0 %2278
        %v2280 = vsel %vm1011, %v2273, 0.0
        %v2281 = vsel %vm1011, %v2275, 0.0
        %v2282 = vsel %vm1011, %v2277, 0.0
        %v2283 = vsel %vm1011, %v2279, 0.0
        %2284 = vset.pattern.permute.xlu0 5
        %2285 = vperm.xlu0 %2284, %v675
        %v2286 = vpop.permute.xlu0 %2285
        %2288 = vset.pattern.permute.xlu0 5
        %2289 = vperm.xlu0 %2288, %v676
        %v2290 = vpop.permute.xlu0 %2289
        %2292 = vset.pattern.permute.xlu0 5
        %2293 = vperm.xlu0 %2292, %v677
        %v2294 = vpop.permute.xlu0 %2293
        %2296 = vset.pattern.permute.xlu0 5
        %2297 = vperm.xlu0 %2296, %v678
        %v2298 = vpop.permute.xlu0 %2297
        %v2300 = vmul.f32 %v2280, %v2286
        %v2301 = vmul.f32 %v2281, %v2290
        %v2302 = vmul.f32 %v2282, %v2294
        %v2303 = vmul.f32 %v2283, %v2298
        %v2304 = vadd.f32 %v2268, %v2300
        %v2305 = vadd.f32 %v2269, %v2301
        %v2306 = vadd.f32 %v2270, %v2302
        %v2307 = vadd.f32 %v2271, %v2303
        %2308 = vrot.lane.b32.xlu0 %v1992, 2
        %v2309 = vpop.permute.xlu0 %2308
        %2310 = vrot.lane.b32.xlu0 %v1993, 2
        %v2311 = vpop.permute.xlu0 %2310
        %2312 = vrot.lane.b32.xlu0 %v1994, 2
        %v2313 = vpop.permute.xlu0 %2312
        %2314 = vrot.lane.b32.xlu0 %v1995, 2
        %v2315 = vpop.permute.xlu0 %2314
        %v2316 = vsel %vm969, %v2309, 0.0
        %v2317 = vsel %vm969, %v2311, 0.0
        %v2318 = vsel %vm969, %v2313, 0.0
        %v2319 = vsel %vm969, %v2315, 0.0
        %2320 = vset.pattern.permute.xlu0 1
        %2321 = vperm.xlu0 %2320, %v675
        %v2322 = vpop.permute.xlu0 %2321
        %2324 = vset.pattern.permute.xlu0 1
        %2325 = vperm.xlu0 %2324, %v676
        %v2326 = vpop.permute.xlu0 %2325
        %2328 = vset.pattern.permute.xlu0 1
        %2329 = vperm.xlu0 %2328, %v677
        %v2330 = vpop.permute.xlu0 %2329
        %2332 = vset.pattern.permute.xlu0 1
        %2333 = vperm.xlu0 %2332, %v678
        %v2334 = vpop.permute.xlu0 %2333
        %v2336 = vmul.f32 %v2316, %v2322
        %v2337 = vmul.f32 %v2317, %v2326
        %v2338 = vmul.f32 %v2318, %v2330
        %v2339 = vmul.f32 %v2319, %v2334
        %v2340 = vadd.f32 %v2304, %v2336
        %v2341 = vadd.f32 %v2305, %v2337
        %v2342 = vadd.f32 %v2306, %v2338
        %v2343 = vadd.f32 %v2307, %v2339
        %2344 = vrot.lane.b32.xlu0 %v1992, 125
        %v2345 = vpop.permute.xlu0 %2344
        %2346 = vrot.lane.b32.xlu0 %v1993, 125
        %v2347 = vpop.permute.xlu0 %2346
        %2348 = vrot.lane.b32.xlu0 %v1994, 125
        %v2349 = vpop.permute.xlu0 %2348
        %2350 = vrot.lane.b32.xlu0 %v1995, 125
        %v2351 = vpop.permute.xlu0 %2350
        %v2352 = vsel %vm1087, %v2345, 0.0
        %v2353 = vsel %vm1087, %v2347, 0.0
        %v2354 = vsel %vm1087, %v2349, 0.0
        %v2355 = vsel %vm1087, %v2351, 0.0
        %2356 = vset.pattern.permute.xlu0 6
        %2357 = vperm.xlu0 %2356, %v675
        %v2358 = vpop.permute.xlu0 %2357
        %2360 = vset.pattern.permute.xlu0 6
        %2361 = vperm.xlu0 %2360, %v676
        %v2362 = vpop.permute.xlu0 %2361
        %2364 = vset.pattern.permute.xlu0 6
        %2365 = vperm.xlu0 %2364, %v677
        %v2366 = vpop.permute.xlu0 %2365
        %2368 = vset.pattern.permute.xlu0 6
        %2369 = vperm.xlu0 %2368, %v678
        %v2370 = vpop.permute.xlu0 %2369
        %v2372 = vmul.f32 %v2352, %v2358
        %v2373 = vmul.f32 %v2353, %v2362
        %v2374 = vmul.f32 %v2354, %v2366
        %v2375 = vmul.f32 %v2355, %v2370
        %v2376 = vadd.f32 %v2340, %v2372
        %v2377 = vadd.f32 %v2341, %v2373
        %v2378 = vadd.f32 %v2342, %v2374
        %v2379 = vadd.f32 %v2343, %v2375
        %2380 = vrot.lane.b32.xlu0 %v1992, 3
        %v2381 = vpop.permute.xlu0 %2380
        %2382 = vrot.lane.b32.xlu0 %v1993, 3
        %v2383 = vpop.permute.xlu0 %2382
        %2384 = vrot.lane.b32.xlu0 %v1994, 3
        %v2385 = vpop.permute.xlu0 %2384
        %2386 = vrot.lane.b32.xlu0 %v1995, 3
        %v2387 = vpop.permute.xlu0 %2386
        %v2388 = vsel %vm1025, %v2381, 0.0
        %v2389 = vsel %vm1025, %v2383, 0.0
        %v2390 = vsel %vm1025, %v2385, 0.0
        %v2391 = vsel %vm1025, %v2387, 0.0
        %2392 = vset.pattern.permute.xlu0 0
        %2393 = vperm.xlu0 %2392, %v675
        %v2394 = vpop.permute.xlu0 %2393
        %2396 = vset.pattern.permute.xlu0 0
        %2397 = vperm.xlu0 %2396, %v676
        %v2398 = vpop.permute.xlu0 %2397
        %2400 = vset.pattern.permute.xlu0 0
        %2401 = vperm.xlu0 %2400, %v677
        %v2402 = vpop.permute.xlu0 %2401
        %2404 = vset.pattern.permute.xlu0 0
        %2405 = vperm.xlu0 %2404, %v678
        %v2406 = vpop.permute.xlu0 %2405
        %v2408 = vmul.f32 %v2388, %v2394
        %v2409 = vmul.f32 %v2389, %v2398
        %v2410 = vmul.f32 %v2390, %v2402
        %v2411 = vmul.f32 %v2391, %v2406
        %v2412 = vadd.f32 %v2376, %v2408
        %v2413 = vadd.f32 %v2377, %v2409
        %v2414 = vadd.f32 %v2378, %v2410
        %v2415 = vadd.f32 %v2379, %v2411
        %2417 = vset.pattern.permute.xlu0 3
        %2418 = vperm.xlu0 %2417, %v679
        %v2419 = vpop.permute.xlu0 %2418
        %2422 = vset.pattern.permute.xlu0 3
        %2423 = vperm.xlu0 %2422, %v680
        %v2424 = vpop.permute.xlu0 %2423
        %2427 = vset.pattern.permute.xlu0 3
        %2428 = vperm.xlu0 %2427, %v681
        %v2429 = vpop.permute.xlu0 %2428
        %2432 = vset.pattern.permute.xlu0 3
        %2433 = vperm.xlu0 %2432, %v682
        %v2434 = vpop.permute.xlu0 %2433
        %v2436 = vmul.f32 %v1996, %v2419
        %v2437 = vmul.f32 %v1997, %v2424
        %v2438 = vmul.f32 %v1998, %v2429
        %v2439 = vmul.f32 %v1999, %v2434
        %2440 = vrot.lane.b32.xlu0 %v1996, 127
        %v2441 = vpop.permute.xlu0 %2440
        %2442 = vrot.lane.b32.xlu0 %v1997, 127
        %v2443 = vpop.permute.xlu0 %2442
        %2444 = vrot.lane.b32.xlu0 %v1998, 127
        %v2445 = vpop.permute.xlu0 %2444
        %2446 = vrot.lane.b32.xlu0 %v1999, 127
        %v2447 = vpop.permute.xlu0 %2446
        %v2448 = vsel %vm997, %v2441, 0.0
        %v2449 = vsel %vm997, %v2443, 0.0
        %v2450 = vsel %vm997, %v2445, 0.0
        %v2451 = vsel %vm997, %v2447, 0.0
        %2452 = vset.pattern.permute.xlu0 4
        %2453 = vperm.xlu0 %2452, %v679
        %v2454 = vpop.permute.xlu0 %2453
        %2456 = vset.pattern.permute.xlu0 4
        %2457 = vperm.xlu0 %2456, %v680
        %v2458 = vpop.permute.xlu0 %2457
        %2460 = vset.pattern.permute.xlu0 4
        %2461 = vperm.xlu0 %2460, %v681
        %v2462 = vpop.permute.xlu0 %2461
        %2464 = vset.pattern.permute.xlu0 4
        %2465 = vperm.xlu0 %2464, %v682
        %v2466 = vpop.permute.xlu0 %2465
        %v2468 = vmul.f32 %v2448, %v2454
        %v2469 = vmul.f32 %v2449, %v2458
        %v2470 = vmul.f32 %v2450, %v2462
        %v2471 = vmul.f32 %v2451, %v2466
        %v2472 = vadd.f32 %v2436, %v2468
        %v2473 = vadd.f32 %v2437, %v2469
        %v2474 = vadd.f32 %v2438, %v2470
        %v2475 = vadd.f32 %v2439, %v2471
        %2476 = vrot.lane.b32.xlu0 %v1996, 1
        %v2477 = vpop.permute.xlu0 %2476
        %2478 = vrot.lane.b32.xlu0 %v1997, 1
        %v2479 = vpop.permute.xlu0 %2478
        %2480 = vrot.lane.b32.xlu0 %v1998, 1
        %v2481 = vpop.permute.xlu0 %2480
        %2482 = vrot.lane.b32.xlu0 %v1999, 1
        %v2483 = vpop.permute.xlu0 %2482
        %v2484 = vsel %vm983, %v2477, 0.0
        %v2485 = vsel %vm983, %v2479, 0.0
        %v2486 = vsel %vm983, %v2481, 0.0
        %v2487 = vsel %vm983, %v2483, 0.0
        %2488 = vset.pattern.permute.xlu0 2
        %2489 = vperm.xlu0 %2488, %v679
        %v2490 = vpop.permute.xlu0 %2489
        %2492 = vset.pattern.permute.xlu0 2
        %2493 = vperm.xlu0 %2492, %v680
        %v2494 = vpop.permute.xlu0 %2493
        %2496 = vset.pattern.permute.xlu0 2
        %2497 = vperm.xlu0 %2496, %v681
        %v2498 = vpop.permute.xlu0 %2497
        %2500 = vset.pattern.permute.xlu0 2
        %2501 = vperm.xlu0 %2500, %v682
        %v2502 = vpop.permute.xlu0 %2501
        %v2504 = vmul.f32 %v2484, %v2490
        %v2505 = vmul.f32 %v2485, %v2494
        %v2506 = vmul.f32 %v2486, %v2498
        %v2507 = vmul.f32 %v2487, %v2502
        %v2508 = vadd.f32 %v2472, %v2504
        %v2509 = vadd.f32 %v2473, %v2505
        %v2510 = vadd.f32 %v2474, %v2506
        %v2511 = vadd.f32 %v2475, %v2507
        %2512 = vrot.lane.b32.xlu0 %v1996, 126
        %v2513 = vpop.permute.xlu0 %2512
        %2514 = vrot.lane.b32.xlu0 %v1997, 126
        %v2515 = vpop.permute.xlu0 %2514
        %2516 = vrot.lane.b32.xlu0 %v1998, 126
        %v2517 = vpop.permute.xlu0 %2516
        %2518 = vrot.lane.b32.xlu0 %v1999, 126
        %v2519 = vpop.permute.xlu0 %2518
        %v2520 = vsel %vm1011, %v2513, 0.0
        %v2521 = vsel %vm1011, %v2515, 0.0
        %v2522 = vsel %vm1011, %v2517, 0.0
        %v2523 = vsel %vm1011, %v2519, 0.0
        %2524 = vset.pattern.permute.xlu0 5
        %2525 = vperm.xlu0 %2524, %v679
        %v2526 = vpop.permute.xlu0 %2525
        %2528 = vset.pattern.permute.xlu0 5
        %2529 = vperm.xlu0 %2528, %v680
        %v2530 = vpop.permute.xlu0 %2529
        %2532 = vset.pattern.permute.xlu0 5
        %2533 = vperm.xlu0 %2532, %v681
        %v2534 = vpop.permute.xlu0 %2533
        %2536 = vset.pattern.permute.xlu0 5
        %2537 = vperm.xlu0 %2536, %v682
        %v2538 = vpop.permute.xlu0 %2537
        %v2540 = vmul.f32 %v2520, %v2526
        %v2541 = vmul.f32 %v2521, %v2530
        %v2542 = vmul.f32 %v2522, %v2534
        %v2543 = vmul.f32 %v2523, %v2538
        %v2544 = vadd.f32 %v2508, %v2540
        %v2545 = vadd.f32 %v2509, %v2541
        %v2546 = vadd.f32 %v2510, %v2542
        %v2547 = vadd.f32 %v2511, %v2543
        %2548 = vrot.lane.b32.xlu0 %v1996, 2
        %v2549 = vpop.permute.xlu0 %2548
        %2550 = vrot.lane.b32.xlu0 %v1997, 2
        %v2551 = vpop.permute.xlu0 %2550
        %2552 = vrot.lane.b32.xlu0 %v1998, 2
        %v2553 = vpop.permute.xlu0 %2552
        %2554 = vrot.lane.b32.xlu0 %v1999, 2
        %v2555 = vpop.permute.xlu0 %2554
        %v2556 = vsel %vm969, %v2549, 0.0
        %v2557 = vsel %vm969, %v2551, 0.0
        %v2558 = vsel %vm969, %v2553, 0.0
        %v2559 = vsel %vm969, %v2555, 0.0
        %2560 = vset.pattern.permute.xlu0 1
        %2561 = vperm.xlu0 %2560, %v679
        %v2562 = vpop.permute.xlu0 %2561
        %2564 = vset.pattern.permute.xlu0 1
        %2565 = vperm.xlu0 %2564, %v680
        %v2566 = vpop.permute.xlu0 %2565
        %2568 = vset.pattern.permute.xlu0 1
        %2569 = vperm.xlu0 %2568, %v681
        %v2570 = vpop.permute.xlu0 %2569
        %2572 = vset.pattern.permute.xlu0 1
        %2573 = vperm.xlu0 %2572, %v682
        %v2574 = vpop.permute.xlu0 %2573
        %v2576 = vmul.f32 %v2556, %v2562
        %v2577 = vmul.f32 %v2557, %v2566
        %v2578 = vmul.f32 %v2558, %v2570
        %v2579 = vmul.f32 %v2559, %v2574
        %v2580 = vadd.f32 %v2544, %v2576
        %v2581 = vadd.f32 %v2545, %v2577
        %v2582 = vadd.f32 %v2546, %v2578
        %v2583 = vadd.f32 %v2547, %v2579
        %2585 = vset.pattern.permute.xlu0 3
        %2586 = vperm.xlu0 %2585, %v683
        %v2587 = vpop.permute.xlu0 %2586
        %2590 = vset.pattern.permute.xlu0 3
        %2591 = vperm.xlu0 %2590, %v684
        %v2592 = vpop.permute.xlu0 %2591
        %2595 = vset.pattern.permute.xlu0 3
        %2596 = vperm.xlu0 %2595, %v685
        %v2597 = vpop.permute.xlu0 %2596
        %2600 = vset.pattern.permute.xlu0 3
        %2601 = vperm.xlu0 %2600, %v686
        %v2602 = vpop.permute.xlu0 %2601
        %2605 = vset.pattern.permute.xlu0 3
        %2606 = vperm.xlu0 %2605, %v687
        %v2607 = vpop.permute.xlu0 %2606
        %2610 = vset.pattern.permute.xlu0 3
        %2611 = vperm.xlu0 %2610, %v688
        %v2612 = vpop.permute.xlu0 %2611
        %2615 = vset.pattern.permute.xlu0 3
        %2616 = vperm.xlu0 %2615, %v689
        %v2617 = vpop.permute.xlu0 %2616
        %2620 = vset.pattern.permute.xlu0 3
        %2621 = vperm.xlu0 %2620, %v690
        %v2622 = vpop.permute.xlu0 %2621
        %v2624 = vmul.f32 %v2000, %v2587
        %v2625 = vmul.f32 %v2001, %v2592
        %v2626 = vmul.f32 %v2002, %v2597
        %v2627 = vmul.f32 %v2003, %v2602
        %v2628 = vmul.f32 %v2004, %v2607
        %v2629 = vmul.f32 %v2005, %v2612
        %v2630 = vmul.f32 %v2006, %v2617
        %v2631 = vmul.f32 %v2007, %v2622
        %2632 = vrot.lane.b32.xlu0 %v2000, 127
        %v2633 = vpop.permute.xlu0 %2632
        %2634 = vrot.lane.b32.xlu0 %v2001, 127
        %v2635 = vpop.permute.xlu0 %2634
        %2636 = vrot.lane.b32.xlu0 %v2002, 127
        %v2637 = vpop.permute.xlu0 %2636
        %2638 = vrot.lane.b32.xlu0 %v2003, 127
        %v2639 = vpop.permute.xlu0 %2638
        %2640 = vrot.lane.b32.xlu0 %v2004, 127
        %v2641 = vpop.permute.xlu0 %2640
        %2642 = vrot.lane.b32.xlu0 %v2005, 127
        %v2643 = vpop.permute.xlu0 %2642
        %2644 = vrot.lane.b32.xlu0 %v2006, 127
        %v2645 = vpop.permute.xlu0 %2644
        %2646 = vrot.lane.b32.xlu0 %v2007, 127
        %v2647 = vpop.permute.xlu0 %2646
        %v2648 = vsel %vm997, %v2633, 0.0
        %v2649 = vsel %vm997, %v2635, 0.0
        %v2650 = vsel %vm997, %v2637, 0.0
        %v2651 = vsel %vm997, %v2639, 0.0
        %v2652 = vsel %vm997, %v2641, 0.0
        %v2653 = vsel %vm997, %v2643, 0.0
        %v2654 = vsel %vm997, %v2645, 0.0
        %v2655 = vsel %vm997, %v2647, 0.0
        %2656 = vset.pattern.permute.xlu0 4
        %2657 = vperm.xlu0 %2656, %v683
        %v2658 = vpop.permute.xlu0 %2657
        %2660 = vset.pattern.permute.xlu0 4
        %2661 = vperm.xlu0 %2660, %v684
        %v2662 = vpop.permute.xlu0 %2661
        %2664 = vset.pattern.permute.xlu0 4
        %2665 = vperm.xlu0 %2664, %v685
        %v2666 = vpop.permute.xlu0 %2665
        %2668 = vset.pattern.permute.xlu0 4
        %2669 = vperm.xlu0 %2668, %v686
        %v2670 = vpop.permute.xlu0 %2669
        %2672 = vset.pattern.permute.xlu0 4
        %2673 = vperm.xlu0 %2672, %v687
        %v2674 = vpop.permute.xlu0 %2673
        %2676 = vset.pattern.permute.xlu0 4
        %2677 = vperm.xlu0 %2676, %v688
        %v2678 = vpop.permute.xlu0 %2677
        %2680 = vset.pattern.permute.xlu0 4
        %2681 = vperm.xlu0 %2680, %v689
        %v2682 = vpop.permute.xlu0 %2681
        %2684 = vset.pattern.permute.xlu0 4
        %2685 = vperm.xlu0 %2684, %v690
        %v2686 = vpop.permute.xlu0 %2685
        %v2688 = vmul.f32 %v2648, %v2658
        %v2689 = vmul.f32 %v2649, %v2662
        %v2690 = vmul.f32 %v2650, %v2666
        %v2691 = vmul.f32 %v2651, %v2670
        %v2692 = vmul.f32 %v2652, %v2674
        %v2693 = vmul.f32 %v2653, %v2678
        %v2694 = vmul.f32 %v2654, %v2682
        %v2695 = vmul.f32 %v2655, %v2686
        %v2696 = vadd.f32 %v2624, %v2688
        %v2697 = vadd.f32 %v2625, %v2689
        %v2698 = vadd.f32 %v2626, %v2690
        %v2699 = vadd.f32 %v2627, %v2691
        %v2700 = vadd.f32 %v2628, %v2692
        %v2701 = vadd.f32 %v2629, %v2693
        %v2702 = vadd.f32 %v2630, %v2694
        %v2703 = vadd.f32 %v2631, %v2695
        %2704 = vrot.lane.b32.xlu0 %v2000, 1
        %v2705 = vpop.permute.xlu0 %2704
        %2706 = vrot.lane.b32.xlu0 %v2001, 1
        %v2707 = vpop.permute.xlu0 %2706
        %2708 = vrot.lane.b32.xlu0 %v2002, 1
        %v2709 = vpop.permute.xlu0 %2708
        %2710 = vrot.lane.b32.xlu0 %v2003, 1
        %v2711 = vpop.permute.xlu0 %2710
        %2712 = vrot.lane.b32.xlu0 %v2004, 1
        %v2713 = vpop.permute.xlu0 %2712
        %2714 = vrot.lane.b32.xlu0 %v2005, 1
        %v2715 = vpop.permute.xlu0 %2714
        %2716 = vrot.lane.b32.xlu0 %v2006, 1
        %v2717 = vpop.permute.xlu0 %2716
        %2718 = vrot.lane.b32.xlu0 %v2007, 1
        %v2719 = vpop.permute.xlu0 %2718
        %v2720 = vsel %vm983, %v2705, 0.0
        %v2721 = vsel %vm983, %v2707, 0.0
        %v2722 = vsel %vm983, %v2709, 0.0
        %v2723 = vsel %vm983, %v2711, 0.0
        %v2724 = vsel %vm983, %v2713, 0.0
        %v2725 = vsel %vm983, %v2715, 0.0
        %v2726 = vsel %vm983, %v2717, 0.0
        %v2727 = vsel %vm983, %v2719, 0.0
        %2728 = vset.pattern.permute.xlu0 2
        %2729 = vperm.xlu0 %2728, %v683
        %v2730 = vpop.permute.xlu0 %2729
        %2732 = vset.pattern.permute.xlu0 2
        %2733 = vperm.xlu0 %2732, %v684
        %v2734 = vpop.permute.xlu0 %2733
        %2736 = vset.pattern.permute.xlu0 2
        %2737 = vperm.xlu0 %2736, %v685
        %v2738 = vpop.permute.xlu0 %2737
        %2740 = vset.pattern.permute.xlu0 2
        %2741 = vperm.xlu0 %2740, %v686
        %v2742 = vpop.permute.xlu0 %2741
        %2744 = vset.pattern.permute.xlu0 2
        %2745 = vperm.xlu0 %2744, %v687
        %v2746 = vpop.permute.xlu0 %2745
        %2748 = vset.pattern.permute.xlu0 2
        %2749 = vperm.xlu0 %2748, %v688
        %v2750 = vpop.permute.xlu0 %2749
        %2752 = vset.pattern.permute.xlu0 2
        %2753 = vperm.xlu0 %2752, %v689
        %v2754 = vpop.permute.xlu0 %2753
        %2756 = vset.pattern.permute.xlu0 2
        %2757 = vperm.xlu0 %2756, %v690
        %v2758 = vpop.permute.xlu0 %2757
        %v2760 = vmul.f32 %v2720, %v2730
        %v2761 = vmul.f32 %v2721, %v2734
        %v2762 = vmul.f32 %v2722, %v2738
        %v2763 = vmul.f32 %v2723, %v2742
        %v2764 = vmul.f32 %v2724, %v2746
        %v2765 = vmul.f32 %v2725, %v2750
        %v2766 = vmul.f32 %v2726, %v2754
        %v2767 = vmul.f32 %v2727, %v2758
        %v2768 = vadd.f32 %v2696, %v2760
        %v2769 = vadd.f32 %v2697, %v2761
        %v2770 = vadd.f32 %v2698, %v2762
        %v2771 = vadd.f32 %v2699, %v2763
        %v2772 = vadd.f32 %v2700, %v2764
        %v2773 = vadd.f32 %v2701, %v2765
        %v2774 = vadd.f32 %v2702, %v2766
        %v2775 = vadd.f32 %v2703, %v2767
        %v2776 = vpack.c.bf16 %v2173, %v2172
        %v2777 = vpack.c.bf16 %v2175, %v2174
        %v2778 = vpack.c.bf16 %v2413, %v2412
        %v2779 = vpack.c.bf16 %v2415, %v2414
        %v2780 = vpack.c.bf16 %v2581, %v2580
        %v2781 = vpack.c.bf16 %v2583, %v2582
        %v2782 = vpack.c.bf16 %v2769, %v2768
        %v2783 = vpack.c.bf16 %v2771, %v2770
        %v2784 = vpack.c.bf16 %v2773, %v2772
        %v2785 = vpack.c.bf16 %v2775, %v2774
        %2787 = vset.pattern.permute.xlu0 0
        %2788 = vperm.xlu0 %2787, %v711
        %v2789 = vpop.permute.xlu0 %2788
        %2792 = vset.pattern.permute.xlu0 0
        %2793 = vperm.xlu0 %2792, %v712
        %v2794 = vpop.permute.xlu0 %2793
        %2797 = vset.pattern.permute.xlu0 0
        %2798 = vperm.xlu0 %2797, %v713
        %v2799 = vpop.permute.xlu0 %2798
        %2802 = vset.pattern.permute.xlu0 0
        %2803 = vperm.xlu0 %2802, %v714
        %v2804 = vpop.permute.xlu0 %2803
        %2807 = vset.pattern.permute.xlu0 0
        %2808 = vperm.xlu0 %2807, %v715
        %v2809 = vpop.permute.xlu0 %2808
        %2812 = vset.pattern.permute.xlu0 0
        %2813 = vperm.xlu0 %2812, %v716
        %v2814 = vpop.permute.xlu0 %2813
        %2817 = vset.pattern.permute.xlu0 0
        %2818 = vperm.xlu0 %2817, %v717
        %v2819 = vpop.permute.xlu0 %2818
        %2822 = vset.pattern.permute.xlu0 0
        %2823 = vperm.xlu0 %2822, %v718
        %v2824 = vpop.permute.xlu0 %2823
        %2827 = vset.pattern.permute.xlu0 0
        %2828 = vperm.xlu0 %2827, %v719
        %v2829 = vpop.permute.xlu0 %2828
        %2832 = vset.pattern.permute.xlu0 0
        %2833 = vperm.xlu0 %2832, %v720
        %v2834 = vpop.permute.xlu0 %2833
        %2837 = vset.pattern.permute.xlu0 0
        %2838 = vperm.xlu0 %2837, %v721
        %v2839 = vpop.permute.xlu0 %2838
        %2842 = vset.pattern.permute.xlu0 0
        %2843 = vperm.xlu0 %2842, %v722
        %v2844 = vpop.permute.xlu0 %2843
        %2847 = vset.pattern.permute.xlu0 0
        %2848 = vperm.xlu0 %2847, %v723
        %v2849 = vpop.permute.xlu0 %2848
        %2852 = vset.pattern.permute.xlu0 0
        %2853 = vperm.xlu0 %2852, %v724
        %v2854 = vpop.permute.xlu0 %2853
        %2857 = vset.pattern.permute.xlu0 0
        %2858 = vperm.xlu0 %2857, %v725
        %v2859 = vpop.permute.xlu0 %2858
        %2862 = vset.pattern.permute.xlu0 0
        %2863 = vperm.xlu0 %2862, %v726
        %v2864 = vpop.permute.xlu0 %2863
        %2867 = vset.pattern.permute.xlu0 0
        %2868 = vperm.xlu0 %2867, %v727
        %v2869 = vpop.permute.xlu0 %2868
        %2872 = vset.pattern.permute.xlu0 0
        %2873 = vperm.xlu0 %2872, %v728
        %v2874 = vpop.permute.xlu0 %2873
        %2877 = vset.pattern.permute.xlu0 0
        %2878 = vperm.xlu0 %2877, %v729
        %v2879 = vpop.permute.xlu0 %2878
        %2882 = vset.pattern.permute.xlu0 0
        %2883 = vperm.xlu0 %2882, %v730
        %v2884 = vpop.permute.xlu0 %2883
        %v2906 = vunpack.c.l.b16 %v691
        %v2907 = vunpack.c.h.b16 %v691
        %v2908 = vunpack.c.l.b16 %v692
        %v2909 = vunpack.c.h.b16 %v692
        %v2910 = vunpack.c.l.b16 %v693
        %v2911 = vunpack.c.h.b16 %v693
        %v2912 = vunpack.c.l.b16 %v694
        %v2913 = vunpack.c.h.b16 %v694
        %v2914 = vunpack.c.l.b16 %v695
        %v2915 = vunpack.c.h.b16 %v695
        %v2916 = vunpack.c.l.b16 %v696
        %v2917 = vunpack.c.h.b16 %v696
        %v2918 = vunpack.c.l.b16 %v697
        %v2919 = vunpack.c.h.b16 %v697
        %v2920 = vunpack.c.l.b16 %v698
        %v2921 = vunpack.c.h.b16 %v698
        %v2922 = vunpack.c.l.b16 %v699
        %v2923 = vunpack.c.h.b16 %v699
        %v2924 = vunpack.c.l.b16 %v700
        %v2925 = vunpack.c.h.b16 %v700
        %v2926 = vunpack.c.l.b16 %v701
        %v2927 = vunpack.c.h.b16 %v701
        %v2928 = vunpack.c.l.b16 %v702
        %v2929 = vunpack.c.h.b16 %v702
        %v2930 = vunpack.c.l.b16 %v703
        %v2931 = vunpack.c.h.b16 %v703
        %v2932 = vunpack.c.l.b16 %v704
        %v2933 = vunpack.c.h.b16 %v704
        %v2934 = vunpack.c.l.b16 %v705
        %v2935 = vunpack.c.h.b16 %v705
        %v2936 = vunpack.c.l.b16 %v706
        %v2937 = vunpack.c.h.b16 %v706
        %v2938 = vunpack.c.l.b16 %v707
        %v2939 = vunpack.c.h.b16 %v707
        %v2940 = vunpack.c.l.b16 %v708
        %v2941 = vunpack.c.h.b16 %v708
        %v2942 = vunpack.c.l.b16 %v709
        %v2943 = vunpack.c.h.b16 %v709
        %v2944 = vunpack.c.l.b16 %v710
        %v2945 = vunpack.c.h.b16 %v710
        %v2946 = vpack.c.b16 %v2908, %v2906
        %v2947 = vpack.c.b16 %v2909, %v2907
        %v2948 = vpack.c.b16 %v2912, %v2910
        %v2949 = vpack.c.b16 %v2913, %v2911
        %v2950 = vpack.c.b16 %v2916, %v2914
        %v2951 = vpack.c.b16 %v2917, %v2915
        %v2952 = vpack.c.b16 %v2920, %v2918
        %v2953 = vpack.c.b16 %v2921, %v2919
        %v2954 = vpack.c.b16 %v2924, %v2922
        %v2955 = vpack.c.b16 %v2925, %v2923
        %v2956 = vpack.c.b16 %v2928, %v2926
        %v2957 = vpack.c.b16 %v2929, %v2927
        %v2958 = vpack.c.b16 %v2932, %v2930
        %v2959 = vpack.c.b16 %v2933, %v2931
        %v2960 = vpack.c.b16 %v2936, %v2934
        %v2961 = vpack.c.b16 %v2937, %v2935
        %v2962 = vpack.c.b16 %v2940, %v2938
        %v2963 = vpack.c.b16 %v2941, %v2939
        %v2964 = vpack.c.b16 %v2944, %v2942
        %v2965 = vpack.c.b16 %v2945, %v2943
        %v2977 = vsel %vm1844, %v2947, 0
        %v2980 = vsel %vm1844, %v2949, 0
        %v2983 = vsel %vm1844, %v2951, 0
        %v2986 = vsel %vm1844, %v2953, 0
        %v2989 = vsel %vm1844, %v2955, 0
        %v2992 = vsel %vm1844, %v2957, 0
        %v2995 = vsel %vm1844, %v2959, 0
        %v2998 = vsel %vm1844, %v2961, 0
        %v3001 = vsel %vm1844, %v2963, 0
        %v3004 = vsel %vm1844, %v2965, 0
        %3006 = vmatprep.subr.bf16.mxu0 0
        %3007 = vmatpush1.bf16.msra.mxu0 %v2776
        %3008 = vmatprep.subr.bf16.mxu0 0
        %3009 = vmatpush1.bf16.msra.mxu0 %v2777
        %3010 = vmatprep.subr.bf16.mxu0 0
        %3011 = vmatpush1.bf16.msra.mxu0 %v2778
        %3012 = vmatprep.subr.bf16.mxu0 0
        %3013 = vmatpush1.bf16.msra.mxu0 %v2779
        %3014 = vmatprep.subr.bf16.mxu0 0
        %3015 = vmatpush1.bf16.msra.mxu0 %v2780
        %3016 = vmatprep.subr.bf16.mxu0 0
        %3017 = vmatpush1.bf16.msra.mxu0 %v2781
        %3018 = vmatprep.subr.bf16.mxu0 0
        %3019 = vmatpush1.bf16.msra.mxu0 %v2782
        %3020 = vmatprep.subr.bf16.mxu0 0
        %3021 = vmatpush1.bf16.msra.mxu0 %v2783
        %3022 = vmatprep.subr.bf16.mxu0 0
        %3023 = vmatpush1.bf16.msra.mxu0 %v2784
        %3024 = vmatprep.subr.bf16.mxu0 0
        %3025 = vmatpush1.bf16.msra.mxu0 %v2785
        %3026 = vmatprep.subr.bf16.mxu0 0
        %3027 = vmatpush1.bf16.msra.mxu0 0
        %3028 = vmatprep.subr.bf16.mxu0 0
        %3029 = vmatpush1.bf16.msra.mxu0 0
        %3030 = vmatprep.subr.bf16.mxu0 0
        %3031 = vmatpush1.bf16.msra.mxu0 0
        %3032 = vmatprep.subr.bf16.mxu0 0
        %3033 = vmatpush1.bf16.msra.mxu0 0
        %3034 = vmatprep.subr.bf16.mxu0 0
        %3035 = vmatpush1.bf16.msra.mxu0 0
        %3036 = vmatprep.subr.bf16.mxu0 0
        %3037 = vmatpush1.bf16.msra.mxu0 0
        %3038 = vmatprep.mubr.bf16.mxu0 %v2977
        %3039 = vmatmul.mubr.bf16.gmra.mrb[0].mxu0 %v2946
        %v3040 = vpop.f32.mrb[0].mxu0
        %v3041 = vadd.f32 %v2789, %v3040
        %v3042 = vpop.f32.mrb[0].mxu0
        %v3043 = vpop.f32.mrb[0].mxu0
        %v3044 = vadd.f32 %v2794, %v3043
        %v3045 = vpop.f32.mrb[0].mxu0
        %3046 = vmatprep.mubr.bf16.mxu0 %v2980
        %3047 = vmatmul.mubr.bf16.gmra.mrb[0].mxu0 %v2948
        %v3048 = vpop.f32.mrb[0].mxu0
        %v3049 = vadd.f32 %v2799, %v3048
        %v3050 = vpop.f32.mrb[0].mxu0
        %v3051 = vpop.f32.mrb[0].mxu0
        %v3052 = vadd.f32 %v2804, %v3051
        %v3053 = vpop.f32.mrb[0].mxu0
        %3054 = vmatprep.mubr.bf16.mxu0 %v2983
        %3055 = vmatmul.mubr.bf16.gmra.mrb[0].mxu0 %v2950
        %v3056 = vpop.f32.mrb[0].mxu0
        %v3057 = vadd.f32 %v2809, %v3056
        %v3058 = vpop.f32.mrb[0].mxu0
        %v3059 = vpop.f32.mrb[0].mxu0
        %v3060 = vadd.f32 %v2814, %v3059
        %v3061 = vpop.f32.mrb[0].mxu0
        %3062 = vmatprep.mubr.bf16.mxu0 %v2986
        %3063 = vmatmul.mubr.bf16.gmra.mrb[0].mxu0 %v2952
        %v3064 = vpop.f32.mrb[0].mxu0
        %v3065 = vadd.f32 %v2819, %v3064
        %v3066 = vpop.f32.mrb[0].mxu0
        %v3067 = vpop.f32.mrb[0].mxu0
        %v3068 = vadd.f32 %v2824, %v3067
        %v3069 = vpop.f32.mrb[0].mxu0
        %3070 = vmatprep.mubr.bf16.mxu0 %v2989
        %3071 = vmatmul.mubr.bf16.gmra.mrb[0].mxu0 %v2954
        %v3072 = vpop.f32.mrb[0].mxu0
        %v3073 = vadd.f32 %v2829, %v3072
        %v3074 = vpop.f32.mrb[0].mxu0
        %v3075 = vpop.f32.mrb[0].mxu0
        %v3076 = vadd.f32 %v2834, %v3075
        %v3077 = vpop.f32.mrb[0].mxu0
        %3078 = vmatprep.mubr.bf16.mxu0 %v2992
        %3079 = vmatmul.mubr.bf16.gmra.mrb[0].mxu0 %v2956
        %v3080 = vpop.f32.mrb[0].mxu0
        %v3081 = vadd.f32 %v2839, %v3080
        %v3082 = vpop.f32.mrb[0].mxu0
        %v3083 = vpop.f32.mrb[0].mxu0
        %v3084 = vadd.f32 %v2844, %v3083
        %v3085 = vpop.f32.mrb[0].mxu0
        %3086 = vmatprep.mubr.bf16.mxu0 %v2995
        %3087 = vmatmul.mubr.bf16.gmra.mrb[0].mxu0 %v2958
        %v3088 = vpop.f32.mrb[0].mxu0
        %v3089 = vadd.f32 %v2849, %v3088
        %v3090 = vpop.f32.mrb[0].mxu0
        %v3091 = vpop.f32.mrb[0].mxu0
        %v3092 = vadd.f32 %v2854, %v3091
        %v3093 = vpop.f32.mrb[0].mxu0
        %3094 = vmatprep.mubr.bf16.mxu0 %v2998
        %3095 = vmatmul.mubr.bf16.gmra.mrb[0].mxu0 %v2960
        %v3096 = vpop.f32.mrb[0].mxu0
        %v3097 = vadd.f32 %v2859, %v3096
        %v3098 = vpop.f32.mrb[0].mxu0
        %v3099 = vpop.f32.mrb[0].mxu0
        %v3100 = vadd.f32 %v2864, %v3099
        %v3101 = vpop.f32.mrb[0].mxu0
        %3102 = vmatprep.mubr.bf16.mxu0 %v3001
        %3103 = vmatmul.mubr.bf16.gmra.mrb[0].mxu0 %v2962
        %v3104 = vpop.f32.mrb[0].mxu0
        %v3105 = vadd.f32 %v2869, %v3104
        %v3106 = vpop.f32.mrb[0].mxu0
        %v3107 = vpop.f32.mrb[0].mxu0
        %v3108 = vadd.f32 %v2874, %v3107
        %v3109 = vpop.f32.mrb[0].mxu0
        %3110 = vmatprep.mubr.bf16.mxu0 %v3004
        %3111 = vmatmul.mubr.bf16.gmra.mrb[0].mxu0 %v2964
        %v3112 = vpop.f32.mrb[0].mxu0
        %v3113 = vadd.f32 %v2879, %v3112
        %v3114 = vpop.f32.mrb[0].mxu0
        %v3115 = vpop.f32.mrb[0].mxu0
        %v3116 = vadd.f32 %v2884, %v3115
        %v3117 = vpop.f32.mrb[0].mxu0
        %3118 = vdwg.mxu0
        %v3119 = vadd.f32 %v3073, %v3089
        %v3120 = vadd.f32 %v3076, %v3092
        %v3121 = vadd.f32 %v3081, %v3097
        %v3122 = vadd.f32 %v3084, %v3100
        %v3123 = vmax.f32 %v3119, 0.0
        %v3124 = vmax.f32 %v3120, 0.0
        %v3125 = vmax.f32 %v3121, 0.0
        %v3126 = vmax.f32 %v3122, 0.0
        %3128 = vset.pattern.permute.xlu0 3
        %3129 = vperm.xlu0 %3128, %v731
        %v3130 = vpop.permute.xlu0 %3129
        %3133 = vset.pattern.permute.xlu0 3
        %3134 = vperm.xlu0 %3133, %v732
        %v3135 = vpop.permute.xlu0 %3134
        %3138 = vset.pattern.permute.xlu0 3
        %3139 = vperm.xlu0 %3138, %v733
        %v3140 = vpop.permute.xlu0 %3139
        %3143 = vset.pattern.permute.xlu0 3
        %3144 = vperm.xlu0 %3143, %v734
        %v3145 = vpop.permute.xlu0 %3144
        %v3147 = vmul.f32 %v3123, %v3130
        %v3148 = vmul.f32 %v3124, %v3135
        %v3149 = vmul.f32 %v3125, %v3140
        %v3150 = vmul.f32 %v3126, %v3145
        %3151 = vrot.lane.b32.xlu0 %v3123, 127
        %v3152 = vpop.permute.xlu0 %3151
        %3153 = vrot.lane.b32.xlu0 %v3124, 127
        %v3154 = vpop.permute.xlu0 %3153
        %3155 = vrot.lane.b32.xlu0 %v3125, 127
        %v3156 = vpop.permute.xlu0 %3155
        %3157 = vrot.lane.b32.xlu0 %v3126, 127
        %v3158 = vpop.permute.xlu0 %3157
        %v3159 = vsel %vm997, %v3152, 0.0
        %v3160 = vsel %vm997, %v3154, 0.0
        %v3161 = vsel %vm997, %v3156, 0.0
        %v3162 = vsel %vm997, %v3158, 0.0
        %3163 = vset.pattern.permute.xlu0 4
        %3164 = vperm.xlu0 %3163, %v731
        %v3165 = vpop.permute.xlu0 %3164
        %3167 = vset.pattern.permute.xlu0 4
        %3168 = vperm.xlu0 %3167, %v732
        %v3169 = vpop.permute.xlu0 %3168
        %3171 = vset.pattern.permute.xlu0 4
        %3172 = vperm.xlu0 %3171, %v733
        %v3173 = vpop.permute.xlu0 %3172
        %3175 = vset.pattern.permute.xlu0 4
        %3176 = vperm.xlu0 %3175, %v734
        %v3177 = vpop.permute.xlu0 %3176
        %v3179 = vmul.f32 %v3159, %v3165
        %v3180 = vmul.f32 %v3160, %v3169
        %v3181 = vmul.f32 %v3161, %v3173
        %v3182 = vmul.f32 %v3162, %v3177
        %v3183 = vadd.f32 %v3147, %v3179
        %v3184 = vadd.f32 %v3148, %v3180
        %v3185 = vadd.f32 %v3149, %v3181
        %v3186 = vadd.f32 %v3150, %v3182
        %3187 = vrot.lane.b32.xlu0 %v3123, 1
        %v3188 = vpop.permute.xlu0 %3187
        %3189 = vrot.lane.b32.xlu0 %v3124, 1
        %v3190 = vpop.permute.xlu0 %3189
        %3191 = vrot.lane.b32.xlu0 %v3125, 1
        %v3192 = vpop.permute.xlu0 %3191
        %3193 = vrot.lane.b32.xlu0 %v3126, 1
        %v3194 = vpop.permute.xlu0 %3193
        %v3195 = vsel %vm983, %v3188, 0.0
        %v3196 = vsel %vm983, %v3190, 0.0
        %v3197 = vsel %vm983, %v3192, 0.0
        %v3198 = vsel %vm983, %v3194, 0.0
        %3199 = vset.pattern.permute.xlu0 2
        %3200 = vperm.xlu0 %3199, %v731
        %v3201 = vpop.permute.xlu0 %3200
        %3203 = vset.pattern.permute.xlu0 2
        %3204 = vperm.xlu0 %3203, %v732
        %v3205 = vpop.permute.xlu0 %3204
        %3207 = vset.pattern.permute.xlu0 2
        %3208 = vperm.xlu0 %3207, %v733
        %v3209 = vpop.permute.xlu0 %3208
        %3211 = vset.pattern.permute.xlu0 2
        %3212 = vperm.xlu0 %3211, %v734
        %v3213 = vpop.permute.xlu0 %3212
        %v3215 = vmul.f32 %v3195, %v3201
        %v3216 = vmul.f32 %v3196, %v3205
        %v3217 = vmul.f32 %v3197, %v3209
        %v3218 = vmul.f32 %v3198, %v3213
        %v3219 = vadd.f32 %v3183, %v3215
        %v3220 = vadd.f32 %v3184, %v3216
        %v3221 = vadd.f32 %v3185, %v3217
        %v3222 = vadd.f32 %v3186, %v3218
        %v3223 = vpack.c.bf16 %v3220, %v3219
        %v3224 = vpack.c.bf16 %v3222, %v3221
        %3226 = vset.pattern.permute.xlu0 0
        %3227 = vperm.xlu0 %3226, %v739
        %v3228 = vpop.permute.xlu0 %3227
        %3231 = vset.pattern.permute.xlu0 0
        %3232 = vperm.xlu0 %3231, %v740
        %v3233 = vpop.permute.xlu0 %3232
        %3236 = vset.pattern.permute.xlu0 0
        %3237 = vperm.xlu0 %3236, %v741
        %v3238 = vpop.permute.xlu0 %3237
        %3241 = vset.pattern.permute.xlu0 0
        %3242 = vperm.xlu0 %3241, %v742
        %v3243 = vpop.permute.xlu0 %3242
        %v3249 = vunpack.c.l.b16 %v735
        %v3250 = vunpack.c.l.b16 %v736
        %v3251 = vunpack.c.l.b16 %v737
        %v3252 = vunpack.c.l.b16 %v738
        %v3253 = vpack.c.b16 %v3250, %v3249
        %v3254 = vpack.c.b16 %v3252, %v3251
        %v3256 = vsel %vm1844, %v3253, 0
        %v3259 = vsel %vm1844, %v3254, 0
        %3261 = vmatprep.subr.bf16.mxu0 0
        %3262 = vmatpush1.bf16.msra.mxu0 %v3223
        %3263 = vmatprep.subr.bf16.mxu0 0
        %3264 = vmatpush1.bf16.msra.mxu0 %v3224
        %3265 = vmatprep.subr.bf16.mxu0 0
        %3266 = vmatpush1.bf16.msra.mxu0 0
        %3267 = vmatprep.subr.bf16.mxu0 0
        %3268 = vmatpush1.bf16.msra.mxu0 0
        %3269 = vmatprep.subr.bf16.mxu0 0
        %3270 = vmatpush1.bf16.msra.mxu0 0
        %3271 = vmatprep.subr.bf16.mxu0 0
        %3272 = vmatpush1.bf16.msra.mxu0 0
        %3273 = vmatprep.subr.bf16.mxu0 0
        %3274 = vmatpush1.bf16.msra.mxu0 0
        %3275 = vmatprep.subr.bf16.mxu0 0
        %3276 = vmatpush1.bf16.msra.mxu0 0
        %3277 = vmatprep.subr.bf16.mxu0 0
        %3278 = vmatpush1.bf16.msra.mxu0 0
        %3279 = vmatprep.subr.bf16.mxu0 0
        %3280 = vmatpush1.bf16.msra.mxu0 0
        %3281 = vmatprep.subr.bf16.mxu0 0
        %3282 = vmatpush1.bf16.msra.mxu0 0
        %3283 = vmatprep.subr.bf16.mxu0 0
        %3284 = vmatpush1.bf16.msra.mxu0 0
        %3285 = vmatprep.subr.bf16.mxu0 0
        %3286 = vmatpush1.bf16.msra.mxu0 0
        %3287 = vmatprep.subr.bf16.mxu0 0
        %3288 = vmatpush1.bf16.msra.mxu0 0
        %3289 = vmatprep.subr.bf16.mxu0 0
        %3290 = vmatpush1.bf16.msra.mxu0 0
        %3291 = vmatprep.subr.bf16.mxu0 0
        %3292 = vmatpush1.bf16.msra.mxu0 0
        %3293 = vmatprep.mubr.bf16.mxu0 0
        %3294 = vmatmul.mubr.bf16.gmra.mrb[0].mxu0 %v3256
        %v3295 = vpop.f32.mrb[0].mxu0
        %v3296 = vadd.f32 %v3228, %v3295
        %v3297 = vpop.f32.mrb[0].mxu0
        %v3298 = vpop.f32.mrb[0].mxu0
        %v3299 = vadd.f32 %v3233, %v3298
        %v3300 = vpop.f32.mrb[0].mxu0
        %3301 = vmatprep.mubr.bf16.mxu0 0
        %3302 = vmatmul.mubr.bf16.gmra.mrb[0].mxu0 %v3259
        %v3303 = vpop.f32.mrb[0].mxu0
        %v3304 = vadd.f32 %v3238, %v3303
        %v3305 = vpop.f32.mrb[0].mxu0
        %v3306 = vpop.f32.mrb[0].mxu0
        %v3307 = vadd.f32 %v3243, %v3306
        %v3308 = vpop.f32.mrb[0].mxu0
        %3309 = vdwg.mxu0
        %v3310 = vmax.f32 %v3296, 0.0
        %v3311 = vmax.f32 %v3299, 0.0
        %v3312 = vmax.f32 %v3304, 0.0
        %v3313 = vmax.f32 %v3307, 0.0
        %3315 = vset.pattern.permute.xlu0 3
        %3316 = vperm.xlu0 %3315, %v743
        %v3317 = vpop.permute.xlu0 %3316
        %3320 = vset.pattern.permute.xlu0 3
        %3321 = vperm.xlu0 %3320, %v744
        %v3322 = vpop.permute.xlu0 %3321
        %3325 = vset.pattern.permute.xlu0 3
        %3326 = vperm.xlu0 %3325, %v745
        %v3327 = vpop.permute.xlu0 %3326
        %3330 = vset.pattern.permute.xlu0 3
        %3331 = vperm.xlu0 %3330, %v746
        %v3332 = vpop.permute.xlu0 %3331
        %v3334 = vmul.f32 %v3310, %v3317
        %v3335 = vmul.f32 %v3311, %v3322
        %v3336 = vmul.f32 %v3312, %v3327
        %v3337 = vmul.f32 %v3313, %v3332
        %3338 = vrot.lane.b32.xlu0 %v3310, 127
        %v3339 = vpop.permute.xlu0 %3338
        %3340 = vrot.lane.b32.xlu0 %v3311, 127
        %v3341 = vpop.permute.xlu0 %3340
        %3342 = vrot.lane.b32.xlu0 %v3312, 127
        %v3343 = vpop.permute.xlu0 %3342
        %3344 = vrot.lane.b32.xlu0 %v3313, 127
        %v3345 = vpop.permute.xlu0 %3344
        %v3346 = vsel %vm997, %v3339, 0.0
        %v3347 = vsel %vm997, %v3341, 0.0
        %v3348 = vsel %vm997, %v3343, 0.0
        %v3349 = vsel %vm997, %v3345, 0.0
        %3350 = vset.pattern.permute.xlu0 4
        %3351 = vperm.xlu0 %3350, %v743
        %v3352 = vpop.permute.xlu0 %3351
        %3354 = vset.pattern.permute.xlu0 4
        %3355 = vperm.xlu0 %3354, %v744
        %v3356 = vpop.permute.xlu0 %3355
        %3358 = vset.pattern.permute.xlu0 4
        %3359 = vperm.xlu0 %3358, %v745
        %v3360 = vpop.permute.xlu0 %3359
        %3362 = vset.pattern.permute.xlu0 4
        %3363 = vperm.xlu0 %3362, %v746
        %v3364 = vpop.permute.xlu0 %3363
        %v3366 = vmul.f32 %v3346, %v3352
        %v3367 = vmul.f32 %v3347, %v3356
        %v3368 = vmul.f32 %v3348, %v3360
        %v3369 = vmul.f32 %v3349, %v3364
        %v3370 = vadd.f32 %v3334, %v3366
        %v3371 = vadd.f32 %v3335, %v3367
        %v3372 = vadd.f32 %v3336, %v3368
        %v3373 = vadd.f32 %v3337, %v3369
        %3374 = vrot.lane.b32.xlu0 %v3310, 1
        %v3375 = vpop.permute.xlu0 %3374
        %3376 = vrot.lane.b32.xlu0 %v3311, 1
        %v3377 = vpop.permute.xlu0 %3376
        %3378 = vrot.lane.b32.xlu0 %v3312, 1
        %v3379 = vpop.permute.xlu0 %3378
        %3380 = vrot.lane.b32.xlu0 %v3313, 1
        %v3381 = vpop.permute.xlu0 %3380
        %v3382 = vsel %vm983, %v3375, 0.0
        %v3383 = vsel %vm983, %v3377, 0.0
        %v3384 = vsel %vm983, %v3379, 0.0
        %v3385 = vsel %vm983, %v3381, 0.0
        %3386 = vset.pattern.permute.xlu0 2
        %3387 = vperm.xlu0 %3386, %v743
        %v3388 = vpop.permute.xlu0 %3387
        %3390 = vset.pattern.permute.xlu0 2
        %3391 = vperm.xlu0 %3390, %v744
        %v3392 = vpop.permute.xlu0 %3391
        %3394 = vset.pattern.permute.xlu0 2
        %3395 = vperm.xlu0 %3394, %v745
        %v3396 = vpop.permute.xlu0 %3395
        %3398 = vset.pattern.permute.xlu0 2
        %3399 = vperm.xlu0 %3398, %v746
        %v3400 = vpop.permute.xlu0 %3399
        %v3402 = vmul.f32 %v3382, %v3388
        %v3403 = vmul.f32 %v3383, %v3392
        %v3404 = vmul.f32 %v3384, %v3396
        %v3405 = vmul.f32 %v3385, %v3400
        %v3406 = vadd.f32 %v3370, %v3402
        %v3407 = vadd.f32 %v3371, %v3403
        %v3408 = vadd.f32 %v3372, %v3404
        %v3409 = vadd.f32 %v3373, %v3405
        %v3410 = vpack.c.bf16 %v3407, %v3406
        %v3411 = vpack.c.bf16 %v3409, %v3408
        %3413 = vset.pattern.permute.xlu0 0
        %3414 = vperm.xlu0 %3413, %v751
        %v3415 = vpop.permute.xlu0 %3414
        %3418 = vset.pattern.permute.xlu0 0
        %3419 = vperm.xlu0 %3418, %v752
        %v3420 = vpop.permute.xlu0 %3419
        %3423 = vset.pattern.permute.xlu0 0
        %3424 = vperm.xlu0 %3423, %v753
        %v3425 = vpop.permute.xlu0 %3424
        %3428 = vset.pattern.permute.xlu0 0
        %3429 = vperm.xlu0 %3428, %v754
        %v3430 = vpop.permute.xlu0 %3429
        %v3436 = vunpack.c.l.b16 %v747
        %v3437 = vunpack.c.l.b16 %v748
        %v3438 = vunpack.c.l.b16 %v749
        %v3439 = vunpack.c.l.b16 %v750
        %v3440 = vpack.c.b16 %v3437, %v3436
        %v3441 = vpack.c.b16 %v3439, %v3438
        %v3443 = vsel %vm1844, %v3440, 0
        %v3446 = vsel %vm1844, %v3441, 0
        %3448 = vmatprep.subr.bf16.mxu0 0
        %3449 = vmatpush1.bf16.msra.mxu0 %v3410
        %3450 = vmatprep.subr.bf16.mxu0 0
        %3451 = vmatpush1.bf16.msra.mxu0 %v3411
        %3452 = vmatprep.subr.bf16.mxu0 0
        %3453 = vmatpush1.bf16.msra.mxu0 0
        %3454 = vmatprep.subr.bf16.mxu0 0
        %3455 = vmatpush1.bf16.msra.mxu0 0
        %3456 = vmatprep.subr.bf16.mxu0 0
        %3457 = vmatpush1.bf16.msra.mxu0 0
        %3458 = vmatprep.subr.bf16.mxu0 0
        %3459 = vmatpush1.bf16.msra.mxu0 0
        %3460 = vmatprep.subr.bf16.mxu0 0
        %3461 = vmatpush1.bf16.msra.mxu0 0
        %3462 = vmatprep.subr.bf16.mxu0 0
        %3463 = vmatpush1.bf16.msra.mxu0 0
        %3464 = vmatprep.subr.bf16.mxu0 0
        %3465 = vmatpush1.bf16.msra.mxu0 0
        %3466 = vmatprep.subr.bf16.mxu0 0
        %3467 = vmatpush1.bf16.msra.mxu0 0
        %3468 = vmatprep.subr.bf16.mxu0 0
        %3469 = vmatpush1.bf16.msra.mxu0 0
        %3470 = vmatprep.subr.bf16.mxu0 0
        %3471 = vmatpush1.bf16.msra.mxu0 0
        %3472 = vmatprep.subr.bf16.mxu0 0
        %3473 = vmatpush1.bf16.msra.mxu0 0
        %3474 = vmatprep.subr.bf16.mxu0 0
        %3475 = vmatpush1.bf16.msra.mxu0 0
        %3476 = vmatprep.subr.bf16.mxu0 0
        %3477 = vmatpush1.bf16.msra.mxu0 0
        %3478 = vmatprep.subr.bf16.mxu0 0
        %3479 = vmatpush1.bf16.msra.mxu0 0
        %3480 = vmatprep.mubr.bf16.mxu0 0
        %3481 = vmatmul.mubr.bf16.gmra.mrb[0].mxu0 %v3443
        %v3482 = vpop.f32.mrb[0].mxu0
        %v3483 = vadd.f32 %v3415, %v3482
        %v3484 = vpop.f32.mrb[0].mxu0
        %v3485 = vpop.f32.mrb[0].mxu0
        %v3486 = vadd.f32 %v3420, %v3485
        %v3487 = vpop.f32.mrb[0].mxu0
        %3488 = vmatprep.mubr.bf16.mxu0 0
        %3489 = vmatmul.mubr.bf16.gmra.mrb[0].mxu0 %v3446
        %v3490 = vpop.f32.mrb[0].mxu0
        %v3491 = vadd.f32 %v3425, %v3490
        %v3492 = vpop.f32.mrb[0].mxu0
        %v3493 = vpop.f32.mrb[0].mxu0
        %v3494 = vadd.f32 %v3430, %v3493
        %v3495 = vpop.f32.mrb[0].mxu0
        %3496 = vdwg.mxu0
        %3497 = vrot.lane.b32.xlu0 %v843, 1
        %v3498 = vpop.permute.xlu0 %3497
        %3499 = vrot.lane.b32.xlu0 %v846, 1
        %v3500 = vpop.permute.xlu0 %3499
        %3501 = vrot.lane.b32.xlu0 %v851, 1
        %v3502 = vpop.permute.xlu0 %3501
        %3503 = vrot.lane.b32.xlu0 %v854, 1
        %v3504 = vpop.permute.xlu0 %3503
        %v3505 = vsel %vm983, %v3498, -inf
        %v3506 = vsel %vm983, %v3500, -inf
        %v3507 = vsel %vm983, %v3502, -inf
        %v3508 = vsel %vm983, %v3504, -inf
        %3509 = vrot.lane.b32.xlu0 %v843, 127
        %v3510 = vpop.permute.xlu0 %3509
        %3511 = vrot.lane.b32.xlu0 %v846, 127
        %v3512 = vpop.permute.xlu0 %3511
        %3513 = vrot.lane.b32.xlu0 %v851, 127
        %v3514 = vpop.permute.xlu0 %3513
        %3515 = vrot.lane.b32.xlu0 %v854, 127
        %v3516 = vpop.permute.xlu0 %3515
        %v3517 = vsel %vm997, %v3510, -inf
        %v3518 = vsel %vm997, %v3512, -inf
        %v3519 = vsel %vm997, %v3514, -inf
        %v3520 = vsel %vm997, %v3516, -inf
        %v3521 = vmax.f32 %v3505, %v843
        %v3522 = vmax.f32 %v3506, %v846
        %v3523 = vmax.f32 %v3507, %v851
        %v3524 = vmax.f32 %v3508, %v854
        %v3525 = vmax.f32 %v3521, %v3517
        %v3526 = vmax.f32 %v3522, %v3518
        %v3527 = vmax.f32 %v3523, %v3519
        %v3528 = vmax.f32 %v3524, %v3520
        %3529 = vrot.lane.b32.xlu0 %v938, 1
        %v3530 = vpop.permute.xlu0 %3529
        %3531 = vrot.lane.b32.xlu0 %v941, 1
        %v3532 = vpop.permute.xlu0 %3531
        %3533 = vrot.lane.b32.xlu0 %v946, 1
        %v3534 = vpop.permute.xlu0 %3533
        %3535 = vrot.lane.b32.xlu0 %v949, 1
        %v3536 = vpop.permute.xlu0 %3535
        %v3537 = vsel %vm983, %v3530, -inf
        %v3538 = vsel %vm983, %v3532, -inf
        %v3539 = vsel %vm983, %v3534, -inf
        %v3540 = vsel %vm983, %v3536, -inf
        %3541 = vrot.lane.b32.xlu0 %v938, 127
        %v3542 = vpop.permute.xlu0 %3541
        %3543 = vrot.lane.b32.xlu0 %v941, 127
        %v3544 = vpop.permute.xlu0 %3543
        %3545 = vrot.lane.b32.xlu0 %v946, 127
        %v3546 = vpop.permute.xlu0 %3545
        %3547 = vrot.lane.b32.xlu0 %v949, 127
        %v3548 = vpop.permute.xlu0 %3547
        %v3549 = vsel %vm997, %v3542, -inf
        %v3550 = vsel %vm997, %v3544, -inf
        %v3551 = vsel %vm997, %v3546, -inf
        %v3552 = vsel %vm997, %v3548, -inf
        %v3553 = vmax.f32 %v3537, %v938
        %v3554 = vmax.f32 %v3538, %v941
        %v3555 = vmax.f32 %v3539, %v946
        %v3556 = vmax.f32 %v3540, %v949
        %v3557 = vmax.f32 %v3553, %v3549
        %v3558 = vmax.f32 %v3554, %v3550
        %v3559 = vmax.f32 %v3555, %v3551
        %v3560 = vmax.f32 %v3556, %v3552
        %v3561 = vadd.f32 %v3041, %v3525
        %v3562 = vadd.f32 %v3044, %v3526
        %v3563 = vadd.f32 %v3049, %v3527
        %v3564 = vadd.f32 %v3052, %v3528
        %v3565 = vadd.f32 %v3057, %v3557
        %v3566 = vadd.f32 %v3060, %v3558
        %v3567 = vadd.f32 %v3065, %v3559
        %v3568 = vadd.f32 %v3068, %v3560
        %v3569 = vadd.f32 %v3483, %v3557
        %v3570 = vadd.f32 %v3486, %v3558
        %v3571 = vadd.f32 %v3491, %v3559
        %v3572 = vadd.f32 %v3494, %v3560
        %v3573 = vadd.f32 %v3105, %v938
        %v3574 = vadd.f32 %v3108, %v941
        %v3575 = vadd.f32 %v3113, %v946
        %v3576 = vadd.f32 %v3116, %v949
        %3577 = vst [vmem:[%s583] sm:$0xff] %v3561
        %3578 = vst [vmem:[%s583 + $0x8] sm:$0xff] %v3562
        %3579 = vst [vmem:[%s583 + $0x10] sm:$0xff] %v3563
        %3580 = vst [vmem:[%s583 + $0x18] sm:$0xff] %v3564
        %3581 = vst [vmem:[%s583 + $0x20] sm:$0xff] %v3565
        %3582 = vst [vmem:[%s583 + $0x28] sm:$0xff] %v3566
        %3583 = vst [vmem:[%s583 + $0x30] sm:$0xff] %v3567
        %3584 = vst [vmem:[%s583 + $0x38] sm:$0xff] %v3568
        %3585 = vst [vmem:[%s583 + $0x40] sm:$0xff] %v3119
        %3586 = vst [vmem:[%s583 + $0x48] sm:$0xff] %v3120
        %3587 = vst [vmem:[%s583 + $0x50] sm:$0xff] %v3121
        %3588 = vst [vmem:[%s583 + $0x58] sm:$0xff] %v3122
        %3589 = vst [vmem:[%s583 + $0x60] sm:$0xff] %v3569
        %3590 = vst [vmem:[%s583 + $0x68] sm:$0xff] %v3570
        %3591 = vst [vmem:[%s583 + $0x70] sm:$0xff] %v3571
        %3592 = vst [vmem:[%s583 + $0x78] sm:$0xff] %v3572
        %3593 = vst [vmem:[%s583 + $0x80] sm:$0xff] %v3573
        %3594 = vst [vmem:[%s583 + $0x88] sm:$0xff] %v3574
        %3595 = vst [vmem:[%s583 + $0x90] sm:$0xff] %v3575
        %3596 = vst [vmem:[%s583 + $0x98] sm:$0xff] %v3576
        %s3597 = sand.u32 %s428, 1
        %s3598 = scalar_lea.sflag [#allocation3], %s3597
        %s3599 = sand.u32 %s428, 1
        %s3600 = smul.addr %s3599, 160
        %s3601 = scalar_lea.vmem [#allocation2], %s3600
        // Predicated region
        $region93: #{tpu_custom_call.1} parent=91 // pred_check
          %p3602 = pneg %p438
        $region94: #{tpu_custom_call.1} parent=91 // pred_check_branch
          %3604 = sbr.rel (%p3602) target = $region96
        $region95: #{tpu_custom_call.1} parent=91 // pred_region
          %s3606 = ssub.s32 2560, 2560
          %3607 = vsyncadd %s3598, %s3606
          %s3608 = smul.addr %s32, 20
          %s3609 = smul.addr %s3608, 128
          %s3610 = scalar_lea.hbm %s18, %s3609
          %s3611 = sshll.u32 %s3601, 4
          %s3612 = int_to_ptr.vmem [resolvable:$true] %s3611
          %3617 = dma.vmem_to_hbm [thread:$0]  %s3612, 2560, %s3610, %s3598, 128, 128, 8
        $region96: #{tpu_custom_call.1} parent=91 // pred_fallthru
          _
      $region92: #{tpu_custom_call.1} parent=5 // pred_fallthru
        _
      %p3618 = scmp.le.s32.totalorder 2, %s27
      // Predicated region
      $region97: #{tpu_custom_call.1} parent=5 // pred_check
        %p3619 = pneg %p3618
      $region98: #{tpu_custom_call.1} parent=5 // pred_check_branch
        %3621 = sbr.rel (%p3619) target = $region100
      $region99: #{tpu_custom_call.1} parent=5 // pred_region
        %s3622 = ssub.s32 %s27, 2
        // Predicated region
        $region101: #{tpu_custom_call.1} parent=99 // pred_check
          %p3623 = pneg %p444
        $region102: #{tpu_custom_call.1} parent=99 // pred_check_branch
          %3625 = sbr.rel (%p3623) target = $region104
        $region103: #{tpu_custom_call.1} parent=99 // pred_region
          %s3626 = sand.u32 %s429, 1
          %s3627 = scalar_lea.sflag [#allocation3], %s3626
          %s3628 = sand.u32 %s429, 1
          %s3629 = smul.addr %s3628, 160
          %s3630 = scalar_lea.vmem [#allocation2], %s3629
          %3631 = dma.done %s3627, 2560
        $region104: #{tpu_custom_call.1} parent=99 // pred_fallthru
          _
      $region100: #{tpu_custom_call.1} parent=5 // pred_fallthru
        _
    $region6: #{tpu_custom_call.1} parent=1 // loop_footer
      %s31 = sadd.s32 1, %s27
    $region7: #{tpu_custom_call.1} parent=1 // loop_footer_branch
      %26 = sbr.rel target = $region3
    $region8: #{tpu_custom_call.1} parent=1 // loop_exit
      _
    %3632 = vsyncpa [#allocation3], 1
    %s3633 = scalar_lea.sflag [#allocation3], 1
    %3634 = vsyncpa %s3633, 1

</llo_original>
